<compile_context>
chip_gen: v5e
topology: v5e:2x2
jax: 0.10.0
libtpu: 0.0.40
codegen_flags: <defaults>
</compile_context>

<pallas_src>
import functools

import jax
import jax.numpy as jnp
import numpy as np
from jax.experimental import pallas as pl
from jax.experimental.pallas import tpu as pltpu

EPS = 1e-5


# --------------------- fused 3x3 conv (+ partial BN stats) kernel ---------------------
def _conv3x3_kernel(xph_ref, w_ref, iscale_ref, ishift_ref, y_ref, stats_ref,
                    *, stride, ho, wo, apply_input_bn_relu, compute_dtype):
    """One grid step = `tile_n` images.

    xph_ref   : (stride*stride, tile_n, Hq, Wq, Cin)  phase-decomposed padded input
    w_ref     : (9, Cin, Cout)                        conv weight, tap-major (kh*3+kw)
    iscale_ref, ishift_ref : (1, Cin)                 per-channel BN of the *input*
    y_ref     : (tile_n, Ho, Wo, Cout)                raw conv output
    stats_ref : (1, 2, Cout)                          per-tile [sum; sum_sq] over rows
    """
    nph, tn, hq, wq, cin = xph_ref.shape
    cout = w_ref.shape[-1]
    m = tn * ho * wo

    if apply_input_bn_relu:
        # conv2 path (stride==1, nph==1): bn1 + ReLU fused here, entirely in VMEM.
        x0 = xph_ref[0].astype(jnp.float32)                       # (tn, Hq, Wq, Cin)
        x0 = jnp.maximum(x0 * iscale_ref[...] + ishift_ref[...], 0.0)
        # Re-zero the spatial padding ring (BN shift would make it non-zero).
        hi = jax.lax.broadcasted_iota(jnp.int32, (hq, wq), 0)
        wi = jax.lax.broadcasted_iota(jnp.int32, (hq, wq), 1)
        ring = ((hi >= 1) & (hi < hq - 1) & (wi >= 1) & (wi < wq - 1))
        x0 = x0 * ring.astype(jnp.float32)[:, :, None]

        def tap(ph, h0, w0):
            return x0[:, h0:h0 + ho, w0:w0 + wo, :]
    else:
        def tap(ph, h0, w0):
            return xph_ref[ph, :, h0:h0 + ho, w0:w0 + wo, :].astype(jnp.float32)

    acc = jnp.zeros((m, cout), jnp.float32)
    for kh in range(3):
        for kw in range(3):
            ph = (kh % stride) * stride + (kw % stride)
            h0, w0 = kh // stride, kw // stride
            lhs = tap(ph, h0, w0).reshape(m, cin).astype(compute_dtype)
            acc = acc + jnp.dot(lhs, w_ref[kh * 3 + kw],
                                preferred_element_type=jnp.float32)

    y_ref[...] = acc.reshape(tn, ho, wo, cout).astype(y_ref.dtype)
    stats_ref[0, 0:1, :] = jnp.sum(acc, axis=0, keepdims=True)
    stats_ref[0, 1:2, :] = jnp.sum(acc * acc, axis=0, keepdims=True)


def _pick_batch_tile(n, per_image_bytes, budget_bytes=2 << 20):
    """Largest divisor of n that fits the per-step VMEM budget; capped at n//2
    (when n > 1) so the grid has >= 2 steps and the DMA pipeline is exercised."""
    cap = max(1, n // 2)
    best = 1
    for t in range(1, cap + 1):
        if n % t == 0 and t * per_image_bytes <= budget_bytes:
            best = t
    return best


def conv3x3_with_bn_stats(x_nhwc, w_oihw, *, stride, in_scale=None, in_shift=None,
                          apply_input_bn_relu=False, compute_dtype=jnp.float32):
    """Raw 3x3 conv (padding=1) + per-tile partial BN stats of its output.

    Optionally applies per-channel (scale, shift) + ReLU to the *input* first
    (used to fuse bn1+relu into the conv2 kernel so o1 never hits HBM).
    Returns y: (N, Ho, Wo, Cout) [compute_dtype], stats: (num_tiles, 2, Cout) f32.
    """
    n, h, w, cin = x_nhwc.shape
    cout = w_oihw.shape[0]
    assert h % stride == 0 and w % stride == 0
    assert not (apply_input_bn_relu and stride != 1)
    ho = (h - 1) // stride + 1
    wo = (w - 1) // stride + 1

    # Pad (padding=1) and split into stride phases so every kernel tap is a
    # contiguous static slice (no strided loads in-kernel).
    xp = jnp.pad(x_nhwc, ((0, 0), (1, 1), (1, 1), (0, 0)))
    phases = [xp[:, ph::stride, pw::stride, :]
              for ph in range(stride) for pw in range(stride)]
    xph = jnp.stack(phases, axis=0).astype(compute_dtype)     # (s*s, N, Hq, Wq, Cin)
    nph, _, hq, wq, _ = xph.shape

    # (Cout, Cin, 3, 3) -> (9, Cin, Cout), tap index kh*3+kw (matches kernel loop).
    w9 = jnp.transpose(w_oihw, (2, 3, 1, 0)).reshape(9, cin, cout).astype(compute_dtype)

    if in_scale is None:
        in_scale = jnp.ones((1, cin), jnp.float32)
        in_shift = jnp.zeros((1, cin), jnp.float32)
    else:
        in_scale = in_scale.reshape(1, cin).astype(jnp.float32)
        in_shift = in_shift.reshape(1, cin).astype(jnp.float32)

    itemsize = jnp.dtype(compute_dtype).itemsize
    per_image = nph * hq * wq * cin * itemsize + ho * wo * cout * itemsize
    tile_n = _pick_batch_tile(n, per_image)
    num_tiles = n // tile_n

    kernel = functools.partial(
        _conv3x3_kernel, stride=stride, ho=ho, wo=wo,
        apply_input_bn_relu=apply_input_bn_relu, compute_dtype=compute_dtype)

    y, stats = pl.pallas_call(
        kernel,
        grid=(num_tiles,),
        in_specs=[
            pl.BlockSpec((nph, tile_n, hq, wq, cin), lambda i: (0, i, 0, 0, 0)),
            pl.BlockSpec((9, cin, cout), lambda i: (0, 0, 0)),
            pl.BlockSpec((1, cin), lambda i: (0, 0)),
            pl.BlockSpec((1, cin), lambda i: (0, 0)),
        ],
        out_specs=[
            pl.BlockSpec((tile_n, ho, wo, cout), lambda i: (i, 0, 0, 0)),
            pl.BlockSpec((1, 2, cout), lambda i: (i, 0, 0)),
        ],
        out_shape=[
            jax.ShapeDtypeStruct((n, ho, wo, cout), compute_dtype),
            jax.ShapeDtypeStruct((num_tiles, 2, cout), jnp.float32),
        ],
        compiler_params=pltpu.CompilerParams(
            dimension_semantics=("parallel",),
            vmem_limit_bytes=48 * 1024 * 1024),
        cost_estimate=pl.CostEstimate(
            flops=2 * n * ho * wo * 9 * cin * cout,
            transcendentals=0,
            bytes_accessed=(xph.size * itemsize + w9.size * itemsize
                            + n * ho * wo * cout * itemsize
                            + num_tiles * 2 * cout * 4)),
    )(xph, w9, in_scale, in_shift)
    return y, stats


# ------------------- bn2 + shortcut-add + relu kernel (lane-packed) -------------------
def _bn_add_relu_kernel(y_ref, scale_ref, shift_ref, res_ref, o_ref):
    y = y_ref[...].astype(jnp.float32)
    out = y * scale_ref[...] + shift_ref[...] + res_ref[...]
    o_ref[...] = jnp.maximum(out, 0.0)


def _pick_row_tile(r, target=512):
    if r <= 8:
        return r
    cap = min(target, max(8, r // 2))
    for t in range(cap, 7, -1):
        if r % t == 0 and t % 8 == 0:
            return t
    return r   # full extent is always a legal block


def bn_add_relu(y2d, scale_row, shift_row, res2d):
    r, wc = y2d.shape
    tile_r = _pick_row_tile(r)
    return pl.pallas_call(
        _bn_add_relu_kernel,
        grid=(r // tile_r,),
        in_specs=[
            pl.BlockSpec((tile_r, wc), lambda i: (i, 0)),
            pl.BlockSpec((1, wc), lambda i: (0, 0)),
            pl.BlockSpec((1, wc), lambda i: (0, 0)),
            pl.BlockSpec((tile_r, wc), lambda i: (i, 0)),
        ],
        out_specs=pl.BlockSpec((tile_r, wc), lambda i: (i, 0)),
        out_shape=jax.ShapeDtypeStruct((r, wc), jnp.float32),
        compiler_params=pltpu.CompilerParams(
            dimension_semantics=("parallel",),
            vmem_limit_bytes=48 * 1024 * 1024),
        cost_estimate=pl.CostEstimate(
            flops=3 * r * wc, transcendentals=0,
            bytes_accessed=(y2d.size * y2d.dtype.itemsize + res2d.size * 4
                            + r * wc * 4 + 2 * wc * 4)),
    )(y2d, scale_row, shift_row, res2d)


# --------------------------------- JAX glue -------------------------------------------
def _bn_scale_shift(stats, m, gamma, beta):
    """Fold partial (sum, sum_sq) tiles into per-channel scale/shift (training BN)."""
    tot = jnp.sum(stats, axis=0)                         # (2, C)
    mean = tot[0] / m
    var = jnp.maximum(tot[1] / m - mean * mean, 0.0)     # biased variance
    scale = gamma * jax.lax.rsqrt(var + EPS)
    shift = beta - mean * scale
    return scale, shift


def basic_block_forward(x_nchw, params, in_planes, planes, stride,
                        compute_dtype=jnp.float32):
    """Pallas implementation of BasicBlockCifar.forward (option-'A' shortcut)."""
    w1, g1, b1, w2, g2, b2 = params
    x = jnp.transpose(x_nchw, (0, 2, 3, 1)).astype(jnp.float32)        # NCHW -> NHWC
    n = x.shape[0]

    # conv1 (stride) + per-tile bn1 partial stats
    y1, st1 = conv3x3_with_bn_stats(x, w1, stride=stride, compute_dtype=compute_dtype)
    _, ho, wo, _ = y1.shape
    m = n * ho * wo
    scale1, shift1 = _bn_scale_shift(st1, m, g1, b1)

    # conv2 (stride 1); bn1+relu applied to its input *inside* the kernel
    y2, st2 = conv3x3_with_bn_stats(y1, w2, stride=1,
                                    in_scale=scale1, in_shift=shift1,
                                    apply_input_bn_relu=True,
                                    compute_dtype=compute_dtype)
    scale2, shift2 = _bn_scale_shift(st2, m, g2, b2)

    # option-'A' shortcut
    if stride != 1 or in_planes != planes:
        p4 = planes // 4
        sc = jnp.pad(x[:, ::stride, ::stride, :], ((0, 0), (0, 0), (0, 0), (p4, p4)))
    else:
        sc = x

    # bn2 + shortcut + relu on a lane-packed (N*Ho, Wo*C) view (lane-dense stores)
    wc = wo * planes
    out2d = bn_add_relu(
        y2.reshape(n * ho, wc),
        jnp.tile(scale2, wo).reshape(1, wc).astype(jnp.float32),
        jnp.tile(shift2, wo).reshape(1, wc).astype(jnp.float32),
        sc.reshape(n * ho, wc).astype(jnp.float32))
    out = out2d.reshape(n, ho, wo, planes)
    return jnp.transpose(out, (0, 3, 1, 2))                            # NHWC -> NCHW


# ------------------------------ pure-JAX reference -------------------------------------
def _ref_forward(x_nchw, params, in_planes, planes, stride):
    w1, g1, b1, w2, g2, b2 = params

    def conv(xh, w_oihw, s):
        w_hwio = jnp.transpose(w_oihw, (2, 3, 1, 0))
        return jax.lax.conv_general_dilated(
            xh, w_hwio, window_strides=(s, s), padding=[(1, 1), (1, 1)],
            dimension_numbers=('NHWC', 'HWIO', 'NHWC'))

    def bn(y, g, b):
        mu = jnp.mean(y, axis=(0, 1, 2), keepdims=True)
        vv = jnp.mean((y - mu) ** 2, axis=(0, 1, 2), keepdims=True)
        return (y - mu) * jax.lax.rsqrt(vv + EPS) * g + b

    xh = jnp.transpose(x_nchw, (0, 2, 3, 1))
    o = jax.nn.relu(bn(conv(xh, w1, stride), g1, b1))
    o = bn(conv(o, w2, 1), g2, b2)
    if stride != 1 or in_planes != planes:
        p4 = planes // 4
        sc = jnp.pad(xh[:, ::stride, ::stride, :], ((0, 0), (0, 0), (0, 0), (p4, p4)))
    else:
        sc = xh
    o = jax.nn.relu(o + sc)
    return jnp.transpose(o, (0, 3, 1, 2))


# ------------------------------------ main ---------------------------------------------
if __name__ == "__main__":
    n, in_planes, h, w = 2, 4, 16, 16
    planes, stride = 8, 2                      # exercises the option-'A' lambda shortcut

    key = jax.random.PRNGKey(0)
    kx, kw1, kw2 = jax.random.split(key, 3)
    x = jax.random.normal(kx, (n, in_planes, h, w), jnp.float32)

    w1 = 0.1 * jax.random.normal(kw1, (planes, in_planes, 3, 3), jnp.float32)
    w2 = 0.1 * jax.random.normal(kw2, (planes, planes, 3, 3), jnp.float32)
    g1 = jnp.ones((planes,), jnp.float32)      # nn.BatchNorm2d default: gamma=1, beta=0
    b1 = jnp.zeros((planes,), jnp.float32)
    g2 = jnp.ones((planes,), jnp.float32)
    b2 = jnp.zeros((planes,), jnp.float32)
    params = (w1, g1, b1, w2, g2, b2)

    ref = jax.block_until_ready(_ref_forward(x, params, in_planes, planes, stride))

    # f32 MXU path: tight tolerance against the f32 XLA reference.
    fwd_f32 = jax.jit(functools.partial(basic_block_forward, in_planes=in_planes,
                                        planes=planes, stride=stride,
                                        compute_dtype=jnp.float32))
    out = jax.block_until_ready(fwd_f32(x, params))
    assert out.shape == (n, planes, h // stride, w // stride), out.shape
    np.testing.assert_allclose(np.asarray(out), np.asarray(ref), rtol=2e-3, atol=2e-3)

    # bf16 MXU path (v6e/v7x fast path): f32 accumulation/BN, looser tolerance.
    fwd_bf16 = jax.jit(functools.partial(basic_block_forward, in_planes=in_planes,
                                         planes=planes, stride=stride,
                                         compute_dtype=jnp.bfloat16))
    out_bf16 = jax.block_until_ready(fwd_bf16(x, params))
    np.testing.assert_allclose(np.asarray(out_bf16), np.asarray(ref), rtol=1e-1, atol=1e-1)

    print("KERNEL_OK")
</pallas_src>

<mosaic_0001>
module attributes {stable_mosaic.version = 11 : i64} {
  func.func @_conv3x3_kernel(%arg0: i32, %arg1: memref<4x1x9x9x4xf32, #tpu.memory_space<vmem>>, %arg2: memref<9x4x8xf32, #tpu.memory_space<vmem>>, %arg3: memref<1x4xf32, #tpu.memory_space<vmem>>, %arg4: memref<1x4xf32, #tpu.memory_space<vmem>>, %arg5: memref<1x8x8x8xf32, #tpu.memory_space<vmem>>, %arg6: memref<1x2x8xf32, #tpu.memory_space<vmem>>) attributes {dimension_semantics = [#tpu.dimension_semantics<parallel>], iteration_bounds = array<i64: 2>, scalar_prefetch = 0 : i64, scratch_operands = 0 : i64, tpu.core_type = #tpu.core_type<tc>, window_params = [{transform_indices = @transform_0, window_bounds = array<i64: 4, 1, 9, 9, 4>}, {pipeline_mode = #tpu.pipeline_mode<synchronous>, transform_indices = @transform_1, window_bounds = array<i64: 9, 4, 8>}, {pipeline_mode = #tpu.pipeline_mode<synchronous>, transform_indices = @transform_2, window_bounds = array<i64: 1, 4>}, {pipeline_mode = #tpu.pipeline_mode<synchronous>, transform_indices = @transform_3, window_bounds = array<i64: 1, 4>}, {transform_indices = @transform_4, window_bounds = array<i64: 1, 8, 8, 8>}, {transform_indices = @transform_5, window_bounds = array<i64: 1, 2, 8>}]} {
    %cst = arith.constant 0.000000e+00 : f32
    %0 = vector.broadcast %cst : f32 to vector<64x8xf32>
    %c0 = arith.constant 0 : index
    %c0_0 = arith.constant 0 : index
    %c0_1 = arith.constant 0 : index
    %c0_2 = arith.constant 0 : index
    %c0_3 = arith.constant 0 : index
    %1 = vector.load %arg1[%c0, %c0_0, %c0_1, %c0_2, %c0_3] : memref<4x1x9x9x4xf32, #tpu.memory_space<vmem>>, vector<1x1x8x8x4xf32>
    %2 = vector.shape_cast %1 : vector<1x1x8x8x4xf32> to vector<1x8x8x4xf32>
    %3 = vector.shape_cast %2 : vector<1x8x8x4xf32> to vector<64x4xf32>
    %c0_4 = arith.constant 0 : index
    %c0_5 = arith.constant 0 : index
    %c0_6 = arith.constant 0 : index
    %4 = vector.load %arg2[%c0_4, %c0_5, %c0_6] : memref<9x4x8xf32, #tpu.memory_space<vmem>>, vector<1x4x8xf32>
    %5 = vector.shape_cast %4 : vector<1x4x8xf32> to vector<4x8xf32>
    %cst_7 = arith.constant dense<0.000000e+00> : vector<64x8xf32>
    %6 = tpu.matmul %3, %5, %cst_7 {dimension_numbers = #tpu.dot_dimension_numbers<[1], [0], [0], [1], [0, 0, 1, 1], [], []>} : vector<64x4xf32>, vector<4x8xf32>, vector<64x8xf32> -> vector<64x8xf32>
    %7 = arith.addf %0, %6 : vector<64x8xf32>
    %c1 = arith.constant 1 : index
    %c0_8 = arith.constant 0 : index
    %c0_9 = arith.constant 0 : index
    %c0_10 = arith.constant 0 : index
    %c0_11 = arith.constant 0 : index
    %8 = vector.load %arg1[%c1, %c0_8, %c0_9, %c0_10, %c0_11] : memref<4x1x9x9x4xf32, #tpu.memory_space<vmem>>, vector<1x1x8x8x4xf32>
    %9 = vector.shape_cast %8 : vector<1x1x8x8x4xf32> to vector<1x8x8x4xf32>
    %10 = vector.shape_cast %9 : vector<1x8x8x4xf32> to vector<64x4xf32>
    %c1_12 = arith.constant 1 : index
    %c0_13 = arith.constant 0 : index
    %c0_14 = arith.constant 0 : index
    %11 = vector.load %arg2[%c1_12, %c0_13, %c0_14] : memref<9x4x8xf32, #tpu.memory_space<vmem>>, vector<1x4x8xf32>
    %12 = vector.shape_cast %11 : vector<1x4x8xf32> to vector<4x8xf32>
    %cst_15 = arith.constant dense<0.000000e+00> : vector<64x8xf32>
    %13 = tpu.matmul %10, %12, %cst_15 {dimension_numbers = #tpu.dot_dimension_numbers<[1], [0], [0], [1], [0, 0, 1, 1], [], []>} : vector<64x4xf32>, vector<4x8xf32>, vector<64x8xf32> -> vector<64x8xf32>
    %14 = arith.addf %7, %13 : vector<64x8xf32>
    %c0_16 = arith.constant 0 : index
    %c0_17 = arith.constant 0 : index
    %c0_18 = arith.constant 0 : index
    %c1_19 = arith.constant 1 : index
    %c0_20 = arith.constant 0 : index
    %15 = vector.load %arg1[%c0_16, %c0_17, %c0_18, %c1_19, %c0_20] : memref<4x1x9x9x4xf32, #tpu.memory_space<vmem>>, vector<1x1x8x8x4xf32>
    %16 = vector.shape_cast %15 : vector<1x1x8x8x4xf32> to vector<1x8x8x4xf32>
    %17 = vector.shape_cast %16 : vector<1x8x8x4xf32> to vector<64x4xf32>
    %c2 = arith.constant 2 : index
    %c0_21 = arith.constant 0 : index
    %c0_22 = arith.constant 0 : index
    %18 = vector.load %arg2[%c2, %c0_21, %c0_22] : memref<9x4x8xf32, #tpu.memory_space<vmem>>, vector<1x4x8xf32>
    %19 = vector.shape_cast %18 : vector<1x4x8xf32> to vector<4x8xf32>
    %cst_23 = arith.constant dense<0.000000e+00> : vector<64x8xf32>
    %20 = tpu.matmul %17, %19, %cst_23 {dimension_numbers = #tpu.dot_dimension_numbers<[1], [0], [0], [1], [0, 0, 1, 1], [], []>} : vector<64x4xf32>, vector<4x8xf32>, vector<64x8xf32> -> vector<64x8xf32>
    %21 = arith.addf %14, %20 : vector<64x8xf32>
    %c2_24 = arith.constant 2 : index
    %c0_25 = arith.constant 0 : index
    %c0_26 = arith.constant 0 : index
    %c0_27 = arith.constant 0 : index
    %c0_28 = arith.constant 0 : index
    %22 = vector.load %arg1[%c2_24, %c0_25, %c0_26, %c0_27, %c0_28] : memref<4x1x9x9x4xf32, #tpu.memory_space<vmem>>, vector<1x1x8x8x4xf32>
    %23 = vector.shape_cast %22 : vector<1x1x8x8x4xf32> to vector<1x8x8x4xf32>
    %24 = vector.shape_cast %23 : vector<1x8x8x4xf32> to vector<64x4xf32>
    %c3 = arith.constant 3 : index
    %c0_29 = arith.constant 0 : index
    %c0_30 = arith.constant 0 : index
    %25 = vector.load %arg2[%c3, %c0_29, %c0_30] : memref<9x4x8xf32, #tpu.memory_space<vmem>>, vector<1x4x8xf32>
    %26 = vector.shape_cast %25 : vector<1x4x8xf32> to vector<4x8xf32>
    %cst_31 = arith.constant dense<0.000000e+00> : vector<64x8xf32>
    %27 = tpu.matmul %24, %26, %cst_31 {dimension_numbers = #tpu.dot_dimension_numbers<[1], [0], [0], [1], [0, 0, 1, 1], [], []>} : vector<64x4xf32>, vector<4x8xf32>, vector<64x8xf32> -> vector<64x8xf32>
    %28 = arith.addf %21, %27 : vector<64x8xf32>
    %c3_32 = arith.constant 3 : index
    %c0_33 = arith.constant 0 : index
    %c0_34 = arith.constant 0 : index
    %c0_35 = arith.constant 0 : index
    %c0_36 = arith.constant 0 : index
    %29 = vector.load %arg1[%c3_32, %c0_33, %c0_34, %c0_35, %c0_36] : memref<4x1x9x9x4xf32, #tpu.memory_space<vmem>>, vector<1x1x8x8x4xf32>
    %30 = vector.shape_cast %29 : vector<1x1x8x8x4xf32> to vector<1x8x8x4xf32>
    %31 = vector.shape_cast %30 : vector<1x8x8x4xf32> to vector<64x4xf32>
    %c4 = arith.constant 4 : index
    %c0_37 = arith.constant 0 : index
    %c0_38 = arith.constant 0 : index
    %32 = vector.load %arg2[%c4, %c0_37, %c0_38] : memref<9x4x8xf32, #tpu.memory_space<vmem>>, vector<1x4x8xf32>
    %33 = vector.shape_cast %32 : vector<1x4x8xf32> to vector<4x8xf32>
    %cst_39 = arith.constant dense<0.000000e+00> : vector<64x8xf32>
    %34 = tpu.matmul %31, %33, %cst_39 {dimension_numbers = #tpu.dot_dimension_numbers<[1], [0], [0], [1], [0, 0, 1, 1], [], []>} : vector<64x4xf32>, vector<4x8xf32>, vector<64x8xf32> -> vector<64x8xf32>
    %35 = arith.addf %28, %34 : vector<64x8xf32>
    %c2_40 = arith.constant 2 : index
    %c0_41 = arith.constant 0 : index
    %c0_42 = arith.constant 0 : index
    %c1_43 = arith.constant 1 : index
    %c0_44 = arith.constant 0 : index
    %36 = vector.load %arg1[%c2_40, %c0_41, %c0_42, %c1_43, %c0_44] : memref<4x1x9x9x4xf32, #tpu.memory_space<vmem>>, vector<1x1x8x8x4xf32>
    %37 = vector.shape_cast %36 : vector<1x1x8x8x4xf32> to vector<1x8x8x4xf32>
    %38 = vector.shape_cast %37 : vector<1x8x8x4xf32> to vector<64x4xf32>
    %c5 = arith.constant 5 : index
    %c0_45 = arith.constant 0 : index
    %c0_46 = arith.constant 0 : index
    %39 = vector.load %arg2[%c5, %c0_45, %c0_46] : memref<9x4x8xf32, #tpu.memory_space<vmem>>, vector<1x4x8xf32>
    %40 = vector.shape_cast %39 : vector<1x4x8xf32> to vector<4x8xf32>
    %cst_47 = arith.constant dense<0.000000e+00> : vector<64x8xf32>
    %41 = tpu.matmul %38, %40, %cst_47 {dimension_numbers = #tpu.dot_dimension_numbers<[1], [0], [0], [1], [0, 0, 1, 1], [], []>} : vector<64x4xf32>, vector<4x8xf32>, vector<64x8xf32> -> vector<64x8xf32>
    %42 = arith.addf %35, %41 : vector<64x8xf32>
    %c0_48 = arith.constant 0 : index
    %c0_49 = arith.constant 0 : index
    %c1_50 = arith.constant 1 : index
    %c0_51 = arith.constant 0 : index
    %c0_52 = arith.constant 0 : index
    %43 = vector.load %arg1[%c0_48, %c0_49, %c1_50, %c0_51, %c0_52] : memref<4x1x9x9x4xf32, #tpu.memory_space<vmem>>, vector<1x1x8x8x4xf32>
    %44 = vector.shape_cast %43 : vector<1x1x8x8x4xf32> to vector<1x8x8x4xf32>
    %45 = vector.shape_cast %44 : vector<1x8x8x4xf32> to vector<64x4xf32>
    %c6 = arith.constant 6 : index
    %c0_53 = arith.constant 0 : index
    %c0_54 = arith.constant 0 : index
    %46 = vector.load %arg2[%c6, %c0_53, %c0_54] : memref<9x4x8xf32, #tpu.memory_space<vmem>>, vector<1x4x8xf32>
    %47 = vector.shape_cast %46 : vector<1x4x8xf32> to vector<4x8xf32>
    %cst_55 = arith.constant dense<0.000000e+00> : vector<64x8xf32>
    %48 = tpu.matmul %45, %47, %cst_55 {dimension_numbers = #tpu.dot_dimension_numbers<[1], [0], [0], [1], [0, 0, 1, 1], [], []>} : vector<64x4xf32>, vector<4x8xf32>, vector<64x8xf32> -> vector<64x8xf32>
    %49 = arith.addf %42, %48 : vector<64x8xf32>
    %c1_56 = arith.constant 1 : index
    %c0_57 = arith.constant 0 : index
    %c1_58 = arith.constant 1 : index
    %c0_59 = arith.constant 0 : index
    %c0_60 = arith.constant 0 : index
    %50 = vector.load %arg1[%c1_56, %c0_57, %c1_58, %c0_59, %c0_60] : memref<4x1x9x9x4xf32, #tpu.memory_space<vmem>>, vector<1x1x8x8x4xf32>
    %51 = vector.shape_cast %50 : vector<1x1x8x8x4xf32> to vector<1x8x8x4xf32>
    %52 = vector.shape_cast %51 : vector<1x8x8x4xf32> to vector<64x4xf32>
    %c7 = arith.constant 7 : index
    %c0_61 = arith.constant 0 : index
    %c0_62 = arith.constant 0 : index
    %53 = vector.load %arg2[%c7, %c0_61, %c0_62] : memref<9x4x8xf32, #tpu.memory_space<vmem>>, vector<1x4x8xf32>
    %54 = vector.shape_cast %53 : vector<1x4x8xf32> to vector<4x8xf32>
    %cst_63 = arith.constant dense<0.000000e+00> : vector<64x8xf32>
    %55 = tpu.matmul %52, %54, %cst_63 {dimension_numbers = #tpu.dot_dimension_numbers<[1], [0], [0], [1], [0, 0, 1, 1], [], []>} : vector<64x4xf32>, vector<4x8xf32>, vector<64x8xf32> -> vector<64x8xf32>
    %56 = arith.addf %49, %55 : vector<64x8xf32>
    %c0_64 = arith.constant 0 : index
    %c0_65 = arith.constant 0 : index
    %c1_66 = arith.constant 1 : index
    %c1_67 = arith.constant 1 : index
    %c0_68 = arith.constant 0 : index
    %57 = vector.load %arg1[%c0_64, %c0_65, %c1_66, %c1_67, %c0_68] : memref<4x1x9x9x4xf32, #tpu.memory_space<vmem>>, vector<1x1x8x8x4xf32>
    %58 = vector.shape_cast %57 : vector<1x1x8x8x4xf32> to vector<1x8x8x4xf32>
    %59 = vector.shape_cast %58 : vector<1x8x8x4xf32> to vector<64x4xf32>
    %c8 = arith.constant 8 : index
    %c0_69 = arith.constant 0 : index
    %c0_70 = arith.constant 0 : index
    %60 = vector.load %arg2[%c8, %c0_69, %c0_70] : memref<9x4x8xf32, #tpu.memory_space<vmem>>, vector<1x4x8xf32>
    %61 = vector.shape_cast %60 : vector<1x4x8xf32> to vector<4x8xf32>
    %cst_71 = arith.constant dense<0.000000e+00> : vector<64x8xf32>
    %62 = tpu.matmul %59, %61, %cst_71 {dimension_numbers = #tpu.dot_dimension_numbers<[1], [0], [0], [1], [0, 0, 1, 1], [], []>} : vector<64x4xf32>, vector<4x8xf32>, vector<64x8xf32> -> vector<64x8xf32>
    %63 = arith.addf %56, %62 : vector<64x8xf32>
    %64 = vector.shape_cast %63 : vector<64x8xf32> to vector<1x8x8x8xf32>
    %c0_72 = arith.constant 0 : index
    %c0_73 = arith.constant 0 : index
    %c0_74 = arith.constant 0 : index
    %c0_75 = arith.constant 0 : index
    %65 = vector.load %arg5[%c0_72, %c0_73, %c0_74, %c0_75] : memref<1x8x8x8xf32, #tpu.memory_space<vmem>>, vector<1x8x8x8xf32>
    tpu.vector_store %arg5[%c0_72, %c0_73, %c0_74, %c0_75], %64 {strides = array<i32>} : memref<1x8x8x8xf32, #tpu.memory_space<vmem>>, vector<1x8x8x8xf32>,
    %cst_76 = arith.constant dense<0.000000e+00> : vector<8xf32>
    %66 = vector.multi_reduction <add>, %63, %cst_76 [0] : vector<64x8xf32> to vector<8xf32>
    %67 = vector.shape_cast %66 : vector<8xf32> to vector<1x8xf32>
    %c0_77 = arith.constant 0 : index
    %c0_78 = arith.constant 0 : index
    %c0_79 = arith.constant 0 : index
    %68 = vector.load %arg6[%c0_77, %c0_78, %c0_79] : memref<1x2x8xf32, #tpu.memory_space<vmem>>, vector<1x1x8xf32>
    %69 = vector.shape_cast %68 : vector<1x1x8xf32> to vector<1x8xf32>
    %70 = vector.shape_cast %67 : vector<1x8xf32> to vector<1x1x8xf32>
    tpu.vector_store %arg6[%c0_77, %c0_78, %c0_79], %70 {strides = array<i32>} : memref<1x2x8xf32, #tpu.memory_space<vmem>>, vector<1x1x8xf32>,
    %71 = arith.mulf %63, %63 : vector<64x8xf32>
    %cst_80 = arith.constant dense<0.000000e+00> : vector<8xf32>
    %72 = vector.multi_reduction <add>, %71, %cst_80 [0] : vector<64x8xf32> to vector<8xf32>
    %73 = vector.shape_cast %72 : vector<8xf32> to vector<1x8xf32>
    %c0_81 = arith.constant 0 : index
    %c1_82 = arith.constant 1 : index
    %c0_83 = arith.constant 0 : index
    %74 = vector.load %arg6[%c0_81, %c1_82, %c0_83] : memref<1x2x8xf32, #tpu.memory_space<vmem>>, vector<1x1x8xf32>
    %75 = vector.shape_cast %74 : vector<1x1x8xf32> to vector<1x8xf32>
    %76 = vector.shape_cast %73 : vector<1x8xf32> to vector<1x1x8xf32>
    tpu.vector_store %arg6[%c0_81, %c1_82, %c0_83], %76 {strides = array<i32>} : memref<1x2x8xf32, #tpu.memory_space<vmem>>, vector<1x1x8xf32>,
    return
  }
  func.func @transform_0(%arg0: i32) -> (i32, i32, i32, i32, i32) {
    %c0_i32 = arith.constant 0 : i32
    %c0_i32_0 = arith.constant 0 : i32
    %c0_i32_1 = arith.constant 0 : i32
    %c0_i32_2 = arith.constant 0 : i32
    %c0_i32_3 = arith.constant 0 : i32
    return %c0_i32, %arg0, %c0_i32_0, %c0_i32_1, %c0_i32_2 : i32, i32, i32, i32, i32
  }
  func.func @transform_1(%arg0: i32) -> (i32, i32, i32) {
    %c0_i32 = arith.constant 0 : i32
    %c0_i32_0 = arith.constant 0 : i32
    %c0_i32_1 = arith.constant 0 : i32
    %c0_i32_2 = arith.constant 0 : i32
    return %c0_i32, %c0_i32_0, %c0_i32_1 : i32, i32, i32
  }
  func.func @transform_2(%arg0: i32) -> (i32, i32) {
    %c0_i32 = arith.constant 0 : i32
    %c0_i32_0 = arith.constant 0 : i32
    %c0_i32_1 = arith.constant 0 : i32
    return %c0_i32, %c0_i32_0 : i32, i32
  }
  func.func @transform_3(%arg0: i32) -> (i32, i32) {
    %c0_i32 = arith.constant 0 : i32
    %c0_i32_0 = arith.constant 0 : i32
    %c0_i32_1 = arith.constant 0 : i32
    return %c0_i32, %c0_i32_0 : i32, i32
  }
  func.func @transform_4(%arg0: i32) -> (i32, i32, i32, i32) {
    %c0_i32 = arith.constant 0 : i32
    %c0_i32_0 = arith.constant 0 : i32
    %c0_i32_1 = arith.constant 0 : i32
    %c0_i32_2 = arith.constant 0 : i32
    return %arg0, %c0_i32, %c0_i32_0, %c0_i32_1 : i32, i32, i32, i32
  }
  func.func @transform_5(%arg0: i32) -> (i32, i32, i32) {
    %c0_i32 = arith.constant 0 : i32
    %c0_i32_0 = arith.constant 0 : i32
    %c0_i32_1 = arith.constant 0 : i32
    return %arg0, %c0_i32, %c0_i32_0 : i32, i32, i32
  }
}

module attributes {stable_mosaic.version = 11 : i64} {
  func.func @_conv3x3_kernel(%arg0: i32, %arg1: memref<1x1x10x10x8xf32, #tpu.memory_space<vmem>>, %arg2: memref<9x8x8xf32, #tpu.memory_space<vmem>>, %arg3: memref<1x8xf32, #tpu.memory_space<vmem>>, %arg4: memref<1x8xf32, #tpu.memory_space<vmem>>, %arg5: memref<1x8x8x8xf32, #tpu.memory_space<vmem>>, %arg6: memref<1x2x8xf32, #tpu.memory_space<vmem>>) attributes {dimension_semantics = [#tpu.dimension_semantics<parallel>], iteration_bounds = array<i64: 2>, scalar_prefetch = 0 : i64, scratch_operands = 0 : i64, tpu.core_type = #tpu.core_type<tc>, window_params = [{transform_indices = @transform_0, window_bounds = array<i64: 1, 1, 10, 10, 8>}, {pipeline_mode = #tpu.pipeline_mode<synchronous>, transform_indices = @transform_1, window_bounds = array<i64: 9, 8, 8>}, {pipeline_mode = #tpu.pipeline_mode<synchronous>, transform_indices = @transform_2, window_bounds = array<i64: 1, 8>}, {pipeline_mode = #tpu.pipeline_mode<synchronous>, transform_indices = @transform_3, window_bounds = array<i64: 1, 8>}, {transform_indices = @transform_4, window_bounds = array<i64: 1, 8, 8, 8>}, {transform_indices = @transform_5, window_bounds = array<i64: 1, 2, 8>}]} {
    %c0 = arith.constant 0 : index
    %c0_0 = arith.constant 0 : index
    %c0_1 = arith.constant 0 : index
    %c0_2 = arith.constant 0 : index
    %c0_3 = arith.constant 0 : index
    %0 = vector.load %arg1[%c0, %c0_0, %c0_1, %c0_2, %c0_3] : memref<1x1x10x10x8xf32, #tpu.memory_space<vmem>>, vector<1x1x10x10x8xf32>
    %1 = vector.shape_cast %0 : vector<1x1x10x10x8xf32> to vector<1x10x10x8xf32>
    %c0_4 = arith.constant 0 : index
    %c0_5 = arith.constant 0 : index
    %2 = vector.load %arg3[%c0_4, %c0_5] : memref<1x8xf32, #tpu.memory_space<vmem>>, vector<1x8xf32>
    %3 = vector.shape_cast %2 : vector<1x8xf32> to vector<1x1x1x8xf32>
    %4 = vector.broadcast %3 : vector<1x1x1x8xf32> to vector<1x10x10x8xf32>
    %5 = arith.mulf %1, %4 : vector<1x10x10x8xf32>
    %c0_6 = arith.constant 0 : index
    %c0_7 = arith.constant 0 : index
    %6 = vector.load %arg4[%c0_6, %c0_7] : memref<1x8xf32, #tpu.memory_space<vmem>>, vector<1x8xf32>
    %7 = vector.shape_cast %6 : vector<1x8xf32> to vector<1x1x1x8xf32>
    %8 = vector.broadcast %7 : vector<1x1x1x8xf32> to vector<1x10x10x8xf32>
    %9 = arith.addf %5, %8 : vector<1x10x10x8xf32>
    %cst = arith.constant 0.000000e+00 : f32
    %10 = vector.broadcast %cst : f32 to vector<1x10x10x8xf32>
    %11 = arith.maximumf %9, %10 : vector<1x10x10x8xf32>
    %12 = tpu.iota {dimensions = array<i32: 0>} : vector<10x10xi32>
    %13 = tpu.iota {dimensions = array<i32: 1>} : vector<10x10xi32>
    %c1_i32 = arith.constant 1 : i32
    %14 = vector.broadcast %c1_i32 : i32 to vector<10x10xi32>
    %15 = arith.cmpi sge, %12, %14 : vector<10x10xi32>
    %c9_i32 = arith.constant 9 : i32
    %16 = vector.broadcast %c9_i32 : i32 to vector<10x10xi32>
    %17 = arith.cmpi slt, %12, %16 : vector<10x10xi32>
    %18 = arith.andi %15, %17 : vector<10x10xi1>
    %c1_i32_8 = arith.constant 1 : i32
    %19 = vector.broadcast %c1_i32_8 : i32 to vector<10x10xi32>
    %20 = arith.cmpi sge, %13, %19 : vector<10x10xi32>
    %21 = arith.andi %18, %20 : vector<10x10xi1>
    %c9_i32_9 = arith.constant 9 : i32
    %22 = vector.broadcast %c9_i32_9 : i32 to vector<10x10xi32>
    %23 = arith.cmpi slt, %13, %22 : vector<10x10xi32>
    %24 = arith.andi %21, %23 : vector<10x10xi1>
    %25 = arith.extui %24 : vector<10x10xi1> to vector<10x10xi32>
    %26 = arith.sitofp %25 : vector<10x10xi32> to vector<10x10xf32>
    %27 = vector.shape_cast %26 : vector<10x10xf32> to vector<10x10x1xf32>
    %28 = vector.shape_cast %27 : vector<10x10x1xf32> to vector<1x10x10x1xf32>
    %29 = vector.broadcast %28 : vector<1x10x10x1xf32> to vector<1x10x10x8xf32>
    %30 = arith.mulf %11, %29 : vector<1x10x10x8xf32>
    %cst_10 = arith.constant 0.000000e+00 : f32
    %31 = vector.broadcast %cst_10 : f32 to vector<64x8xf32>
    %32 = vector.extract_strided_slice %30 {offsets = [0, 0, 0, 0], sizes = [1, 8, 8, 8], strides = [1, 1, 1, 1]} : vector<1x10x10x8xf32> to vector<1x8x8x8xf32>
    %33 = vector.shape_cast %32 : vector<1x8x8x8xf32> to vector<64x8xf32>
    %c0_11 = arith.constant 0 : index
    %c0_12 = arith.constant 0 : index
    %c0_13 = arith.constant 0 : index
    %34 = vector.load %arg2[%c0_11, %c0_12, %c0_13] : memref<9x8x8xf32, #tpu.memory_space<vmem>>, vector<1x8x8xf32>
    %35 = vector.shape_cast %34 : vector<1x8x8xf32> to vector<8x8xf32>
    %cst_14 = arith.constant dense<0.000000e+00> : vector<64x8xf32>
    %36 = tpu.matmul %33, %35, %cst_14 {dimension_numbers = #tpu.dot_dimension_numbers<[1], [0], [0], [1], [0, 0, 1, 1], [], []>} : vector<64x8xf32>, vector<8x8xf32>, vector<64x8xf32> -> vector<64x8xf32>
    %37 = arith.addf %31, %36 : vector<64x8xf32>
    %38 = vector.extract_strided_slice %30 {offsets = [0, 0, 1, 0], sizes = [1, 8, 8, 8], strides = [1, 1, 1, 1]} : vector<1x10x10x8xf32> to vector<1x8x8x8xf32>
    %39 = vector.shape_cast %38 : vector<1x8x8x8xf32> to vector<64x8xf32>
    %c1 = arith.constant 1 : index
    %c0_15 = arith.constant 0 : index
    %c0_16 = arith.constant 0 : index
    %40 = vector.load %arg2[%c1, %c0_15, %c0_16] : memref<9x8x8xf32, #tpu.memory_space<vmem>>, vector<1x8x8xf32>
    %41 = vector.shape_cast %40 : vector<1x8x8xf32> to vector<8x8xf32>
    %cst_17 = arith.constant dense<0.000000e+00> : vector<64x8xf32>
    %42 = tpu.matmul %39, %41, %cst_17 {dimension_numbers = #tpu.dot_dimension_numbers<[1], [0], [0], [1], [0, 0, 1, 1], [], []>} : vector<64x8xf32>, vector<8x8xf32>, vector<64x8xf32> -> vector<64x8xf32>
    %43 = arith.addf %37, %42 : vector<64x8xf32>
    %44 = vector.extract_strided_slice %30 {offsets = [0, 0, 2, 0], sizes = [1, 8, 8, 8], strides = [1, 1, 1, 1]} : vector<1x10x10x8xf32> to vector<1x8x8x8xf32>
    %45 = vector.shape_cast %44 : vector<1x8x8x8xf32> to vector<64x8xf32>
    %c2 = arith.constant 2 : index
    %c0_18 = arith.constant 0 : index
    %c0_19 = arith.constant 0 : index
    %46 = vector.load %arg2[%c2, %c0_18, %c0_19] : memref<9x8x8xf32, #tpu.memory_space<vmem>>, vector<1x8x8xf32>
    %47 = vector.shape_cast %46 : vector<1x8x8xf32> to vector<8x8xf32>
    %cst_20 = arith.constant dense<0.000000e+00> : vector<64x8xf32>
    %48 = tpu.matmul %45, %47, %cst_20 {dimension_numbers = #tpu.dot_dimension_numbers<[1], [0], [0], [1], [0, 0, 1, 1], [], []>} : vector<64x8xf32>, vector<8x8xf32>, vector<64x8xf32> -> vector<64x8xf32>
    %49 = arith.addf %43, %48 : vector<64x8xf32>
    %50 = vector.extract_strided_slice %30 {offsets = [0, 1, 0, 0], sizes = [1, 8, 8, 8], strides = [1, 1, 1, 1]} : vector<1x10x10x8xf32> to vector<1x8x8x8xf32>
    %51 = vector.shape_cast %50 : vector<1x8x8x8xf32> to vector<64x8xf32>
    %c3 = arith.constant 3 : index
    %c0_21 = arith.constant 0 : index
    %c0_22 = arith.constant 0 : index
    %52 = vector.load %arg2[%c3, %c0_21, %c0_22] : memref<9x8x8xf32, #tpu.memory_space<vmem>>, vector<1x8x8xf32>
    %53 = vector.shape_cast %52 : vector<1x8x8xf32> to vector<8x8xf32>
    %cst_23 = arith.constant dense<0.000000e+00> : vector<64x8xf32>
    %54 = tpu.matmul %51, %53, %cst_23 {dimension_numbers = #tpu.dot_dimension_numbers<[1], [0], [0], [1], [0, 0, 1, 1], [], []>} : vector<64x8xf32>, vector<8x8xf32>, vector<64x8xf32> -> vector<64x8xf32>
    %55 = arith.addf %49, %54 : vector<64x8xf32>
    %56 = vector.extract_strided_slice %30 {offsets = [0, 1, 1, 0], sizes = [1, 8, 8, 8], strides = [1, 1, 1, 1]} : vector<1x10x10x8xf32> to vector<1x8x8x8xf32>
    %57 = vector.shape_cast %56 : vector<1x8x8x8xf32> to vector<64x8xf32>
    %c4 = arith.constant 4 : index
    %c0_24 = arith.constant 0 : index
    %c0_25 = arith.constant 0 : index
    %58 = vector.load %arg2[%c4, %c0_24, %c0_25] : memref<9x8x8xf32, #tpu.memory_space<vmem>>, vector<1x8x8xf32>
    %59 = vector.shape_cast %58 : vector<1x8x8xf32> to vector<8x8xf32>
    %cst_26 = arith.constant dense<0.000000e+00> : vector<64x8xf32>
    %60 = tpu.matmul %57, %59, %cst_26 {dimension_numbers = #tpu.dot_dimension_numbers<[1], [0], [0], [1], [0, 0, 1, 1], [], []>} : vector<64x8xf32>, vector<8x8xf32>, vector<64x8xf32> -> vector<64x8xf32>
    %61 = arith.addf %55, %60 : vector<64x8xf32>
    %62 = vector.extract_strided_slice %30 {offsets = [0, 1, 2, 0], sizes = [1, 8, 8, 8], strides = [1, 1, 1, 1]} : vector<1x10x10x8xf32> to vector<1x8x8x8xf32>
    %63 = vector.shape_cast %62 : vector<1x8x8x8xf32> to vector<64x8xf32>
    %c5 = arith.constant 5 : index
    %c0_27 = arith.constant 0 : index
    %c0_28 = arith.constant 0 : index
    %64 = vector.load %arg2[%c5, %c0_27, %c0_28] : memref<9x8x8xf32, #tpu.memory_space<vmem>>, vector<1x8x8xf32>
    %65 = vector.shape_cast %64 : vector<1x8x8xf32> to vector<8x8xf32>
    %cst_29 = arith.constant dense<0.000000e+00> : vector<64x8xf32>
    %66 = tpu.matmul %63, %65, %cst_29 {dimension_numbers = #tpu.dot_dimension_numbers<[1], [0], [0], [1], [0, 0, 1, 1], [], []>} : vector<64x8xf32>, vector<8x8xf32>, vector<64x8xf32> -> vector<64x8xf32>
    %67 = arith.addf %61, %66 : vector<64x8xf32>
    %68 = vector.extract_strided_slice %30 {offsets = [0, 2, 0, 0], sizes = [1, 8, 8, 8], strides = [1, 1, 1, 1]} : vector<1x10x10x8xf32> to vector<1x8x8x8xf32>
    %69 = vector.shape_cast %68 : vector<1x8x8x8xf32> to vector<64x8xf32>
    %c6 = arith.constant 6 : index
    %c0_30 = arith.constant 0 : index
    %c0_31 = arith.constant 0 : index
    %70 = vector.load %arg2[%c6, %c0_30, %c0_31] : memref<9x8x8xf32, #tpu.memory_space<vmem>>, vector<1x8x8xf32>
    %71 = vector.shape_cast %70 : vector<1x8x8xf32> to vector<8x8xf32>
    %cst_32 = arith.constant dense<0.000000e+00> : vector<64x8xf32>
    %72 = tpu.matmul %69, %71, %cst_32 {dimension_numbers = #tpu.dot_dimension_numbers<[1], [0], [0], [1], [0, 0, 1, 1], [], []>} : vector<64x8xf32>, vector<8x8xf32>, vector<64x8xf32> -> vector<64x8xf32>
    %73 = arith.addf %67, %72 : vector<64x8xf32>
    %74 = vector.extract_strided_slice %30 {offsets = [0, 2, 1, 0], sizes = [1, 8, 8, 8], strides = [1, 1, 1, 1]} : vector<1x10x10x8xf32> to vector<1x8x8x8xf32>
    %75 = vector.shape_cast %74 : vector<1x8x8x8xf32> to vector<64x8xf32>
    %c7 = arith.constant 7 : index
    %c0_33 = arith.constant 0 : index
    %c0_34 = arith.constant 0 : index
    %76 = vector.load %arg2[%c7, %c0_33, %c0_34] : memref<9x8x8xf32, #tpu.memory_space<vmem>>, vector<1x8x8xf32>
    %77 = vector.shape_cast %76 : vector<1x8x8xf32> to vector<8x8xf32>
    %cst_35 = arith.constant dense<0.000000e+00> : vector<64x8xf32>
    %78 = tpu.matmul %75, %77, %cst_35 {dimension_numbers = #tpu.dot_dimension_numbers<[1], [0], [0], [1], [0, 0, 1, 1], [], []>} : vector<64x8xf32>, vector<8x8xf32>, vector<64x8xf32> -> vector<64x8xf32>
    %79 = arith.addf %73, %78 : vector<64x8xf32>
    %80 = vector.extract_strided_slice %30 {offsets = [0, 2, 2, 0], sizes = [1, 8, 8, 8], strides = [1, 1, 1, 1]} : vector<1x10x10x8xf32> to vector<1x8x8x8xf32>
    %81 = vector.shape_cast %80 : vector<1x8x8x8xf32> to vector<64x8xf32>
    %c8 = arith.constant 8 : index
    %c0_36 = arith.constant 0 : index
    %c0_37 = arith.constant 0 : index
    %82 = vector.load %arg2[%c8, %c0_36, %c0_37] : memref<9x8x8xf32, #tpu.memory_space<vmem>>, vector<1x8x8xf32>
    %83 = vector.shape_cast %82 : vector<1x8x8xf32> to vector<8x8xf32>
    %cst_38 = arith.constant dense<0.000000e+00> : vector<64x8xf32>
    %84 = tpu.matmul %81, %83, %cst_38 {dimension_numbers = #tpu.dot_dimension_numbers<[1], [0], [0], [1], [0, 0, 1, 1], [], []>} : vector<64x8xf32>, vector<8x8xf32>, vector<64x8xf32> -> vector<64x8xf32>
    %85 = arith.addf %79, %84 : vector<64x8xf32>
    %86 = vector.shape_cast %85 : vector<64x8xf32> to vector<1x8x8x8xf32>
    %c0_39 = arith.constant 0 : index
    %c0_40 = arith.constant 0 : index
    %c0_41 = arith.constant 0 : index
    %c0_42 = arith.constant 0 : index
    %87 = vector.load %arg5[%c0_39, %c0_40, %c0_41, %c0_42] : memref<1x8x8x8xf32, #tpu.memory_space<vmem>>, vector<1x8x8x8xf32>
    tpu.vector_store %arg5[%c0_39, %c0_40, %c0_41, %c0_42], %86 {strides = array<i32>} : memref<1x8x8x8xf32, #tpu.memory_space<vmem>>, vector<1x8x8x8xf32>,
    %cst_43 = arith.constant dense<0.000000e+00> : vector<8xf32>
    %88 = vector.multi_reduction <add>, %85, %cst_43 [0] : vector<64x8xf32> to vector<8xf32>
    %89 = vector.shape_cast %88 : vector<8xf32> to vector<1x8xf32>
    %c0_44 = arith.constant 0 : index
    %c0_45 = arith.constant 0 : index
    %c0_46 = arith.constant 0 : index
    %90 = vector.load %arg6[%c0_44, %c0_45, %c0_46] : memref<1x2x8xf32, #tpu.memory_space<vmem>>, vector<1x1x8xf32>
    %91 = vector.shape_cast %90 : vector<1x1x8xf32> to vector<1x8xf32>
    %92 = vector.shape_cast %89 : vector<1x8xf32> to vector<1x1x8xf32>
    tpu.vector_store %arg6[%c0_44, %c0_45, %c0_46], %92 {strides = array<i32>} : memref<1x2x8xf32, #tpu.memory_space<vmem>>, vector<1x1x8xf32>,
    %93 = arith.mulf %85, %85 : vector<64x8xf32>
    %cst_47 = arith.constant dense<0.000000e+00> : vector<8xf32>
    %94 = vector.multi_reduction <add>, %93, %cst_47 [0] : vector<64x8xf32> to vector<8xf32>
    %95 = vector.shape_cast %94 : vector<8xf32> to vector<1x8xf32>
    %c0_48 = arith.constant 0 : index
    %c1_49 = arith.constant 1 : index
    %c0_50 = arith.constant 0 : index
    %96 = vector.load %arg6[%c0_48, %c1_49, %c0_50] : memref<1x2x8xf32, #tpu.memory_space<vmem>>, vector<1x1x8xf32>
    %97 = vector.shape_cast %96 : vector<1x1x8xf32> to vector<1x8xf32>
    %98 = vector.shape_cast %95 : vector<1x8xf32> to vector<1x1x8xf32>
    tpu.vector_store %arg6[%c0_48, %c1_49, %c0_50], %98 {strides = array<i32>} : memref<1x2x8xf32, #tpu.memory_space<vmem>>, vector<1x1x8xf32>,
    return
  }
  func.func @transform_0(%arg0: i32) -> (i32, i32, i32, i32, i32) {
    %c0_i32 = arith.constant 0 : i32
    %c0_i32_0 = arith.constant 0 : i32
    %c0_i32_1 = arith.constant 0 : i32
    %c0_i32_2 = arith.constant 0 : i32
    %c0_i32_3 = arith.constant 0 : i32
    return %c0_i32, %arg0, %c0_i32_0, %c0_i32_1, %c0_i32_2 : i32, i32, i32, i32, i32
  }
  func.func @transform_1(%arg0: i32) -> (i32, i32, i32) {
    %c0_i32 = arith.constant 0 : i32
    %c0_i32_0 = arith.constant 0 : i32
    %c0_i32_1 = arith.constant 0 : i32
    %c0_i32_2 = arith.constant 0 : i32
    return %c0_i32, %c0_i32_0, %c0_i32_1 : i32, i32, i32
  }
  func.func @transform_2(%arg0: i32) -> (i32, i32) {
    %c0_i32 = arith.constant 0 : i32
    %c0_i32_0 = arith.constant 0 : i32
    %c0_i32_1 = arith.constant 0 : i32
    return %c0_i32, %c0_i32_0 : i32, i32
  }
  func.func @transform_3(%arg0: i32) -> (i32, i32) {
    %c0_i32 = arith.constant 0 : i32
    %c0_i32_0 = arith.constant 0 : i32
    %c0_i32_1 = arith.constant 0 : i32
    return %c0_i32, %c0_i32_0 : i32, i32
  }
  func.func @transform_4(%arg0: i32) -> (i32, i32, i32, i32) {
    %c0_i32 = arith.constant 0 : i32
    %c0_i32_0 = arith.constant 0 : i32
    %c0_i32_1 = arith.constant 0 : i32
    %c0_i32_2 = arith.constant 0 : i32
    return %arg0, %c0_i32, %c0_i32_0, %c0_i32_1 : i32, i32, i32, i32
  }
  func.func @transform_5(%arg0: i32) -> (i32, i32, i32) {
    %c0_i32 = arith.constant 0 : i32
    %c0_i32_0 = arith.constant 0 : i32
    %c0_i32_1 = arith.constant 0 : i32
    return %arg0, %c0_i32, %c0_i32_0 : i32, i32, i32
  }
}

module attributes {stable_mosaic.version = 11 : i64} {
  func.func @_bn_add_relu_kernel(%arg0: i32, %arg1: memref<8x64xf32, #tpu.memory_space<vmem>>, %arg2: memref<1x64xf32, #tpu.memory_space<vmem>>, %arg3: memref<1x64xf32, #tpu.memory_space<vmem>>, %arg4: memref<8x64xf32, #tpu.memory_space<vmem>>, %arg5: memref<8x64xf32, #tpu.memory_space<vmem>>) attributes {dimension_semantics = [#tpu.dimension_semantics<parallel>], iteration_bounds = array<i64: 2>, scalar_prefetch = 0 : i64, scratch_operands = 0 : i64, tpu.core_type = #tpu.core_type<tc>, window_params = [{transform_indices = @transform_0, window_bounds = array<i64: 8, 64>}, {pipeline_mode = #tpu.pipeline_mode<synchronous>, transform_indices = @transform_1, window_bounds = array<i64: 1, 64>}, {pipeline_mode = #tpu.pipeline_mode<synchronous>, transform_indices = @transform_2, window_bounds = array<i64: 1, 64>}, {transform_indices = @transform_3, window_bounds = array<i64: 8, 64>}, {transform_indices = @transform_4, window_bounds = array<i64: 8, 64>}]} {
    %c0 = arith.constant 0 : index
    %c0_0 = arith.constant 0 : index
    %0 = vector.load %arg1[%c0, %c0_0] : memref<8x64xf32, #tpu.memory_space<vmem>>, vector<8x64xf32>
    %c0_1 = arith.constant 0 : index
    %c0_2 = arith.constant 0 : index
    %1 = vector.load %arg2[%c0_1, %c0_2] : memref<1x64xf32, #tpu.memory_space<vmem>>, vector<1x64xf32>
    %2 = vector.broadcast %1 : vector<1x64xf32> to vector<8x64xf32>
    %3 = arith.mulf %0, %2 : vector<8x64xf32>
    %c0_3 = arith.constant 0 : index
    %c0_4 = arith.constant 0 : index
    %4 = vector.load %arg3[%c0_3, %c0_4] : memref<1x64xf32, #tpu.memory_space<vmem>>, vector<1x64xf32>
    %5 = vector.broadcast %4 : vector<1x64xf32> to vector<8x64xf32>
    %6 = arith.addf %3, %5 : vector<8x64xf32>
    %c0_5 = arith.constant 0 : index
    %c0_6 = arith.constant 0 : index
    %7 = vector.load %arg4[%c0_5, %c0_6] : memref<8x64xf32, #tpu.memory_space<vmem>>, vector<8x64xf32>
    %8 = arith.addf %6, %7 : vector<8x64xf32>
    %cst = arith.constant 0.000000e+00 : f32
    %9 = vector.broadcast %cst : f32 to vector<8x64xf32>
    %10 = arith.maximumf %8, %9 : vector<8x64xf32>
    %c0_7 = arith.constant 0 : index
    %c0_8 = arith.constant 0 : index
    %11 = vector.load %arg5[%c0_7, %c0_8] : memref<8x64xf32, #tpu.memory_space<vmem>>, vector<8x64xf32>
    tpu.vector_store %arg5[%c0_7, %c0_8], %10 {strides = array<i32>} : memref<8x64xf32, #tpu.memory_space<vmem>>, vector<8x64xf32>,
    return
  }
  func.func @transform_0(%arg0: i32) -> (i32, i32) {
    %c0_i32 = arith.constant 0 : i32
    %c0_i32_0 = arith.constant 0 : i32
    return %arg0, %c0_i32 : i32, i32
  }
  func.func @transform_1(%arg0: i32) -> (i32, i32) {
    %c0_i32 = arith.constant 0 : i32
    %c0_i32_0 = arith.constant 0 : i32
    %c0_i32_1 = arith.constant 0 : i32
    return %c0_i32, %c0_i32_0 : i32, i32
  }
  func.func @transform_2(%arg0: i32) -> (i32, i32) {
    %c0_i32 = arith.constant 0 : i32
    %c0_i32_0 = arith.constant 0 : i32
    %c0_i32_1 = arith.constant 0 : i32
    return %c0_i32, %c0_i32_0 : i32, i32
  }
  func.func @transform_3(%arg0: i32) -> (i32, i32) {
    %c0_i32 = arith.constant 0 : i32
    %c0_i32_0 = arith.constant 0 : i32
    return %arg0, %c0_i32 : i32, i32
  }
  func.func @transform_4(%arg0: i32) -> (i32, i32) {
    %c0_i32 = arith.constant 0 : i32
    %c0_i32_0 = arith.constant 0 : i32
    return %arg0, %c0_i32 : i32, i32
  }
}

</mosaic_0001>

<llo_original>
// kernel: tile.18
$region0: #{tile.18}
  #allocation0 [shape = 's32[1]{0}', space=sflag, size = 0x4, scoped, tag = 'scoped memory for tile.18']
  %s0 = inlined_call_operand.vmem [shape: f32[8], index: 0, kind: input, shape index: {}]
  %s1 = inlined_call_operand.vmem [shape: f32[8,8], index: 1, kind: output, shape index: {}]
  // Predicated region
  $region2: #{tile.18} parent=0 // pred_check
    _
  $region3: #{tile.18} parent=0 // pred_check_branch
    %3 = sbr.rel (0) target = $region5
  $region4: #{tile.18} parent=0 // pred_region
    _
  $region5: #{tile.18} parent=0 // pred_fallthru
    _
  %v4 = vld [vmem:[%s0] ss:$0 sm:$0xff]
  %5 = vst [vmem:[%s1] sm:$0xff] %v4

// kernel: tile.19
$region0: #{tile.19}
  %s0 = inlined_call_operand.vmem [shape: f32[8,8], index: 0, kind: input, shape index: {}]
  %s1 = inlined_call_operand.vmem [shape: f32[1,64], index: 1, kind: output, shape index: {}]
  $region1: #{tile.19} parent=0
    #allocation0 [shape = 'u8[4096]{0}', space=vmem, size = 0x1000, scoped, tag = 'scoped mem for output reshape']
    %v2 = vld [vmem:[%s0] sm:$0x1]
    %vm3 = vcmask 64512
    %4 = vst.msk [vmem:[#allocation0] sm:$0x1] %vm3, %v2
    %s5 = scalar_lea.vmem %s0, 7
    %v6 = vld [vmem:[%s5] sm:$0x1]
    %7 = vrot.lane.b32.xlu0 %v6, 56
    %v8 = vpop.permute.xlu0 %7
    %vm9 = vcmask 523712
    %10 = vst.msk [vmem:[#allocation0] sm:$0x1] %vm9, %v8
    %s11 = scalar_lea.vmem %s0, 6
    %v12 = vld [vmem:[%s11] sm:$0x1]
    %13 = vrot.lane.b32.xlu0 %v12, 48
    %v14 = vpop.permute.xlu0 %13
    %vm15 = vcmask 458112
    %16 = vst.msk [vmem:[#allocation0] sm:$0x1] %vm15, %v14
    %s17 = scalar_lea.vmem %s0, 5
    %v18 = vld [vmem:[%s17] sm:$0x1]
    %19 = vrot.lane.b32.xlu0 %v18, 40
    %v20 = vpop.permute.xlu0 %19
    %vm21 = vcmask 392512
    %22 = vst.msk [vmem:[#allocation0] sm:$0x1] %vm21, %v20
    %s23 = scalar_lea.vmem %s0, 4
    %v24 = vld [vmem:[%s23] sm:$0x1]
    %25 = vrot.lane.b32.xlu0 %v24, 32
    %v26 = vpop.permute.xlu0 %25
    %vm27 = vcmask 326912
    %28 = vst.msk [vmem:[#allocation0] sm:$0x1] %vm27, %v26
    %s29 = scalar_lea.vmem %s0, 3
    %v30 = vld [vmem:[%s29] sm:$0x1]
    %31 = vrot.lane.b32.xlu0 %v30, 24
    %v32 = vpop.permute.xlu0 %31
    %vm33 = vcmask 261312
    %34 = vst.msk [vmem:[#allocation0] sm:$0x1] %vm33, %v32
    %s35 = scalar_lea.vmem %s0, 2
    %v36 = vld [vmem:[%s35] sm:$0x1]
    %37 = vrot.lane.b32.xlu0 %v36, 16
    %v38 = vpop.permute.xlu0 %37
    %vm39 = vcmask 195712
    %40 = vst.msk [vmem:[#allocation0] sm:$0x1] %vm39, %v38
    %s41 = scalar_lea.vmem %s0, 1
    %v42 = vld [vmem:[%s41] sm:$0x1]
    %43 = vrot.lane.b32.xlu0 %v42, 8
    %v44 = vpop.permute.xlu0 %43
    %vm45 = vcmask 130112
    %46 = vst.msk [vmem:[#allocation0] sm:$0x1] %vm45, %v44
    %s48 = ssub.s32 2, 1
    %v49 = vld [vmem:[#allocation0] sm:%s48]
    %s51 = ssub.s32 2, 1
    %52 = vst [vmem:[%s1] sm:%s51] %v49

// kernel: basic_block_forward.5
$region0: #{basic_block_forward.5}
  #allocation0 [shape = 'u32[]', space=smem, size = 0x4, offset = 0x4, fixed_abs, tag = 'smem constant byte address 0x4 - core index']
  #allocation1 [shape = 'u32[72,128]{1,0:T(1,128)}', space=vmem, size = 0x9000, scoped, tag = 'internal scratch']
  %s0 = inlined_call_operand.vmem [shape: f32[16,64], index: 0, kind: input, shape index: {}]
  %s1 = inlined_call_operand.vmem [shape: f32[1,64], index: 1, kind: input, shape index: {}]
  %s2 = inlined_call_operand.vmem [shape: f32[1,64], index: 2, kind: input, shape index: {}]
  %s3 = inlined_call_operand.vmem [shape: f32[16,64], index: 3, kind: input, shape index: {}]
  %s4 = inlined_call_operand.vmem [shape: f32[16,64], index: 4, kind: output, shape index: {}]
  %s5 = sld [smem:[#allocation0]]
  $region49: #{basic_block_forward.5} parent=0
    _
  %s7 = ssub.s32 1, %s5
  %s8 = scalar_select 0, %s7, %s5
  loop: start=0, step=1, limit=4
  $region2: #{basic_block_forward.5} parent=0 // loop_pre_header
    _
  $region3: #{basic_block_forward.5} parent=0 // loop_header
    %s10 = sphi 0, %s14
    %p11 = scmp.ge.s32.totalorder %s10, 4
    %s20 = sphi 0, %s22
    %s23 = sphi 0, %s20
    %s24 = sphi 0, %s23
    %s40 = sphi 0, %s24
    %s44 = sphi 0, %s44
    %s46 = sphi 0, %s44
    %s47 = sphi 0, %s46
    %s61 = sphi 0, %s47
    %s65 = sphi 0, %s65
    %s67 = sphi 0, %s65
    %s68 = sphi 0, %s67
    %s82 = sphi 0, %s68
    %s88 = sphi 0, %s90
    %s91 = sphi 0, %s88
    %s92 = sphi 0, %s91
    %s108 = sphi 0, %s92
    %s114 = sphi 0, %s116
    %s117 = sphi 0, %s114
    %s118 = sphi 0, %s117
    %s134 = sphi 0, %s118
  $region4: #{basic_block_forward.5} parent=0 // loop_header_branch
    %13 = sbr.rel (%p11) target = $region8
  $region5: #{basic_block_forward.5} parent=0 // loop_body
    %s15 = ssub.s32 %s10, 1
    %s16 = ssub.s32 %s10, 2
    %s17 = sadd.s32 %s10, 1
    %s18 = ssub.s32 %s10, %s17
    %p19 = scmp.eq.s32.totalorder %s18, 0
    %s21 = sadd.s32 %s20, 1
    %s22 = scalar_select %p19, %s20, %s21
    %p25 = pneg %p19
    %p26 = scmp.eq.s32.totalorder %s10, 1
    %p27 = por %p25, %p26
    %p28 = scmp.ne.s32.totalorder %s20, %s23
    %p29 = scmp.eq.s32.totalorder %s10, 0
    %p30 = por %p28, %p29
    %p31 = scmp.ne.s32.totalorder %s20, %s23
    %p32 = scmp.eq.s32.totalorder %s15, 1
    %p33 = por %p31, %p32
    %p34 = scmp.ne.s32.totalorder %s23, %s24
    %p35 = scmp.eq.s32.totalorder %s15, 0
    %p36 = por %p34, %p35
    %p37 = scmp.ne.s32.totalorder %s23, %s24
    %p38 = scmp.eq.s32.totalorder %s16, 1
    %p39 = por %p37, %p38
    %p41 = scmp.ne.s32.totalorder %s24, %s40
    %p42 = scmp.eq.s32.totalorder %s16, 0
    %p43 = por %p41, %p42
    %s45 = sadd.s32 %s44, 1
    %p48 = scmp.eq.s32.totalorder %s10, 1
    %p49 = scmp.ne.s32.totalorder %s44, %s46
    %p50 = scmp.eq.s32.totalorder %s10, 0
    %p51 = por %p49, %p50
    %p52 = scmp.ne.s32.totalorder %s44, %s46
    %p53 = scmp.eq.s32.totalorder %s15, 1
    %p54 = por %p52, %p53
    %p55 = scmp.ne.s32.totalorder %s46, %s47
    %p56 = scmp.eq.s32.totalorder %s15, 0
    %p57 = por %p55, %p56
    %p58 = scmp.ne.s32.totalorder %s46, %s47
    %p59 = scmp.eq.s32.totalorder %s16, 1
    %p60 = por %p58, %p59
    %p62 = scmp.ne.s32.totalorder %s47, %s61
    %p63 = scmp.eq.s32.totalorder %s16, 0
    %p64 = por %p62, %p63
    %s66 = sadd.s32 %s65, 1
    %p69 = scmp.eq.s32.totalorder %s10, 1
    %p70 = scmp.ne.s32.totalorder %s65, %s67
    %p71 = scmp.eq.s32.totalorder %s10, 0
    %p72 = por %p70, %p71
    %p73 = scmp.ne.s32.totalorder %s65, %s67
    %p74 = scmp.eq.s32.totalorder %s15, 1
    %p75 = por %p73, %p74
    %p76 = scmp.ne.s32.totalorder %s67, %s68
    %p77 = scmp.eq.s32.totalorder %s15, 0
    %p78 = por %p76, %p77
    %p79 = scmp.ne.s32.totalorder %s67, %s68
    %p80 = scmp.eq.s32.totalorder %s16, 1
    %p81 = por %p79, %p80
    %p83 = scmp.ne.s32.totalorder %s68, %s82
    %p84 = scmp.eq.s32.totalorder %s16, 0
    %p85 = por %p83, %p84
    %s86 = ssub.s32 %s10, %s17
    %p87 = scmp.eq.s32.totalorder %s86, 0
    %s89 = sadd.s32 %s88, 1
    %s90 = scalar_select %p87, %s88, %s89
    %p93 = pneg %p87
    %p94 = scmp.eq.s32.totalorder %s10, 1
    %p95 = por %p93, %p94
    %p96 = scmp.ne.s32.totalorder %s88, %s91
    %p97 = scmp.eq.s32.totalorder %s10, 0
    %p98 = por %p96, %p97
    %p99 = scmp.ne.s32.totalorder %s88, %s91
    %p100 = scmp.eq.s32.totalorder %s15, 1
    %p101 = por %p99, %p100
    %p102 = scmp.ne.s32.totalorder %s91, %s92
    %p103 = scmp.eq.s32.totalorder %s15, 0
    %p104 = por %p102, %p103
    %p105 = scmp.ne.s32.totalorder %s91, %s92
    %p106 = scmp.eq.s32.totalorder %s16, 1
    %p107 = por %p105, %p106
    %p109 = scmp.ne.s32.totalorder %s92, %s108
    %p110 = scmp.eq.s32.totalorder %s16, 0
    %p111 = por %p109, %p110
    %s112 = ssub.s32 %s10, %s17
    %p113 = scmp.eq.s32.totalorder %s112, 0
    %s115 = sadd.s32 %s114, 1
    %s116 = scalar_select %p113, %s114, %s115
    %p119 = pneg %p113
    %p120 = scmp.eq.s32.totalorder %s10, 1
    %p121 = por %p119, %p120
    %p122 = scmp.ne.s32.totalorder %s114, %s117
    %p123 = scmp.eq.s32.totalorder %s10, 0
    %p124 = por %p122, %p123
    %p125 = scmp.ne.s32.totalorder %s114, %s117
    %p126 = scmp.eq.s32.totalorder %s15, 1
    %p127 = por %p125, %p126
    %p128 = scmp.ne.s32.totalorder %s117, %s118
    %p129 = scmp.eq.s32.totalorder %s15, 0
    %p130 = por %p128, %p129
    %p131 = scmp.ne.s32.totalorder %s117, %s118
    %p132 = scmp.eq.s32.totalorder %s16, 1
    %p133 = por %p131, %p132
    %p135 = scmp.ne.s32.totalorder %s118, %s134
    %p136 = scmp.eq.s32.totalorder %s16, 0
    %p137 = por %p135, %p136
    %p138 = scmp.le.s32.totalorder 1, %s10
    %p139 = scmp.lt.s32.totalorder %s10, 3
    %p140 = pnand %p138, %p139
    %p141 = pneg %p140
    // Predicated region
    $region9: #{basic_block_forward.5} parent=5 // pred_check
      _
    $region10: #{basic_block_forward.5} parent=5 // pred_check_branch
      %143 = sbr.rel (%p140) target = $region12
    $region11: #{basic_block_forward.5} parent=5 // pred_region
      %s144 = ssub.s32 %s10, 1
      // Predicated region
      $region13: #{basic_block_forward.5} parent=11 // pred_check
        %p145 = pneg %p57
      $region14: #{basic_block_forward.5} parent=11 // pred_check_branch
        %147 = sbr.rel (%p145) target = $region16
      $region15: #{basic_block_forward.5} parent=11 // pred_region
        _
      $region16: #{basic_block_forward.5} parent=11 // pred_fallthru
        _
      // Predicated region
      $region17: #{basic_block_forward.5} parent=11 // pred_check
        %p148 = pneg %p78
      $region18: #{basic_block_forward.5} parent=11 // pred_check_branch
        %150 = sbr.rel (%p148) target = $region20
      $region19: #{basic_block_forward.5} parent=11 // pred_region
        _
      $region20: #{basic_block_forward.5} parent=11 // pred_fallthru
        _
    $region12: #{basic_block_forward.5} parent=5 // pred_fallthru
      _
    %p151 = scmp.lt.s32.totalorder %s10, 2
    // Predicated region
    $region21: #{basic_block_forward.5} parent=5 // pred_check
      %p152 = pneg %p151
    $region22: #{basic_block_forward.5} parent=5 // pred_check_branch
      %154 = sbr.rel (%p152) target = $region24
    $region23: #{basic_block_forward.5} parent=5 // pred_region
      // Predicated region
      $region25: #{basic_block_forward.5} parent=23 // pred_check
        %p155 = pneg %p30
      $region26: #{basic_block_forward.5} parent=23 // pred_check_branch
        %157 = sbr.rel (%p155) target = $region28
      $region27: #{basic_block_forward.5} parent=23 // pred_region
        %p158 = scmp.lt.s32.totalorder %s10, 1
        %s159 = scalar_select %p158, %s10, 1
        %s160 = smul.addr %s159, 8
        %s161 = scalar_lea.vmem %s0, %s160
      $region28: #{basic_block_forward.5} parent=23 // pred_fallthru
        _
      // Predicated region
      $region29: #{basic_block_forward.5} parent=23 // pred_check
        %p162 = pneg %p98
      $region30: #{basic_block_forward.5} parent=23 // pred_check_branch
        %164 = sbr.rel (%p162) target = $region32
      $region31: #{basic_block_forward.5} parent=23 // pred_region
        %p165 = scmp.lt.s32.totalorder %s10, 1
        %s166 = scalar_select %p165, %s10, 1
        %s167 = smul.addr %s166, 8
        %s168 = scalar_lea.vmem %s3, %s167
      $region32: #{basic_block_forward.5} parent=23 // pred_fallthru
        _
    $region24: #{basic_block_forward.5} parent=5 // pred_fallthru
      _
    %p169 = scmp.le.s32.totalorder 1, %s10
    %p170 = scmp.lt.s32.totalorder %s10, 3
    %p171 = pnand %p169, %p170
    %p172 = pneg %p171
    // Predicated region
    $region33: #{basic_block_forward.5} parent=5 // pred_check
      _
    $region34: #{basic_block_forward.5} parent=5 // pred_check_branch
      %174 = sbr.rel (%p171) target = $region36
    $region35: #{basic_block_forward.5} parent=5 // pred_region
      %s175 = ssub.s32 %s10, 1
      %p176 = scmp.lt.s32.totalorder %s15, 1
      %s177 = scalar_select %p176, %s15, 1
      %s178 = smul.addr %s177, 8
      %s179 = scalar_lea.vmem %s0, %s178
      %p180 = pneg %p36
      %p181 = pneg %p33
      %p182 = pneg %p57
      %p183 = pneg %p54
      %p184 = pneg %p78
      %p185 = pneg %p75
      %p186 = scmp.lt.s32.totalorder %s15, 1
      %s187 = scalar_select %p186, %s15, 1
      %s188 = smul.addr %s187, 8
      %s189 = scalar_lea.vmem %s3, %s188
      %p190 = pneg %p104
      %p191 = pneg %p101
      %p192 = pneg %p130
      %p193 = pneg %p127
      %p194 = scmp.lt.s32.totalorder %s15, 1
      %s195 = scalar_select %p194, %s15, 1
      %s196 = smul.addr %s195, 8
      %s197 = scalar_lea.vmem %s4, %s196
      %p198 = scmp.lt.s32.totalorder %s15, 1
      %s199 = scalar_select %p198, %s15, 1
      %s200 = smul.addr %s199, 8
      %s201 = scalar_lea.vmem %s0, %s200
      %p202 = scmp.lt.s32.totalorder %s15, 1
      %s203 = scalar_select %p202, %s15, 1
      %s204 = smul.addr %s203, 8
      %s205 = scalar_lea.vmem %s3, %s204
      %p206 = scmp.lt.s32.totalorder %s15, 1
      %s207 = scalar_select %p206, %s15, 1
      %s208 = smul.addr %s207, 8
      %s209 = scalar_lea.vmem %s4, %s208
      %v210 = vld [vmem:[%s201] sm:$0xff]
      %v211 = vld [vmem:[%s1] sm:$0x1]
      %v213 = vperm.slane %v211, 0
      %v215 = vmul.f32 %v210, %v213
      %v216 = vld [vmem:[%s2] sm:$0x1]
      %v218 = vperm.slane %v216, 0
      %v220 = vadd.f32 %v215, %v218
      %v221 = vld [vmem:[%s205] sm:$0xff]
      %v222 = vadd.f32 %v220, %v221
      %v223 = vmax.f32 %v222, 0.0
      %vm224 = vcmask 523264
      %225 = vst.msk [vmem:[%s209] sm:$0xff] %vm224, %v223
      %p226 = scmp.lt.s32.totalorder %s15, 1
      %s227 = scalar_select %p226, %s15, 1
      %s228 = smul.addr %s227, 8
      %s229 = scalar_lea.vmem %s4, %s228
      // Predicated region
      $region37: #{basic_block_forward.5} parent=35 // pred_check
        %p230 = pneg %p127
      $region38: #{basic_block_forward.5} parent=35 // pred_check_branch
        %232 = sbr.rel (%p230) target = $region40
      $region39: #{basic_block_forward.5} parent=35 // pred_region
        _
      $region40: #{basic_block_forward.5} parent=35 // pred_fallthru
        _
    $region36: #{basic_block_forward.5} parent=5 // pred_fallthru
      _
    %p233 = scmp.le.s32.totalorder 2, %s10
    // Predicated region
    $region41: #{basic_block_forward.5} parent=5 // pred_check
      %p234 = pneg %p233
    $region42: #{basic_block_forward.5} parent=5 // pred_check_branch
      %236 = sbr.rel (%p234) target = $region44
    $region43: #{basic_block_forward.5} parent=5 // pred_region
      %s237 = ssub.s32 %s10, 2
      // Predicated region
      $region45: #{basic_block_forward.5} parent=43 // pred_check
        %p238 = pneg %p133
      $region46: #{basic_block_forward.5} parent=43 // pred_check_branch
        %240 = sbr.rel (%p238) target = $region48
      $region47: #{basic_block_forward.5} parent=43 // pred_region
        %p241 = scmp.lt.s32.totalorder %s16, 1
        %s242 = scalar_select %p241, %s16, 1
        %s243 = smul.addr %s242, 8
        %s244 = scalar_lea.vmem %s4, %s243
      $region48: #{basic_block_forward.5} parent=43 // pred_fallthru
        _
    $region44: #{basic_block_forward.5} parent=5 // pred_fallthru
      _
  $region6: #{basic_block_forward.5} parent=0 // loop_footer
    %s14 = sadd.s32 1, %s10
  $region7: #{basic_block_forward.5} parent=0 // loop_footer_branch
    %9 = sbr.rel target = $region3
  $region8: #{basic_block_forward.5} parent=0 // loop_exit
    _

// kernel: basic_block_forward.3
$region0: #{basic_block_forward.3}
  #allocation0 [shape = 'u32[]', space=smem, size = 0x4, offset = 0x4, fixed_abs, tag = 'smem constant byte address 0x4 - core index']
  #allocation1 [shape = 'u32[72,128]{1,0:T(1,128)}', space=vmem, size = 0x9000, scoped, tag = 'internal scratch']
  %s0 = inlined_call_operand.vmem [shape: f32[4,2,9,9,4], index: 0, kind: input, shape index: {}]
  %s1 = inlined_call_operand.vmem [shape: f32[9,4,8], index: 1, kind: input, shape index: {}]
  %s2 = inlined_call_operand.vmem [shape: f32[1,4], index: 2, kind: input, shape index: {}]
  %s3 = inlined_call_operand.vmem [shape: f32[1,4], index: 3, kind: input, shape index: {}]
  %s4 = inlined_call_operand.vmem [shape: f32[2,8,8,8], index: 4, kind: output, shape index: {0}]
  %s5 = inlined_call_operand.vmem [shape: f32[2,2,8], index: 5, kind: output, shape index: {1}]
  %6 = xla_tuple %s4, %s5
  %s7 = sld [smem:[#allocation0]]
  $region95: #{basic_block_forward.3} parent=0
    _
  %s9 = ssub.s32 1, %s7
  %s10 = scalar_select 0, %s9, %s7
  $region1: #{basic_block_forward.3} parent=0
    #allocation2 [shape = 'u8[589824]{0}', space=vmem, size = 0x90000, scoped, tag = 'input window, operand 0']
    loop: start=0, step=1, limit=4
    $region2: #{basic_block_forward.3} parent=1 // loop_pre_header
      _
    $region3: #{basic_block_forward.3} parent=1 // loop_header
      %s12 = sphi 0, %s16
      %p13 = scmp.ge.s32.totalorder %s12, 4
      %s22 = sphi 0, %s24
      %s25 = sphi 0, %s22
      %s26 = sphi 0, %s25
      %s42 = sphi 0, %s26
      %s46 = sphi 0, %s46
      %s48 = sphi 0, %s46
      %s49 = sphi 0, %s48
      %s63 = sphi 0, %s49
      %s67 = sphi 0, %s67
      %s69 = sphi 0, %s67
      %s70 = sphi 0, %s69
      %s84 = sphi 0, %s70
      %s88 = sphi 0, %s88
      %s90 = sphi 0, %s88
      %s91 = sphi 0, %s90
      %s105 = sphi 0, %s91
      %s111 = sphi 0, %s113
      %s114 = sphi 0, %s111
      %s115 = sphi 0, %s114
      %s131 = sphi 0, %s115
      %s137 = sphi 0, %s139
      %s140 = sphi 0, %s137
      %s141 = sphi 0, %s140
      %s157 = sphi 0, %s141
    $region4: #{basic_block_forward.3} parent=1 // loop_header_branch
      %15 = sbr.rel (%p13) target = $region8
    $region5: #{basic_block_forward.3} parent=1 // loop_body
      %s17 = ssub.s32 %s12, 1
      %s18 = ssub.s32 %s12, 2
      %s19 = sadd.s32 %s12, 1
      %s20 = ssub.s32 %s12, %s19
      %p21 = scmp.eq.s32.totalorder %s20, 0
      %s23 = sadd.s32 %s22, 1
      %s24 = scalar_select %p21, %s22, %s23
      %p27 = pneg %p21
      %p28 = scmp.eq.s32.totalorder %s12, 1
      %p29 = por %p27, %p28
      %p30 = scmp.ne.s32.totalorder %s22, %s25
      %p31 = scmp.eq.s32.totalorder %s12, 0
      %p32 = por %p30, %p31
      %p33 = scmp.ne.s32.totalorder %s22, %s25
      %p34 = scmp.eq.s32.totalorder %s17, 1
      %p35 = por %p33, %p34
      %p36 = scmp.ne.s32.totalorder %s25, %s26
      %p37 = scmp.eq.s32.totalorder %s17, 0
      %p38 = por %p36, %p37
      %p39 = scmp.ne.s32.totalorder %s25, %s26
      %p40 = scmp.eq.s32.totalorder %s18, 1
      %p41 = por %p39, %p40
      %p43 = scmp.ne.s32.totalorder %s26, %s42
      %p44 = scmp.eq.s32.totalorder %s18, 0
      %p45 = por %p43, %p44
      %s47 = sadd.s32 %s46, 1
      %p50 = scmp.eq.s32.totalorder %s12, 1
      %p51 = scmp.ne.s32.totalorder %s46, %s48
      %p52 = scmp.eq.s32.totalorder %s12, 0
      %p53 = por %p51, %p52
      %p54 = scmp.ne.s32.totalorder %s46, %s48
      %p55 = scmp.eq.s32.totalorder %s17, 1
      %p56 = por %p54, %p55
      %p57 = scmp.ne.s32.totalorder %s48, %s49
      %p58 = scmp.eq.s32.totalorder %s17, 0
      %p59 = por %p57, %p58
      %p60 = scmp.ne.s32.totalorder %s48, %s49
      %p61 = scmp.eq.s32.totalorder %s18, 1
      %p62 = por %p60, %p61
      %p64 = scmp.ne.s32.totalorder %s49, %s63
      %p65 = scmp.eq.s32.totalorder %s18, 0
      %p66 = por %p64, %p65
      %s68 = sadd.s32 %s67, 1
      %p71 = scmp.eq.s32.totalorder %s12, 1
      %p72 = scmp.ne.s32.totalorder %s67, %s69
      %p73 = scmp.eq.s32.totalorder %s12, 0
      %p74 = por %p72, %p73
      %p75 = scmp.ne.s32.totalorder %s67, %s69
      %p76 = scmp.eq.s32.totalorder %s17, 1
      %p77 = por %p75, %p76
      %p78 = scmp.ne.s32.totalorder %s69, %s70
      %p79 = scmp.eq.s32.totalorder %s17, 0
      %p80 = por %p78, %p79
      %p81 = scmp.ne.s32.totalorder %s69, %s70
      %p82 = scmp.eq.s32.totalorder %s18, 1
      %p83 = por %p81, %p82
      %p85 = scmp.ne.s32.totalorder %s70, %s84
      %p86 = scmp.eq.s32.totalorder %s18, 0
      %p87 = por %p85, %p86
      %s89 = sadd.s32 %s88, 1
      %p92 = scmp.eq.s32.totalorder %s12, 1
      %p93 = scmp.ne.s32.totalorder %s88, %s90
      %p94 = scmp.eq.s32.totalorder %s12, 0
      %p95 = por %p93, %p94
      %p96 = scmp.ne.s32.totalorder %s88, %s90
      %p97 = scmp.eq.s32.totalorder %s17, 1
      %p98 = por %p96, %p97
      %p99 = scmp.ne.s32.totalorder %s90, %s91
      %p100 = scmp.eq.s32.totalorder %s17, 0
      %p101 = por %p99, %p100
      %p102 = scmp.ne.s32.totalorder %s90, %s91
      %p103 = scmp.eq.s32.totalorder %s18, 1
      %p104 = por %p102, %p103
      %p106 = scmp.ne.s32.totalorder %s91, %s105
      %p107 = scmp.eq.s32.totalorder %s18, 0
      %p108 = por %p106, %p107
      %s109 = ssub.s32 %s12, %s19
      %p110 = scmp.eq.s32.totalorder %s109, 0
      %s112 = sadd.s32 %s111, 1
      %s113 = scalar_select %p110, %s111, %s112
      %p116 = pneg %p110
      %p117 = scmp.eq.s32.totalorder %s12, 1
      %p118 = por %p116, %p117
      %p119 = scmp.ne.s32.totalorder %s111, %s114
      %p120 = scmp.eq.s32.totalorder %s12, 0
      %p121 = por %p119, %p120
      %p122 = scmp.ne.s32.totalorder %s111, %s114
      %p123 = scmp.eq.s32.totalorder %s17, 1
      %p124 = por %p122, %p123
      %p125 = scmp.ne.s32.totalorder %s114, %s115
      %p126 = scmp.eq.s32.totalorder %s17, 0
      %p127 = por %p125, %p126
      %p128 = scmp.ne.s32.totalorder %s114, %s115
      %p129 = scmp.eq.s32.totalorder %s18, 1
      %p130 = por %p128, %p129
      %p132 = scmp.ne.s32.totalorder %s115, %s131
      %p133 = scmp.eq.s32.totalorder %s18, 0
      %p134 = por %p132, %p133
      %s135 = ssub.s32 %s12, %s19
      %p136 = scmp.eq.s32.totalorder %s135, 0
      %s138 = sadd.s32 %s137, 1
      %s139 = scalar_select %p136, %s137, %s138
      %p142 = pneg %p136
      %p143 = scmp.eq.s32.totalorder %s12, 1
      %p144 = por %p142, %p143
      %p145 = scmp.ne.s32.totalorder %s137, %s140
      %p146 = scmp.eq.s32.totalorder %s12, 0
      %p147 = por %p145, %p146
      %p148 = scmp.ne.s32.totalorder %s137, %s140
      %p149 = scmp.eq.s32.totalorder %s17, 1
      %p150 = por %p148, %p149
      %p151 = scmp.ne.s32.totalorder %s140, %s141
      %p152 = scmp.eq.s32.totalorder %s17, 0
      %p153 = por %p151, %p152
      %p154 = scmp.ne.s32.totalorder %s140, %s141
      %p155 = scmp.eq.s32.totalorder %s18, 1
      %p156 = por %p154, %p155
      %p158 = scmp.ne.s32.totalorder %s141, %s157
      %p159 = scmp.eq.s32.totalorder %s18, 0
      %p160 = por %p158, %p159
      %p161 = scmp.le.s32.totalorder 1, %s12
      %p162 = scmp.lt.s32.totalorder %s12, 3
      %p163 = pnand %p161, %p162
      %p164 = pneg %p163
      // Predicated region
      $region9: #{basic_block_forward.3} parent=5 // pred_check
        _
      $region10: #{basic_block_forward.3} parent=5 // pred_check_branch
        %166 = sbr.rel (%p163) target = $region12
      $region11: #{basic_block_forward.3} parent=5 // pred_region
        %s167 = ssub.s32 %s12, 1
        // Predicated region
        $region13: #{basic_block_forward.3} parent=11 // pred_check
          %p168 = pneg %p59
        $region14: #{basic_block_forward.3} parent=11 // pred_check_branch
          %170 = sbr.rel (%p168) target = $region16
        $region15: #{basic_block_forward.3} parent=11 // pred_region
          _
        $region16: #{basic_block_forward.3} parent=11 // pred_fallthru
          _
        // Predicated region
        $region17: #{basic_block_forward.3} parent=11 // pred_check
          %p171 = pneg %p80
        $region18: #{basic_block_forward.3} parent=11 // pred_check_branch
          %173 = sbr.rel (%p171) target = $region20
        $region19: #{basic_block_forward.3} parent=11 // pred_region
          _
        $region20: #{basic_block_forward.3} parent=11 // pred_fallthru
          _
        // Predicated region
        $region21: #{basic_block_forward.3} parent=11 // pred_check
          %p174 = pneg %p101
        $region22: #{basic_block_forward.3} parent=11 // pred_check_branch
          %176 = sbr.rel (%p174) target = $region24
        $region23: #{basic_block_forward.3} parent=11 // pred_region
          _
        $region24: #{basic_block_forward.3} parent=11 // pred_fallthru
          _
      $region12: #{basic_block_forward.3} parent=5 // pred_fallthru
        _
      %p177 = scmp.lt.s32.totalorder %s12, 2
      // Predicated region
      $region25: #{basic_block_forward.3} parent=5 // pred_check
        %p178 = pneg %p177
      $region26: #{basic_block_forward.3} parent=5 // pred_check_branch
        %180 = sbr.rel (%p178) target = $region28
      $region27: #{basic_block_forward.3} parent=5 // pred_region
        // Predicated region
        $region29: #{basic_block_forward.3} parent=27 // pred_check
          %p181 = pneg %p32
        $region30: #{basic_block_forward.3} parent=27 // pred_check_branch
          %183 = sbr.rel (%p181) target = $region32
        $region31: #{basic_block_forward.3} parent=27 // pred_region
          %s184 = sand.u32 %s22, 1
          %s185 = sand.u32 %s22, 1
          %s186 = smul.addr %s185, 576
          %s187 = scalar_lea.vmem [#allocation2], %s186
          %s188 = smul.addr %s12, 18
          %s189 = smul.addr %s188, 8
          %s190 = scalar_lea.vmem %s0, %s189
          // Predicated region
          $region33: #{basic_block_forward.3} parent=31 // pred_check
            _
          $region34: #{basic_block_forward.3} parent=31 // pred_check_branch
            %192 = sbr.rel (0) target = $region36
          $region35: #{basic_block_forward.3} parent=31 // pred_region
            // Predicated region
            $region37: #{basic_block_forward.3} parent=35 // pred_check
              _
            $region38: #{basic_block_forward.3} parent=35 // pred_check_branch
              %194 = sbr.rel (0) target = $region40
            $region39: #{basic_block_forward.3} parent=35 // pred_region
              // Predicated region
              $region52: #{basic_block_forward.3} parent=39 // pred_check
                _
              $region53: #{basic_block_forward.3} parent=39 // pred_check_branch
                %352 = sbr.rel (0) target = $region55
              $region54: #{basic_block_forward.3} parent=39 // pred_region
                loop: start=0, step=1, limit=1
                $region56: #{basic_block_forward.3} parent=54 // loop_pre_header
                  _
                $region57: #{basic_block_forward.3} parent=54 // loop_header
                  %s354 = sphi 0, %s358
                  %p355 = scmp.ge.s32.totalorder %s354, 1
                  %s359 = sphi %s190, %s190
                  %s360 = sphi %s187, %s187
                $region58: #{basic_block_forward.3} parent=54 // loop_header_branch
                  %357 = sbr.rel (%p355) target = $region62
                $region59: #{basic_block_forward.3} parent=54 // loop_body
                  %v361 = vld [vmem:[%s359] sm:$0xff]
                  %362 = vst [vmem:[%s360] sm:$0xff] %v361
                  %v363 = vld [vmem:[%s359 + $0x8] sm:$0xff]
                  %364 = vst [vmem:[%s360 + $0x8] sm:$0xff] %v363
                  %v365 = vld [vmem:[%s359 + $0x10] sm:$0xff]
                  %366 = vst [vmem:[%s360 + $0x10] sm:$0xff] %v365
                  %v367 = vld [vmem:[%s359 + $0x18] sm:$0xff]
                  %368 = vst [vmem:[%s360 + $0x18] sm:$0xff] %v367
                  %v369 = vld [vmem:[%s359 + $0x20] sm:$0xff]
                  %370 = vst [vmem:[%s360 + $0x20] sm:$0xff] %v369
                  %v371 = vld [vmem:[%s359 + $0x28] sm:$0xff]
                  %372 = vst [vmem:[%s360 + $0x28] sm:$0xff] %v371
                  %v373 = vld [vmem:[%s359 + $0x30] sm:$0xff]
                  %374 = vst [vmem:[%s360 + $0x30] sm:$0xff] %v373
                  %v375 = vld [vmem:[%s359 + $0x38] sm:$0xff]
                  %376 = vst [vmem:[%s360 + $0x38] sm:$0xff] %v375
                  %v377 = vld [vmem:[%s359 + $0x40] sm:$0xff]
                  %378 = vst [vmem:[%s360 + $0x40] sm:$0xff] %v377
                  %v379 = vld [vmem:[%s359 + $0x48] sm:$0xff]
                  %380 = vst [vmem:[%s360 + $0x48] sm:$0xff] %v379
                  %v381 = vld [vmem:[%s359 + $0x50] sm:$0xff]
                  %382 = vst [vmem:[%s360 + $0x50] sm:$0xff] %v381
                  %v383 = vld [vmem:[%s359 + $0x58] sm:$0xff]
                  %384 = vst [vmem:[%s360 + $0x58] sm:$0xff] %v383
                  %v385 = vld [vmem:[%s359 + $0x60] sm:$0xff]
                  %386 = vst [vmem:[%s360 + $0x60] sm:$0xff] %v385
                  %v387 = vld [vmem:[%s359 + $0x68] sm:$0xff]
                  %388 = vst [vmem:[%s360 + $0x68] sm:$0xff] %v387
                  %v389 = vld [vmem:[%s359 + $0x70] sm:$0xff]
                  %390 = vst [vmem:[%s360 + $0x70] sm:$0xff] %v389
                  %v391 = vld [vmem:[%s359 + $0x78] sm:$0xff]
                  %392 = vst [vmem:[%s360 + $0x78] sm:$0xff] %v391
                  %v393 = vld [vmem:[%s359 + $0x80] sm:$0xff]
                  %394 = vst [vmem:[%s360 + $0x80] sm:$0xff] %v393
                  %v395 = vld [vmem:[%s359 + $0x88] sm:$0xff]
                  %396 = vst [vmem:[%s360 + $0x88] sm:$0xff] %v395
                  %v397 = vld [vmem:[%s359 + $0x120] sm:$0xff]
                  %398 = vst [vmem:[%s360 + $0x90] sm:$0xff] %v397
                  %v399 = vld [vmem:[%s359 + $0x128] sm:$0xff]
                  %400 = vst [vmem:[%s360 + $0x98] sm:$0xff] %v399
                  %v401 = vld [vmem:[%s359 + $0x130] sm:$0xff]
                  %402 = vst [vmem:[%s360 + $0xa0] sm:$0xff] %v401
                  %v403 = vld [vmem:[%s359 + $0x138] sm:$0xff]
                  %404 = vst [vmem:[%s360 + $0xa8] sm:$0xff] %v403
                  %v405 = vld [vmem:[%s359 + $0x140] sm:$0xff]
                  %406 = vst [vmem:[%s360 + $0xb0] sm:$0xff] %v405
                  %v407 = vld [vmem:[%s359 + $0x148] sm:$0xff]
                  %408 = vst [vmem:[%s360 + $0xb8] sm:$0xff] %v407
                  %v409 = vld [vmem:[%s359 + $0x150] sm:$0xff]
                  %410 = vst [vmem:[%s360 + $0xc0] sm:$0xff] %v409
                  %v411 = vld [vmem:[%s359 + $0x158] sm:$0xff]
                  %412 = vst [vmem:[%s360 + $0xc8] sm:$0xff] %v411
                  %v413 = vld [vmem:[%s359 + $0x160] sm:$0xff]
                  %414 = vst [vmem:[%s360 + $0xd0] sm:$0xff] %v413
                  %v415 = vld [vmem:[%s359 + $0x168] sm:$0xff]
                  %416 = vst [vmem:[%s360 + $0xd8] sm:$0xff] %v415
                  %v417 = vld [vmem:[%s359 + $0x170] sm:$0xff]
                  %418 = vst [vmem:[%s360 + $0xe0] sm:$0xff] %v417
                  %v419 = vld [vmem:[%s359 + $0x178] sm:$0xff]
                  %420 = vst [vmem:[%s360 + $0xe8] sm:$0xff] %v419
                  %v421 = vld [vmem:[%s359 + $0x180] sm:$0xff]
                  %422 = vst [vmem:[%s360 + $0xf0] sm:$0xff] %v421
                  %v423 = vld [vmem:[%s359 + $0x188] sm:$0xff]
                  %424 = vst [vmem:[%s360 + $0xf8] sm:$0xff] %v423
                  %v425 = vld [vmem:[%s359 + $0x190] sm:$0xff]
                  %426 = vst [vmem:[%s360 + $0x100] sm:$0xff] %v425
                  %v427 = vld [vmem:[%s359 + $0x198] sm:$0xff]
                  %428 = vst [vmem:[%s360 + $0x108] sm:$0xff] %v427
                  %v429 = vld [vmem:[%s359 + $0x1a0] sm:$0xff]
                  %430 = vst [vmem:[%s360 + $0x110] sm:$0xff] %v429
                  %v431 = vld [vmem:[%s359 + $0x1a8] sm:$0xff]
                  %432 = vst [vmem:[%s360 + $0x118] sm:$0xff] %v431
                  %v433 = vld [vmem:[%s359 + $0x240] sm:$0xff]
                  %434 = vst [vmem:[%s360 + $0x120] sm:$0xff] %v433
                  %v435 = vld [vmem:[%s359 + $0x248] sm:$0xff]
                  %436 = vst [vmem:[%s360 + $0x128] sm:$0xff] %v435
                  %v437 = vld [vmem:[%s359 + $0x250] sm:$0xff]
                  %438 = vst [vmem:[%s360 + $0x130] sm:$0xff] %v437
                  %v439 = vld [vmem:[%s359 + $0x258] sm:$0xff]
                  %440 = vst [vmem:[%s360 + $0x138] sm:$0xff] %v439
                  %v441 = vld [vmem:[%s359 + $0x260] sm:$0xff]
                  %442 = vst [vmem:[%s360 + $0x140] sm:$0xff] %v441
                  %v443 = vld [vmem:[%s359 + $0x268] sm:$0xff]
                  %444 = vst [vmem:[%s360 + $0x148] sm:$0xff] %v443
                  %v445 = vld [vmem:[%s359 + $0x270] sm:$0xff]
                  %446 = vst [vmem:[%s360 + $0x150] sm:$0xff] %v445
                  %v447 = vld [vmem:[%s359 + $0x278] sm:$0xff]
                  %448 = vst [vmem:[%s360 + $0x158] sm:$0xff] %v447
                  %v449 = vld [vmem:[%s359 + $0x280] sm:$0xff]
                  %450 = vst [vmem:[%s360 + $0x160] sm:$0xff] %v449
                  %v451 = vld [vmem:[%s359 + $0x288] sm:$0xff]
                  %452 = vst [vmem:[%s360 + $0x168] sm:$0xff] %v451
                  %v453 = vld [vmem:[%s359 + $0x290] sm:$0xff]
                  %454 = vst [vmem:[%s360 + $0x170] sm:$0xff] %v453
                  %v455 = vld [vmem:[%s359 + $0x298] sm:$0xff]
                  %456 = vst [vmem:[%s360 + $0x178] sm:$0xff] %v455
                  %v457 = vld [vmem:[%s359 + $0x2a0] sm:$0xff]
                  %458 = vst [vmem:[%s360 + $0x180] sm:$0xff] %v457
                  %v459 = vld [vmem:[%s359 + $0x2a8] sm:$0xff]
                  %460 = vst [vmem:[%s360 + $0x188] sm:$0xff] %v459
                  %v461 = vld [vmem:[%s359 + $0x2b0] sm:$0xff]
                  %462 = vst [vmem:[%s360 + $0x190] sm:$0xff] %v461
                  %v463 = vld [vmem:[%s359 + $0x2b8] sm:$0xff]
                  %464 = vst [vmem:[%s360 + $0x198] sm:$0xff] %v463
                  %v465 = vld [vmem:[%s359 + $0x2c0] sm:$0xff]
                  %466 = vst [vmem:[%s360 + $0x1a0] sm:$0xff] %v465
                  %v467 = vld [vmem:[%s359 + $0x2c8] sm:$0xff]
                  %468 = vst [vmem:[%s360 + $0x1a8] sm:$0xff] %v467
                  %v469 = vld [vmem:[%s359 + $0x360] sm:$0xff]
                  %470 = vst [vmem:[%s360 + $0x1b0] sm:$0xff] %v469
                  %v471 = vld [vmem:[%s359 + $0x368] sm:$0xff]
                  %472 = vst [vmem:[%s360 + $0x1b8] sm:$0xff] %v471
                  %v473 = vld [vmem:[%s359 + $0x370] sm:$0xff]
                  %474 = vst [vmem:[%s360 + $0x1c0] sm:$0xff] %v473
                  %v475 = vld [vmem:[%s359 + $0x378] sm:$0xff]
                  %476 = vst [vmem:[%s360 + $0x1c8] sm:$0xff] %v475
                  %v477 = vld [vmem:[%s359 + $0x380] sm:$0xff]
                  %478 = vst [vmem:[%s360 + $0x1d0] sm:$0xff] %v477
                  %v479 = vld [vmem:[%s359 + $0x388] sm:$0xff]
                  %480 = vst [vmem:[%s360 + $0x1d8] sm:$0xff] %v479
                  %v481 = vld [vmem:[%s359 + $0x390] sm:$0xff]
                  %482 = vst [vmem:[%s360 + $0x1e0] sm:$0xff] %v481
                  %v483 = vld [vmem:[%s359 + $0x398] sm:$0xff]
                  %484 = vst [vmem:[%s360 + $0x1e8] sm:$0xff] %v483
                  %v485 = vld [vmem:[%s359 + $0x3a0] sm:$0xff]
                  %486 = vst [vmem:[%s360 + $0x1f0] sm:$0xff] %v485
                  %v487 = vld [vmem:[%s359 + $0x3a8] sm:$0xff]
                  %488 = vst [vmem:[%s360 + $0x1f8] sm:$0xff] %v487
                  %v489 = vld [vmem:[%s359 + $0x3b0] sm:$0xff]
                  %490 = vst [vmem:[%s360 + $0x200] sm:$0xff] %v489
                  %v491 = vld [vmem:[%s359 + $0x3b8] sm:$0xff]
                  %492 = vst [vmem:[%s360 + $0x208] sm:$0xff] %v491
                  %v493 = vld [vmem:[%s359 + $0x3c0] sm:$0xff]
                  %494 = vst [vmem:[%s360 + $0x210] sm:$0xff] %v493
                  %v495 = vld [vmem:[%s359 + $0x3c8] sm:$0xff]
                  %496 = vst [vmem:[%s360 + $0x218] sm:$0xff] %v495
                  %v497 = vld [vmem:[%s359 + $0x3d0] sm:$0xff]
                  %498 = vst [vmem:[%s360 + $0x220] sm:$0xff] %v497
                  %v499 = vld [vmem:[%s359 + $0x3d8] sm:$0xff]
                  %500 = vst [vmem:[%s360 + $0x228] sm:$0xff] %v499
                  %v501 = vld [vmem:[%s359 + $0x3e0] sm:$0xff]
                  %502 = vst [vmem:[%s360 + $0x230] sm:$0xff] %v501
                  %v503 = vld [vmem:[%s359 + $0x3e8] sm:$0xff]
                  %504 = vst [vmem:[%s360 + $0x238] sm:$0xff] %v503
                $region60: #{basic_block_forward.3} parent=54 // loop_footer
                  %s358 = sadd.s32 1, %s354
                $region61: #{basic_block_forward.3} parent=54 // loop_footer_branch
                  %353 = sbr.rel target = $region57
                $region62: #{basic_block_forward.3} parent=54 // loop_exit
                  _
              $region55: #{basic_block_forward.3} parent=39 // pred_fallthru
                _
              // Predicated region
              $region63: #{basic_block_forward.3} parent=39 // pred_check
                _
              $region64: #{basic_block_forward.3} parent=39 // pred_check_branch
                %506 = sbr.rel target = $region66
              $region65: #{basic_block_forward.3} parent=39 // pred_region
                _
              $region66: #{basic_block_forward.3} parent=39 // pred_fallthru
                _
            $region40: #{basic_block_forward.3} parent=35 // pred_fallthru
              _
            // Predicated region
            $region41: #{basic_block_forward.3} parent=35 // pred_check
              _
            $region42: #{basic_block_forward.3} parent=35 // pred_check_branch
              %196 = sbr.rel target = $region44
            $region43: #{basic_block_forward.3} parent=35 // pred_region
              %s198 = ssub.s32 256, 1
              loop: start=0, step=1, limit=1
              $region45: #{basic_block_forward.3} parent=43 // loop_pre_header
                _
              $region46: #{basic_block_forward.3} parent=43 // loop_header
                %s200 = sphi 0, %s204
                %p201 = scmp.ge.s32.totalorder %s200, 1
                %s205 = sphi %s190, %s190
                %s206 = sphi %s187, %s187
              $region47: #{basic_block_forward.3} parent=43 // loop_header_branch
                %203 = sbr.rel (%p201) target = $region51
              $region48: #{basic_block_forward.3} parent=43 // loop_body
                %v207 = vld [vmem:[%s205] sm:%s198]
                %208 = vst [vmem:[%s206] sm:%s198] %v207
                %v209 = vld [vmem:[%s205 + $0x8] sm:%s198]
                %210 = vst [vmem:[%s206 + $0x8] sm:%s198] %v209
                %v211 = vld [vmem:[%s205 + $0x10] sm:%s198]
                %212 = vst [vmem:[%s206 + $0x10] sm:%s198] %v211
                %v213 = vld [vmem:[%s205 + $0x18] sm:%s198]
                %214 = vst [vmem:[%s206 + $0x18] sm:%s198] %v213
                %v215 = vld [vmem:[%s205 + $0x20] sm:%s198]
                %216 = vst [vmem:[%s206 + $0x20] sm:%s198] %v215
                %v217 = vld [vmem:[%s205 + $0x28] sm:%s198]
                %218 = vst [vmem:[%s206 + $0x28] sm:%s198] %v217
                %v219 = vld [vmem:[%s205 + $0x30] sm:%s198]
                %220 = vst [vmem:[%s206 + $0x30] sm:%s198] %v219
                %v221 = vld [vmem:[%s205 + $0x38] sm:%s198]
                %222 = vst [vmem:[%s206 + $0x38] sm:%s198] %v221
                %v223 = vld [vmem:[%s205 + $0x40] sm:%s198]
                %224 = vst [vmem:[%s206 + $0x40] sm:%s198] %v223
                %v225 = vld [vmem:[%s205 + $0x48] sm:%s198]
                %226 = vst [vmem:[%s206 + $0x48] sm:%s198] %v225
                %v227 = vld [vmem:[%s205 + $0x50] sm:%s198]
                %228 = vst [vmem:[%s206 + $0x50] sm:%s198] %v227
                %v229 = vld [vmem:[%s205 + $0x58] sm:%s198]
                %230 = vst [vmem:[%s206 + $0x58] sm:%s198] %v229
                %v231 = vld [vmem:[%s205 + $0x60] sm:%s198]
                %232 = vst [vmem:[%s206 + $0x60] sm:%s198] %v231
                %v233 = vld [vmem:[%s205 + $0x68] sm:%s198]
                %234 = vst [vmem:[%s206 + $0x68] sm:%s198] %v233
                %v235 = vld [vmem:[%s205 + $0x70] sm:%s198]
                %236 = vst [vmem:[%s206 + $0x70] sm:%s198] %v235
                %v237 = vld [vmem:[%s205 + $0x78] sm:%s198]
                %238 = vst [vmem:[%s206 + $0x78] sm:%s198] %v237
                %v239 = vld [vmem:[%s205 + $0x80] sm:%s198]
                %240 = vst [vmem:[%s206 + $0x80] sm:%s198] %v239
                %v241 = vld [vmem:[%s205 + $0x88] sm:%s198]
                %242 = vst [vmem:[%s206 + $0x88] sm:%s198] %v241
                %v243 = vld [vmem:[%s205 + $0x120] sm:%s198]
                %244 = vst [vmem:[%s206 + $0x90] sm:%s198] %v243
                %v245 = vld [vmem:[%s205 + $0x128] sm:%s198]
                %246 = vst [vmem:[%s206 + $0x98] sm:%s198] %v245
                %v247 = vld [vmem:[%s205 + $0x130] sm:%s198]
                %248 = vst [vmem:[%s206 + $0xa0] sm:%s198] %v247
                %v249 = vld [vmem:[%s205 + $0x138] sm:%s198]
                %250 = vst [vmem:[%s206 + $0xa8] sm:%s198] %v249
                %v251 = vld [vmem:[%s205 + $0x140] sm:%s198]
                %252 = vst [vmem:[%s206 + $0xb0] sm:%s198] %v251
                %v253 = vld [vmem:[%s205 + $0x148] sm:%s198]
                %254 = vst [vmem:[%s206 + $0xb8] sm:%s198] %v253
                %v255 = vld [vmem:[%s205 + $0x150] sm:%s198]
                %256 = vst [vmem:[%s206 + $0xc0] sm:%s198] %v255
                %v257 = vld [vmem:[%s205 + $0x158] sm:%s198]
                %258 = vst [vmem:[%s206 + $0xc8] sm:%s198] %v257
                %v259 = vld [vmem:[%s205 + $0x160] sm:%s198]
                %260 = vst [vmem:[%s206 + $0xd0] sm:%s198] %v259
                %v261 = vld [vmem:[%s205 + $0x168] sm:%s198]
                %262 = vst [vmem:[%s206 + $0xd8] sm:%s198] %v261
                %v263 = vld [vmem:[%s205 + $0x170] sm:%s198]
                %264 = vst [vmem:[%s206 + $0xe0] sm:%s198] %v263
                %v265 = vld [vmem:[%s205 + $0x178] sm:%s198]
                %266 = vst [vmem:[%s206 + $0xe8] sm:%s198] %v265
                %v267 = vld [vmem:[%s205 + $0x180] sm:%s198]
                %268 = vst [vmem:[%s206 + $0xf0] sm:%s198] %v267
                %v269 = vld [vmem:[%s205 + $0x188] sm:%s198]
                %270 = vst [vmem:[%s206 + $0xf8] sm:%s198] %v269
                %v271 = vld [vmem:[%s205 + $0x190] sm:%s198]
                %272 = vst [vmem:[%s206 + $0x100] sm:%s198] %v271
                %v273 = vld [vmem:[%s205 + $0x198] sm:%s198]
                %274 = vst [vmem:[%s206 + $0x108] sm:%s198] %v273
                %v275 = vld [vmem:[%s205 + $0x1a0] sm:%s198]
                %276 = vst [vmem:[%s206 + $0x110] sm:%s198] %v275
                %v277 = vld [vmem:[%s205 + $0x1a8] sm:%s198]
                %278 = vst [vmem:[%s206 + $0x118] sm:%s198] %v277
                %v279 = vld [vmem:[%s205 + $0x240] sm:%s198]
                %280 = vst [vmem:[%s206 + $0x120] sm:%s198] %v279
                %v281 = vld [vmem:[%s205 + $0x248] sm:%s198]
                %282 = vst [vmem:[%s206 + $0x128] sm:%s198] %v281
                %v283 = vld [vmem:[%s205 + $0x250] sm:%s198]
                %284 = vst [vmem:[%s206 + $0x130] sm:%s198] %v283
                %v285 = vld [vmem:[%s205 + $0x258] sm:%s198]
                %286 = vst [vmem:[%s206 + $0x138] sm:%s198] %v285
                %v287 = vld [vmem:[%s205 + $0x260] sm:%s198]
                %288 = vst [vmem:[%s206 + $0x140] sm:%s198] %v287
                %v289 = vld [vmem:[%s205 + $0x268] sm:%s198]
                %290 = vst [vmem:[%s206 + $0x148] sm:%s198] %v289
                %v291 = vld [vmem:[%s205 + $0x270] sm:%s198]
                %292 = vst [vmem:[%s206 + $0x150] sm:%s198] %v291
                %v293 = vld [vmem:[%s205 + $0x278] sm:%s198]
                %294 = vst [vmem:[%s206 + $0x158] sm:%s198] %v293
                %v295 = vld [vmem:[%s205 + $0x280] sm:%s198]
                %296 = vst [vmem:[%s206 + $0x160] sm:%s198] %v295
                %v297 = vld [vmem:[%s205 + $0x288] sm:%s198]
                %298 = vst [vmem:[%s206 + $0x168] sm:%s198] %v297
                %v299 = vld [vmem:[%s205 + $0x290] sm:%s198]
                %300 = vst [vmem:[%s206 + $0x170] sm:%s198] %v299
                %v301 = vld [vmem:[%s205 + $0x298] sm:%s198]
                %302 = vst [vmem:[%s206 + $0x178] sm:%s198] %v301
                %v303 = vld [vmem:[%s205 + $0x2a0] sm:%s198]
                %304 = vst [vmem:[%s206 + $0x180] sm:%s198] %v303
                %v305 = vld [vmem:[%s205 + $0x2a8] sm:%s198]
                %306 = vst [vmem:[%s206 + $0x188] sm:%s198] %v305
                %v307 = vld [vmem:[%s205 + $0x2b0] sm:%s198]
                %308 = vst [vmem:[%s206 + $0x190] sm:%s198] %v307
                %v309 = vld [vmem:[%s205 + $0x2b8] sm:%s198]
                %310 = vst [vmem:[%s206 + $0x198] sm:%s198] %v309
                %v311 = vld [vmem:[%s205 + $0x2c0] sm:%s198]
                %312 = vst [vmem:[%s206 + $0x1a0] sm:%s198] %v311
                %v313 = vld [vmem:[%s205 + $0x2c8] sm:%s198]
                %314 = vst [vmem:[%s206 + $0x1a8] sm:%s198] %v313
                %v315 = vld [vmem:[%s205 + $0x360] sm:%s198]
                %316 = vst [vmem:[%s206 + $0x1b0] sm:%s198] %v315
                %v317 = vld [vmem:[%s205 + $0x368] sm:%s198]
                %318 = vst [vmem:[%s206 + $0x1b8] sm:%s198] %v317
                %v319 = vld [vmem:[%s205 + $0x370] sm:%s198]
                %320 = vst [vmem:[%s206 + $0x1c0] sm:%s198] %v319
                %v321 = vld [vmem:[%s205 + $0x378] sm:%s198]
                %322 = vst [vmem:[%s206 + $0x1c8] sm:%s198] %v321
                %v323 = vld [vmem:[%s205 + $0x380] sm:%s198]
                %324 = vst [vmem:[%s206 + $0x1d0] sm:%s198] %v323
                %v325 = vld [vmem:[%s205 + $0x388] sm:%s198]
                %326 = vst [vmem:[%s206 + $0x1d8] sm:%s198] %v325
                %v327 = vld [vmem:[%s205 + $0x390] sm:%s198]
                %328 = vst [vmem:[%s206 + $0x1e0] sm:%s198] %v327
                %v329 = vld [vmem:[%s205 + $0x398] sm:%s198]
                %330 = vst [vmem:[%s206 + $0x1e8] sm:%s198] %v329
                %v331 = vld [vmem:[%s205 + $0x3a0] sm:%s198]
                %332 = vst [vmem:[%s206 + $0x1f0] sm:%s198] %v331
                %v333 = vld [vmem:[%s205 + $0x3a8] sm:%s198]
                %334 = vst [vmem:[%s206 + $0x1f8] sm:%s198] %v333
                %v335 = vld [vmem:[%s205 + $0x3b0] sm:%s198]
                %336 = vst [vmem:[%s206 + $0x200] sm:%s198] %v335
                %v337 = vld [vmem:[%s205 + $0x3b8] sm:%s198]
                %338 = vst [vmem:[%s206 + $0x208] sm:%s198] %v337
                %v339 = vld [vmem:[%s205 + $0x3c0] sm:%s198]
                %340 = vst [vmem:[%s206 + $0x210] sm:%s198] %v339
                %v341 = vld [vmem:[%s205 + $0x3c8] sm:%s198]
                %342 = vst [vmem:[%s206 + $0x218] sm:%s198] %v341
                %v343 = vld [vmem:[%s205 + $0x3d0] sm:%s198]
                %344 = vst [vmem:[%s206 + $0x220] sm:%s198] %v343
                %v345 = vld [vmem:[%s205 + $0x3d8] sm:%s198]
                %346 = vst [vmem:[%s206 + $0x228] sm:%s198] %v345
                %v347 = vld [vmem:[%s205 + $0x3e0] sm:%s198]
                %348 = vst [vmem:[%s206 + $0x230] sm:%s198] %v347
                %v349 = vld [vmem:[%s205 + $0x3e8] sm:%s198]
                %350 = vst [vmem:[%s206 + $0x238] sm:%s198] %v349
              $region49: #{basic_block_forward.3} parent=43 // loop_footer
                %s204 = sadd.s32 1, %s200
              $region50: #{basic_block_forward.3} parent=43 // loop_footer_branch
                %199 = sbr.rel target = $region46
              $region51: #{basic_block_forward.3} parent=43 // loop_exit
                _
            $region44: #{basic_block_forward.3} parent=35 // pred_fallthru
              _
          $region36: #{basic_block_forward.3} parent=31 // pred_fallthru
            _
          %507 = vnop
        $region32: #{basic_block_forward.3} parent=27 // pred_fallthru
          _
      $region28: #{basic_block_forward.3} parent=5 // pred_fallthru
        _
      %p508 = scmp.le.s32.totalorder 1, %s12
      %p509 = scmp.lt.s32.totalorder %s12, 3
      %p510 = pnand %p508, %p509
      %p511 = pneg %p510
      // Predicated region
      $region67: #{basic_block_forward.3} parent=5 // pred_check
        _
      $region68: #{basic_block_forward.3} parent=5 // pred_check_branch
        %513 = sbr.rel (%p510) target = $region70
      $region69: #{basic_block_forward.3} parent=5 // pred_region
        %s514 = ssub.s32 %s12, 1
        %s515 = sand.u32 %s25, 1
        %s516 = sand.u32 %s25, 1
        %s517 = smul.addr %s516, 576
        %s518 = scalar_lea.vmem [#allocation2], %s517
        // Predicated region
        $region71: #{basic_block_forward.3} parent=69 // pred_check
          %p519 = pneg %p38
        $region72: #{basic_block_forward.3} parent=69 // pred_check_branch
          %521 = sbr.rel (%p519) target = $region74
        $region73: #{basic_block_forward.3} parent=69 // pred_region
          _
        $region74: #{basic_block_forward.3} parent=69 // pred_fallthru
          _
        %s522 = sand.u32 %s25, 1
        %s523 = sand.u32 %s25, 1
        %s524 = smul.addr %s523, 576
        %s525 = scalar_lea.vmem [#allocation2], %s524
        %p526 = pneg %p38
        %p527 = pneg %p35
        %p528 = pneg %p59
        %p529 = pneg %p56
        %p530 = pneg %p80
        %p531 = pneg %p77
        %p532 = pneg %p101
        %p533 = pneg %p98
        %p534 = pneg %p127
        %p535 = pneg %p124
        %p536 = scmp.lt.s32.totalorder %s17, 1
        %s537 = scalar_select %p536, %s17, 1
        %s538 = smul.addr %s537, 8
        %s539 = smul.addr %s538, 8
        %s540 = scalar_lea.vmem %s4, %s539
        %p541 = pneg %p153
        %p542 = pneg %p150
        %p543 = scmp.lt.s32.totalorder %s17, 1
        %s544 = scalar_select %p543, %s17, 1
        %s545 = smul.addr %s544, 2
        %s546 = scalar_lea.vmem %s5, %s545
        %p547 = scmp.lt.s32.totalorder %s17, 1
        %s548 = scalar_select %p547, %s17, 1
        %s549 = smul.addr %s548, 8
        %s550 = smul.addr %s549, 8
        %s551 = scalar_lea.vmem %s4, %s550
        %p552 = scmp.lt.s32.totalorder %s17, 1
        %s553 = scalar_select %p552, %s17, 1
        %s554 = smul.addr %s553, 2
        %s555 = scalar_lea.vmem %s5, %s554
        %v556 = vld [vmem:[%s518] sm:$0xff]
        %v557 = vld [vmem:[%s518 + $0x10] sm:$0xff]
        %v558 = vld [vmem:[%s518 + $0x20] sm:$0xff]
        %v559 = vld [vmem:[%s518 + $0x30] sm:$0xff]
        %v560 = vld [vmem:[%s518 + $0x40] sm:$0xff]
        %v561 = vld [vmem:[%s518 + $0x50] sm:$0xff]
        %v562 = vld [vmem:[%s518 + $0x60] sm:$0xff]
        %v563 = vld [vmem:[%s518 + $0x70] sm:$0xff]
        %v564 = vld [vmem:[%s1] sm:$0xf]
        %s565 = scalar_lea.vmem %s518, 144 [#allocation2]
        %v566 = vld [vmem:[%s565] sm:$0xff]
        %v567 = vld [vmem:[%s565 + $0x10] sm:$0xff]
        %v568 = vld [vmem:[%s565 + $0x20] sm:$0xff]
        %v569 = vld [vmem:[%s565 + $0x30] sm:$0xff]
        %v570 = vld [vmem:[%s565 + $0x40] sm:$0xff]
        %v571 = vld [vmem:[%s565 + $0x50] sm:$0xff]
        %v572 = vld [vmem:[%s565 + $0x60] sm:$0xff]
        %v573 = vld [vmem:[%s565 + $0x70] sm:$0xff]
        %s574 = scalar_lea.vmem %s1, 4
        %v575 = vld [vmem:[%s574] sm:$0xf]
        %vm576 = vcmask 31744
        %v578 = vsel %vm576, %v566, 0
        %v581 = vsel %vm576, %v567, 0
        %v584 = vsel %vm576, %v568, 0
        %v587 = vsel %vm576, %v569, 0
        %v590 = vsel %vm576, %v570, 0
        %v593 = vsel %vm576, %v571, 0
        %v596 = vsel %vm576, %v572, 0
        %v599 = vsel %vm576, %v573, 0
        %vm601 = vcmask 1043456
        %v603 = vsel %vm601, %v575, 0
        %605 = vmatpush.msra.mxu0 0.0
        %606 = vmatpush.msra.mxu0 0.0
        %607 = vmatpush.msra.mxu0 0.0
        %608 = vmatpush.msra.mxu0 0.0
        %609 = vmatpush.msra.mxu0 0.0
        %610 = vmatpush.msra.mxu0 0.0
        %611 = vmatpush.msra.mxu0 0.0
        %612 = vmatpush.msra.mxu0 0.0
        %613 = vmatpush.msra.mxu0 0.0
        %614 = vmatpush.msra.mxu0 0.0
        %615 = vmatpush.msra.mxu0 0.0
        %616 = vmatpush.msra.mxu0 0.0
        %617 = vmatpush.msra.mxu0 0.0
        %618 = vmatpush.msra.mxu0 0.0
        %619 = vmatpush.msra.mxu0 0.0
        %620 = vmatpush.msra.mxu0 %v603
        %621 = vmatmul.f32.gmra.mxu0 %v578
        %v622 = vpop.f32.mrf.mxu0
        %v623 = vadd.f32 0.0, %v622
        %624 = vmatmul.f32.gmra.mxu0 %v581
        %v625 = vpop.f32.mrf.mxu0
        %v626 = vadd.f32 0.0, %v625
        %627 = vmatmul.f32.gmra.mxu0 %v584
        %v628 = vpop.f32.mrf.mxu0
        %v629 = vadd.f32 0.0, %v628
        %630 = vmatmul.f32.gmra.mxu0 %v587
        %v631 = vpop.f32.mrf.mxu0
        %v632 = vadd.f32 0.0, %v631
        %633 = vmatmul.f32.gmra.mxu0 %v590
        %v634 = vpop.f32.mrf.mxu0
        %v635 = vadd.f32 0.0, %v634
        %636 = vmatmul.f32.gmra.mxu0 %v593
        %v637 = vpop.f32.mrf.mxu0
        %v638 = vadd.f32 0.0, %v637
        %639 = vmatmul.f32.gmra.mxu0 %v596
        %v640 = vpop.f32.mrf.mxu0
        %v641 = vadd.f32 0.0, %v640
        %642 = vmatmul.f32.gmra.mxu0 %v599
        %v643 = vpop.f32.mrf.mxu0
        %v644 = vadd.f32 0.0, %v643
        %645 = vdwg.mxu0
        %v647 = vsel %vm576, %v556, 0
        %v650 = vsel %vm576, %v557, 0
        %v653 = vsel %vm576, %v558, 0
        %v656 = vsel %vm576, %v559, 0
        %v659 = vsel %vm576, %v560, 0
        %v662 = vsel %vm576, %v561, 0
        %v665 = vsel %vm576, %v562, 0
        %v668 = vsel %vm576, %v563, 0
        %v671 = vsel %vm601, %v564, 0
        %673 = vmatpush.msra.mxu0 0.0
        %674 = vmatpush.msra.mxu0 0.0
        %675 = vmatpush.msra.mxu0 0.0
        %676 = vmatpush.msra.mxu0 0.0
        %677 = vmatpush.msra.mxu0 0.0
        %678 = vmatpush.msra.mxu0 0.0
        %679 = vmatpush.msra.mxu0 0.0
        %680 = vmatpush.msra.mxu0 0.0
        %681 = vmatpush.msra.mxu0 0.0
        %682 = vmatpush.msra.mxu0 0.0
        %683 = vmatpush.msra.mxu0 0.0
        %684 = vmatpush.msra.mxu0 0.0
        %685 = vmatpush.msra.mxu0 0.0
        %686 = vmatpush.msra.mxu0 0.0
        %687 = vmatpush.msra.mxu0 0.0
        %688 = vmatpush.msra.mxu0 %v671
        %689 = vmatmul.f32.gmra.mxu0 %v647
        %v690 = vpop.f32.mrf.mxu0
        %v691 = vadd.f32 %v623, %v690
        %692 = vmatmul.f32.gmra.mxu0 %v650
        %v693 = vpop.f32.mrf.mxu0
        %v694 = vadd.f32 %v626, %v693
        %695 = vmatmul.f32.gmra.mxu0 %v653
        %v696 = vpop.f32.mrf.mxu0
        %v697 = vadd.f32 %v629, %v696
        %698 = vmatmul.f32.gmra.mxu0 %v656
        %v699 = vpop.f32.mrf.mxu0
        %v700 = vadd.f32 %v632, %v699
        %701 = vmatmul.f32.gmra.mxu0 %v659
        %v702 = vpop.f32.mrf.mxu0
        %v703 = vadd.f32 %v635, %v702
        %704 = vmatmul.f32.gmra.mxu0 %v662
        %v705 = vpop.f32.mrf.mxu0
        %v706 = vadd.f32 %v638, %v705
        %707 = vmatmul.f32.gmra.mxu0 %v665
        %v708 = vpop.f32.mrf.mxu0
        %v709 = vadd.f32 %v641, %v708
        %710 = vmatmul.f32.gmra.mxu0 %v668
        %v711 = vpop.f32.mrf.mxu0
        %v712 = vadd.f32 %v644, %v711
        %713 = vdwg.mxu0
        %v714 = vld [vmem:[%s518 + $0x1] sm:$0xff]
        %v715 = vld [vmem:[%s518 + $0x11] sm:$0xff]
        %v716 = vld [vmem:[%s518 + $0x21] sm:$0xff]
        %v717 = vld [vmem:[%s518 + $0x31] sm:$0xff]
        %v718 = vld [vmem:[%s518 + $0x41] sm:$0xff]
        %v719 = vld [vmem:[%s518 + $0x51] sm:$0xff]
        %v720 = vld [vmem:[%s518 + $0x61] sm:$0xff]
        %v721 = vld [vmem:[%s518 + $0x71] sm:$0xff]
        %s722 = scalar_lea.vmem %s1, 8
        %v723 = vld [vmem:[%s722] sm:$0xf]
        %v725 = vsel %vm576, %v714, 0
        %v728 = vsel %vm576, %v715, 0
        %v731 = vsel %vm576, %v716, 0
        %v734 = vsel %vm576, %v717, 0
        %v737 = vsel %vm576, %v718, 0
        %v740 = vsel %vm576, %v719, 0
        %v743 = vsel %vm576, %v720, 0
        %v746 = vsel %vm576, %v721, 0
        %v749 = vsel %vm601, %v723, 0
        %751 = vmatpush.msra.mxu0 0.0
        %752 = vmatpush.msra.mxu0 0.0
        %753 = vmatpush.msra.mxu0 0.0
        %754 = vmatpush.msra.mxu0 0.0
        %755 = vmatpush.msra.mxu0 0.0
        %756 = vmatpush.msra.mxu0 0.0
        %757 = vmatpush.msra.mxu0 0.0
        %758 = vmatpush.msra.mxu0 0.0
        %759 = vmatpush.msra.mxu0 0.0
        %760 = vmatpush.msra.mxu0 0.0
        %761 = vmatpush.msra.mxu0 0.0
        %762 = vmatpush.msra.mxu0 0.0
        %763 = vmatpush.msra.mxu0 0.0
        %764 = vmatpush.msra.mxu0 0.0
        %765 = vmatpush.msra.mxu0 0.0
        %766 = vmatpush.msra.mxu0 %v749
        %767 = vmatmul.f32.gmra.mxu0 %v725
        %v768 = vpop.f32.mrf.mxu0
        %v769 = vadd.f32 0.0, %v768
        %770 = vmatmul.f32.gmra.mxu0 %v728
        %v771 = vpop.f32.mrf.mxu0
        %v772 = vadd.f32 0.0, %v771
        %773 = vmatmul.f32.gmra.mxu0 %v731
        %v774 = vpop.f32.mrf.mxu0
        %v775 = vadd.f32 0.0, %v774
        %776 = vmatmul.f32.gmra.mxu0 %v734
        %v777 = vpop.f32.mrf.mxu0
        %v778 = vadd.f32 0.0, %v777
        %779 = vmatmul.f32.gmra.mxu0 %v737
        %v780 = vpop.f32.mrf.mxu0
        %v781 = vadd.f32 0.0, %v780
        %782 = vmatmul.f32.gmra.mxu0 %v740
        %v783 = vpop.f32.mrf.mxu0
        %v784 = vadd.f32 0.0, %v783
        %785 = vmatmul.f32.gmra.mxu0 %v743
        %v786 = vpop.f32.mrf.mxu0
        %v787 = vadd.f32 0.0, %v786
        %788 = vmatmul.f32.gmra.mxu0 %v746
        %v789 = vpop.f32.mrf.mxu0
        %v790 = vadd.f32 0.0, %v789
        %791 = vdwg.mxu0
        %v792 = vadd.f32 %v691, %v769
        %v793 = vadd.f32 %v694, %v772
        %v794 = vadd.f32 %v697, %v775
        %v795 = vadd.f32 %v700, %v778
        %v796 = vadd.f32 %v703, %v781
        %v797 = vadd.f32 %v706, %v784
        %v798 = vadd.f32 %v709, %v787
        %v799 = vadd.f32 %v712, %v790
        %s800 = scalar_lea.vmem %s518, 288 [#allocation2]
        %v801 = vld [vmem:[%s800] sm:$0xff]
        %v802 = vld [vmem:[%s800 + $0x10] sm:$0xff]
        %v803 = vld [vmem:[%s800 + $0x20] sm:$0xff]
        %v804 = vld [vmem:[%s800 + $0x30] sm:$0xff]
        %v805 = vld [vmem:[%s800 + $0x40] sm:$0xff]
        %v806 = vld [vmem:[%s800 + $0x50] sm:$0xff]
        %v807 = vld [vmem:[%s800 + $0x60] sm:$0xff]
        %v808 = vld [vmem:[%s800 + $0x70] sm:$0xff]
        %s809 = scalar_lea.vmem %s1, 12
        %v810 = vld [vmem:[%s809] sm:$0xf]
        %v812 = vsel %vm576, %v801, 0
        %v815 = vsel %vm576, %v802, 0
        %v818 = vsel %vm576, %v803, 0
        %v821 = vsel %vm576, %v804, 0
        %v824 = vsel %vm576, %v805, 0
        %v827 = vsel %vm576, %v806, 0
        %v830 = vsel %vm576, %v807, 0
        %v833 = vsel %vm576, %v808, 0
        %v836 = vsel %vm601, %v810, 0
        %838 = vmatpush.msra.mxu0 0.0
        %839 = vmatpush.msra.mxu0 0.0
        %840 = vmatpush.msra.mxu0 0.0
        %841 = vmatpush.msra.mxu0 0.0
        %842 = vmatpush.msra.mxu0 0.0
        %843 = vmatpush.msra.mxu0 0.0
        %844 = vmatpush.msra.mxu0 0.0
        %845 = vmatpush.msra.mxu0 0.0
        %846 = vmatpush.msra.mxu0 0.0
        %847 = vmatpush.msra.mxu0 0.0
        %848 = vmatpush.msra.mxu0 0.0
        %849 = vmatpush.msra.mxu0 0.0
        %850 = vmatpush.msra.mxu0 0.0
        %851 = vmatpush.msra.mxu0 0.0
        %852 = vmatpush.msra.mxu0 0.0
        %853 = vmatpush.msra.mxu0 %v836
        %854 = vmatmul.f32.gmra.mxu0 %v812
        %v855 = vpop.f32.mrf.mxu0
        %v856 = vadd.f32 0.0, %v855
        %857 = vmatmul.f32.gmra.mxu0 %v815
        %v858 = vpop.f32.mrf.mxu0
        %v859 = vadd.f32 0.0, %v858
        %860 = vmatmul.f32.gmra.mxu0 %v818
        %v861 = vpop.f32.mrf.mxu0
        %v862 = vadd.f32 0.0, %v861
        %863 = vmatmul.f32.gmra.mxu0 %v821
        %v864 = vpop.f32.mrf.mxu0
        %v865 = vadd.f32 0.0, %v864
        %866 = vmatmul.f32.gmra.mxu0 %v824
        %v867 = vpop.f32.mrf.mxu0
        %v868 = vadd.f32 0.0, %v867
        %869 = vmatmul.f32.gmra.mxu0 %v827
        %v870 = vpop.f32.mrf.mxu0
        %v871 = vadd.f32 0.0, %v870
        %872 = vmatmul.f32.gmra.mxu0 %v830
        %v873 = vpop.f32.mrf.mxu0
        %v874 = vadd.f32 0.0, %v873
        %875 = vmatmul.f32.gmra.mxu0 %v833
        %v876 = vpop.f32.mrf.mxu0
        %v877 = vadd.f32 0.0, %v876
        %878 = vdwg.mxu0
        %v879 = vadd.f32 %v792, %v856
        %v880 = vadd.f32 %v793, %v859
        %v881 = vadd.f32 %v794, %v862
        %v882 = vadd.f32 %v795, %v865
        %v883 = vadd.f32 %v796, %v868
        %v884 = vadd.f32 %v797, %v871
        %v885 = vadd.f32 %v798, %v874
        %v886 = vadd.f32 %v799, %v877
        %s887 = scalar_lea.vmem %s518, 432 [#allocation2]
        %v888 = vld [vmem:[%s887] sm:$0xff]
        %v889 = vld [vmem:[%s887 + $0x10] sm:$0xff]
        %v890 = vld [vmem:[%s887 + $0x20] sm:$0xff]
        %v891 = vld [vmem:[%s887 + $0x30] sm:$0xff]
        %v892 = vld [vmem:[%s887 + $0x40] sm:$0xff]
        %v893 = vld [vmem:[%s887 + $0x50] sm:$0xff]
        %v894 = vld [vmem:[%s887 + $0x60] sm:$0xff]
        %v895 = vld [vmem:[%s887 + $0x70] sm:$0xff]
        %s896 = scalar_lea.vmem %s1, 16
        %v897 = vld [vmem:[%s896] sm:$0xf]
        %v899 = vsel %vm576, %v888, 0
        %v902 = vsel %vm576, %v889, 0
        %v905 = vsel %vm576, %v890, 0
        %v908 = vsel %vm576, %v891, 0
        %v911 = vsel %vm576, %v892, 0
        %v914 = vsel %vm576, %v893, 0
        %v917 = vsel %vm576, %v894, 0
        %v920 = vsel %vm576, %v895, 0
        %v923 = vsel %vm601, %v897, 0
        %925 = vmatpush.msra.mxu0 0.0
        %926 = vmatpush.msra.mxu0 0.0
        %927 = vmatpush.msra.mxu0 0.0
        %928 = vmatpush.msra.mxu0 0.0
        %929 = vmatpush.msra.mxu0 0.0
        %930 = vmatpush.msra.mxu0 0.0
        %931 = vmatpush.msra.mxu0 0.0
        %932 = vmatpush.msra.mxu0 0.0
        %933 = vmatpush.msra.mxu0 0.0
        %934 = vmatpush.msra.mxu0 0.0
        %935 = vmatpush.msra.mxu0 0.0
        %936 = vmatpush.msra.mxu0 0.0
        %937 = vmatpush.msra.mxu0 0.0
        %938 = vmatpush.msra.mxu0 0.0
        %939 = vmatpush.msra.mxu0 0.0
        %940 = vmatpush.msra.mxu0 %v923
        %941 = vmatmul.f32.gmra.mxu0 %v899
        %v942 = vpop.f32.mrf.mxu0
        %v943 = vadd.f32 0.0, %v942
        %944 = vmatmul.f32.gmra.mxu0 %v902
        %v945 = vpop.f32.mrf.mxu0
        %v946 = vadd.f32 0.0, %v945
        %947 = vmatmul.f32.gmra.mxu0 %v905
        %v948 = vpop.f32.mrf.mxu0
        %v949 = vadd.f32 0.0, %v948
        %950 = vmatmul.f32.gmra.mxu0 %v908
        %v951 = vpop.f32.mrf.mxu0
        %v952 = vadd.f32 0.0, %v951
        %953 = vmatmul.f32.gmra.mxu0 %v911
        %v954 = vpop.f32.mrf.mxu0
        %v955 = vadd.f32 0.0, %v954
        %956 = vmatmul.f32.gmra.mxu0 %v914
        %v957 = vpop.f32.mrf.mxu0
        %v958 = vadd.f32 0.0, %v957
        %959 = vmatmul.f32.gmra.mxu0 %v917
        %v960 = vpop.f32.mrf.mxu0
        %v961 = vadd.f32 0.0, %v960
        %962 = vmatmul.f32.gmra.mxu0 %v920
        %v963 = vpop.f32.mrf.mxu0
        %v964 = vadd.f32 0.0, %v963
        %965 = vdwg.mxu0
        %v966 = vadd.f32 %v879, %v943
        %v967 = vadd.f32 %v880, %v946
        %v968 = vadd.f32 %v881, %v949
        %v969 = vadd.f32 %v882, %v952
        %v970 = vadd.f32 %v883, %v955
        %v971 = vadd.f32 %v884, %v958
        %v972 = vadd.f32 %v885, %v961
        %v973 = vadd.f32 %v886, %v964
        %v974 = vld [vmem:[%s800 + $0x1] sm:$0xff]
        %v975 = vld [vmem:[%s800 + $0x11] sm:$0xff]
        %v976 = vld [vmem:[%s800 + $0x21] sm:$0xff]
        %v977 = vld [vmem:[%s800 + $0x31] sm:$0xff]
        %v978 = vld [vmem:[%s800 + $0x41] sm:$0xff]
        %v979 = vld [vmem:[%s800 + $0x51] sm:$0xff]
        %v980 = vld [vmem:[%s800 + $0x61] sm:$0xff]
        %v981 = vld [vmem:[%s800 + $0x71] sm:$0xff]
        %s982 = scalar_lea.vmem %s1, 20
        %v983 = vld [vmem:[%s982] sm:$0xf]
        %v985 = vsel %vm576, %v974, 0
        %v988 = vsel %vm576, %v975, 0
        %v991 = vsel %vm576, %v976, 0
        %v994 = vsel %vm576, %v977, 0
        %v997 = vsel %vm576, %v978, 0
        %v1000 = vsel %vm576, %v979, 0
        %v1003 = vsel %vm576, %v980, 0
        %v1006 = vsel %vm576, %v981, 0
        %v1009 = vsel %vm601, %v983, 0
        %1011 = vmatpush.msra.mxu0 0.0
        %1012 = vmatpush.msra.mxu0 0.0
        %1013 = vmatpush.msra.mxu0 0.0
        %1014 = vmatpush.msra.mxu0 0.0
        %1015 = vmatpush.msra.mxu0 0.0
        %1016 = vmatpush.msra.mxu0 0.0
        %1017 = vmatpush.msra.mxu0 0.0
        %1018 = vmatpush.msra.mxu0 0.0
        %1019 = vmatpush.msra.mxu0 0.0
        %1020 = vmatpush.msra.mxu0 0.0
        %1021 = vmatpush.msra.mxu0 0.0
        %1022 = vmatpush.msra.mxu0 0.0
        %1023 = vmatpush.msra.mxu0 0.0
        %1024 = vmatpush.msra.mxu0 0.0
        %1025 = vmatpush.msra.mxu0 0.0
        %1026 = vmatpush.msra.mxu0 %v1009
        %1027 = vmatmul.f32.gmra.mxu0 %v985
        %v1028 = vpop.f32.mrf.mxu0
        %v1029 = vadd.f32 0.0, %v1028
        %1030 = vmatmul.f32.gmra.mxu0 %v988
        %v1031 = vpop.f32.mrf.mxu0
        %v1032 = vadd.f32 0.0, %v1031
        %1033 = vmatmul.f32.gmra.mxu0 %v991
        %v1034 = vpop.f32.mrf.mxu0
        %v1035 = vadd.f32 0.0, %v1034
        %1036 = vmatmul.f32.gmra.mxu0 %v994
        %v1037 = vpop.f32.mrf.mxu0
        %v1038 = vadd.f32 0.0, %v1037
        %1039 = vmatmul.f32.gmra.mxu0 %v997
        %v1040 = vpop.f32.mrf.mxu0
        %v1041 = vadd.f32 0.0, %v1040
        %1042 = vmatmul.f32.gmra.mxu0 %v1000
        %v1043 = vpop.f32.mrf.mxu0
        %v1044 = vadd.f32 0.0, %v1043
        %1045 = vmatmul.f32.gmra.mxu0 %v1003
        %v1046 = vpop.f32.mrf.mxu0
        %v1047 = vadd.f32 0.0, %v1046
        %1048 = vmatmul.f32.gmra.mxu0 %v1006
        %v1049 = vpop.f32.mrf.mxu0
        %v1050 = vadd.f32 0.0, %v1049
        %1051 = vdwg.mxu0
        %v1052 = vadd.f32 %v966, %v1029
        %v1053 = vadd.f32 %v967, %v1032
        %v1054 = vadd.f32 %v968, %v1035
        %v1055 = vadd.f32 %v969, %v1038
        %v1056 = vadd.f32 %v970, %v1041
        %v1057 = vadd.f32 %v971, %v1044
        %v1058 = vadd.f32 %v972, %v1047
        %v1059 = vadd.f32 %v973, %v1050
        %s1060 = scalar_lea.vmem %s518, 16 [#allocation2]
        %v1061 = vld [vmem:[%s1060] sm:$0xff]
        %v1062 = vld [vmem:[%s1060 + $0x10] sm:$0xff]
        %v1063 = vld [vmem:[%s1060 + $0x20] sm:$0xff]
        %v1064 = vld [vmem:[%s1060 + $0x30] sm:$0xff]
        %v1065 = vld [vmem:[%s1060 + $0x40] sm:$0xff]
        %v1066 = vld [vmem:[%s1060 + $0x50] sm:$0xff]
        %v1067 = vld [vmem:[%s1060 + $0x60] sm:$0xff]
        %v1068 = vld [vmem:[%s1060 + $0x70] sm:$0xff]
        %s1069 = scalar_lea.vmem %s1, 24
        %v1070 = vld [vmem:[%s1069] sm:$0xf]
        %v1072 = vsel %vm576, %v1061, 0
        %v1075 = vsel %vm576, %v1062, 0
        %v1078 = vsel %vm576, %v1063, 0
        %v1081 = vsel %vm576, %v1064, 0
        %v1084 = vsel %vm576, %v1065, 0
        %v1087 = vsel %vm576, %v1066, 0
        %v1090 = vsel %vm576, %v1067, 0
        %v1093 = vsel %vm576, %v1068, 0
        %v1096 = vsel %vm601, %v1070, 0
        %1098 = vmatpush.msra.mxu0 0.0
        %1099 = vmatpush.msra.mxu0 0.0
        %1100 = vmatpush.msra.mxu0 0.0
        %1101 = vmatpush.msra.mxu0 0.0
        %1102 = vmatpush.msra.mxu0 0.0
        %1103 = vmatpush.msra.mxu0 0.0
        %1104 = vmatpush.msra.mxu0 0.0
        %1105 = vmatpush.msra.mxu0 0.0
        %1106 = vmatpush.msra.mxu0 0.0
        %1107 = vmatpush.msra.mxu0 0.0
        %1108 = vmatpush.msra.mxu0 0.0
        %1109 = vmatpush.msra.mxu0 0.0
        %1110 = vmatpush.msra.mxu0 0.0
        %1111 = vmatpush.msra.mxu0 0.0
        %1112 = vmatpush.msra.mxu0 0.0
        %1113 = vmatpush.msra.mxu0 %v1096
        %1114 = vmatmul.f32.gmra.mxu0 %v1072
        %v1115 = vpop.f32.mrf.mxu0
        %v1116 = vadd.f32 0.0, %v1115
        %1117 = vmatmul.f32.gmra.mxu0 %v1075
        %v1118 = vpop.f32.mrf.mxu0
        %v1119 = vadd.f32 0.0, %v1118
        %1120 = vmatmul.f32.gmra.mxu0 %v1078
        %v1121 = vpop.f32.mrf.mxu0
        %v1122 = vadd.f32 0.0, %v1121
        %1123 = vmatmul.f32.gmra.mxu0 %v1081
        %v1124 = vpop.f32.mrf.mxu0
        %v1125 = vadd.f32 0.0, %v1124
        %1126 = vmatmul.f32.gmra.mxu0 %v1084
        %v1127 = vpop.f32.mrf.mxu0
        %v1128 = vadd.f32 0.0, %v1127
        %1129 = vmatmul.f32.gmra.mxu0 %v1087
        %v1130 = vpop.f32.mrf.mxu0
        %v1131 = vadd.f32 0.0, %v1130
        %1132 = vmatmul.f32.gmra.mxu0 %v1090
        %v1133 = vpop.f32.mrf.mxu0
        %v1134 = vadd.f32 0.0, %v1133
        %1135 = vmatmul.f32.gmra.mxu0 %v1093
        %v1136 = vpop.f32.mrf.mxu0
        %v1137 = vadd.f32 0.0, %v1136
        %1138 = vdwg.mxu0
        %v1139 = vadd.f32 %v1052, %v1116
        %v1140 = vadd.f32 %v1053, %v1119
        %v1141 = vadd.f32 %v1054, %v1122
        %v1142 = vadd.f32 %v1055, %v1125
        %v1143 = vadd.f32 %v1056, %v1128
        %v1144 = vadd.f32 %v1057, %v1131
        %v1145 = vadd.f32 %v1058, %v1134
        %v1146 = vadd.f32 %v1059, %v1137
        %s1147 = scalar_lea.vmem %s518, 160 [#allocation2]
        %v1148 = vld [vmem:[%s1147] sm:$0xff]
        %v1149 = vld [vmem:[%s1147 + $0x10] sm:$0xff]
        %v1150 = vld [vmem:[%s1147 + $0x20] sm:$0xff]
        %v1151 = vld [vmem:[%s1147 + $0x30] sm:$0xff]
        %v1152 = vld [vmem:[%s1147 + $0x40] sm:$0xff]
        %v1153 = vld [vmem:[%s1147 + $0x50] sm:$0xff]
        %v1154 = vld [vmem:[%s1147 + $0x60] sm:$0xff]
        %v1155 = vld [vmem:[%s1147 + $0x70] sm:$0xff]
        %s1156 = scalar_lea.vmem %s1, 28
        %v1157 = vld [vmem:[%s1156] sm:$0xf]
        %v1159 = vsel %vm576, %v1148, 0
        %v1162 = vsel %vm576, %v1149, 0
        %v1165 = vsel %vm576, %v1150, 0
        %v1168 = vsel %vm576, %v1151, 0
        %v1171 = vsel %vm576, %v1152, 0
        %v1174 = vsel %vm576, %v1153, 0
        %v1177 = vsel %vm576, %v1154, 0
        %v1180 = vsel %vm576, %v1155, 0
        %v1183 = vsel %vm601, %v1157, 0
        %1185 = vmatpush.msra.mxu0 0.0
        %1186 = vmatpush.msra.mxu0 0.0
        %1187 = vmatpush.msra.mxu0 0.0
        %1188 = vmatpush.msra.mxu0 0.0
        %1189 = vmatpush.msra.mxu0 0.0
        %1190 = vmatpush.msra.mxu0 0.0
        %1191 = vmatpush.msra.mxu0 0.0
        %1192 = vmatpush.msra.mxu0 0.0
        %1193 = vmatpush.msra.mxu0 0.0
        %1194 = vmatpush.msra.mxu0 0.0
        %1195 = vmatpush.msra.mxu0 0.0
        %1196 = vmatpush.msra.mxu0 0.0
        %1197 = vmatpush.msra.mxu0 0.0
        %1198 = vmatpush.msra.mxu0 0.0
        %1199 = vmatpush.msra.mxu0 0.0
        %1200 = vmatpush.msra.mxu0 %v1183
        %1201 = vmatmul.f32.gmra.mxu0 %v1159
        %v1202 = vpop.f32.mrf.mxu0
        %v1203 = vadd.f32 0.0, %v1202
        %1204 = vmatmul.f32.gmra.mxu0 %v1162
        %v1205 = vpop.f32.mrf.mxu0
        %v1206 = vadd.f32 0.0, %v1205
        %1207 = vmatmul.f32.gmra.mxu0 %v1165
        %v1208 = vpop.f32.mrf.mxu0
        %v1209 = vadd.f32 0.0, %v1208
        %1210 = vmatmul.f32.gmra.mxu0 %v1168
        %v1211 = vpop.f32.mrf.mxu0
        %v1212 = vadd.f32 0.0, %v1211
        %1213 = vmatmul.f32.gmra.mxu0 %v1171
        %v1214 = vpop.f32.mrf.mxu0
        %v1215 = vadd.f32 0.0, %v1214
        %1216 = vmatmul.f32.gmra.mxu0 %v1174
        %v1217 = vpop.f32.mrf.mxu0
        %v1218 = vadd.f32 0.0, %v1217
        %1219 = vmatmul.f32.gmra.mxu0 %v1177
        %v1220 = vpop.f32.mrf.mxu0
        %v1221 = vadd.f32 0.0, %v1220
        %1222 = vmatmul.f32.gmra.mxu0 %v1180
        %v1223 = vpop.f32.mrf.mxu0
        %v1224 = vadd.f32 0.0, %v1223
        %1225 = vdwg.mxu0
        %v1226 = vadd.f32 %v1139, %v1203
        %v1227 = vadd.f32 %v1140, %v1206
        %v1228 = vadd.f32 %v1141, %v1209
        %v1229 = vadd.f32 %v1142, %v1212
        %v1230 = vadd.f32 %v1143, %v1215
        %v1231 = vadd.f32 %v1144, %v1218
        %v1232 = vadd.f32 %v1145, %v1221
        %v1233 = vadd.f32 %v1146, %v1224
        %v1234 = vld [vmem:[%s1060 + $0x1] sm:$0xff]
        %v1235 = vld [vmem:[%s1060 + $0x11] sm:$0xff]
        %v1236 = vld [vmem:[%s1060 + $0x21] sm:$0xff]
        %v1237 = vld [vmem:[%s1060 + $0x31] sm:$0xff]
        %v1238 = vld [vmem:[%s1060 + $0x41] sm:$0xff]
        %v1239 = vld [vmem:[%s1060 + $0x51] sm:$0xff]
        %v1240 = vld [vmem:[%s1060 + $0x61] sm:$0xff]
        %v1241 = vld [vmem:[%s1060 + $0x71] sm:$0xff]
        %s1242 = scalar_lea.vmem %s1, 32
        %v1243 = vld [vmem:[%s1242] sm:$0xf]
        %v1245 = vsel %vm576, %v1234, 0
        %v1248 = vsel %vm576, %v1235, 0
        %v1251 = vsel %vm576, %v1236, 0
        %v1254 = vsel %vm576, %v1237, 0
        %v1257 = vsel %vm576, %v1238, 0
        %v1260 = vsel %vm576, %v1239, 0
        %v1263 = vsel %vm576, %v1240, 0
        %v1266 = vsel %vm576, %v1241, 0
        %v1269 = vsel %vm601, %v1243, 0
        %1271 = vmatpush.msra.mxu0 0.0
        %1272 = vmatpush.msra.mxu0 0.0
        %1273 = vmatpush.msra.mxu0 0.0
        %1274 = vmatpush.msra.mxu0 0.0
        %1275 = vmatpush.msra.mxu0 0.0
        %1276 = vmatpush.msra.mxu0 0.0
        %1277 = vmatpush.msra.mxu0 0.0
        %1278 = vmatpush.msra.mxu0 0.0
        %1279 = vmatpush.msra.mxu0 0.0
        %1280 = vmatpush.msra.mxu0 0.0
        %1281 = vmatpush.msra.mxu0 0.0
        %1282 = vmatpush.msra.mxu0 0.0
        %1283 = vmatpush.msra.mxu0 0.0
        %1284 = vmatpush.msra.mxu0 0.0
        %1285 = vmatpush.msra.mxu0 0.0
        %1286 = vmatpush.msra.mxu0 %v1269
        %1287 = vmatmul.f32.gmra.mxu0 %v1245
        %v1288 = vpop.f32.mrf.mxu0
        %v1289 = vadd.f32 0.0, %v1288
        %1290 = vmatmul.f32.gmra.mxu0 %v1248
        %v1291 = vpop.f32.mrf.mxu0
        %v1292 = vadd.f32 0.0, %v1291
        %1293 = vmatmul.f32.gmra.mxu0 %v1251
        %v1294 = vpop.f32.mrf.mxu0
        %v1295 = vadd.f32 0.0, %v1294
        %1296 = vmatmul.f32.gmra.mxu0 %v1254
        %v1297 = vpop.f32.mrf.mxu0
        %v1298 = vadd.f32 0.0, %v1297
        %1299 = vmatmul.f32.gmra.mxu0 %v1257
        %v1300 = vpop.f32.mrf.mxu0
        %v1301 = vadd.f32 0.0, %v1300
        %1302 = vmatmul.f32.gmra.mxu0 %v1260
        %v1303 = vpop.f32.mrf.mxu0
        %v1304 = vadd.f32 0.0, %v1303
        %1305 = vmatmul.f32.gmra.mxu0 %v1263
        %v1306 = vpop.f32.mrf.mxu0
        %v1307 = vadd.f32 0.0, %v1306
        %1308 = vmatmul.f32.gmra.mxu0 %v1266
        %v1309 = vpop.f32.mrf.mxu0
        %v1310 = vadd.f32 0.0, %v1309
        %1311 = vdwg.mxu0
        %v1312 = vadd.f32 %v1226, %v1289
        %v1313 = vadd.f32 %v1227, %v1292
        %v1314 = vadd.f32 %v1228, %v1295
        %v1315 = vadd.f32 %v1229, %v1298
        %v1316 = vadd.f32 %v1230, %v1301
        %v1317 = vadd.f32 %v1231, %v1304
        %v1318 = vadd.f32 %v1232, %v1307
        %v1319 = vadd.f32 %v1233, %v1310
        %vm1320 = vcmask 64512
        %1321 = vst.msk [vmem:[%s551] sm:$0xff] %vm1320, %v1312
        %1322 = vst.msk [vmem:[%s551 + $0x8] sm:$0xff] %vm1320, %v1313
        %1323 = vst.msk [vmem:[%s551 + $0x10] sm:$0xff] %vm1320, %v1314
        %1324 = vst.msk [vmem:[%s551 + $0x18] sm:$0xff] %vm1320, %v1315
        %1325 = vst.msk [vmem:[%s551 + $0x20] sm:$0xff] %vm1320, %v1316
        %1326 = vst.msk [vmem:[%s551 + $0x28] sm:$0xff] %vm1320, %v1317
        %1327 = vst.msk [vmem:[%s551 + $0x30] sm:$0xff] %vm1320, %v1318
        %1328 = vst.msk [vmem:[%s551 + $0x38] sm:$0xff] %vm1320, %v1319
        %v1329 = vsel %vm1320, %v1312, 0.0
        %v1330 = vsel %vm1320, %v1313, 0.0
        %v1331 = vadd.f32 %v1329, %v1330
        %v1332 = vsel %vm1320, %v1314, 0.0
        %v1333 = vadd.f32 %v1331, %v1332
        %v1334 = vsel %vm1320, %v1315, 0.0
        %v1335 = vadd.f32 %v1333, %v1334
        %v1336 = vsel %vm1320, %v1316, 0.0
        %v1337 = vadd.f32 %v1335, %v1336
        %v1338 = vsel %vm1320, %v1317, 0.0
        %v1339 = vadd.f32 %v1337, %v1338
        %v1340 = vsel %vm1320, %v1318, 0.0
        %v1341 = vadd.f32 %v1339, %v1340
        %v1342 = vsel %vm1320, %v1319, 0.0
        %v1343 = vadd.f32 %v1341, %v1342
        %v1344 = vrot.slane %v1343, 4
        %v1345 = vadd.f32 %v1343, %v1344
        %v1346 = vrot.slane %v1345, 2
        %v1347 = vadd.f32 %v1345, %v1346
        %v1348 = vrot.slane %v1347, 1
        %v1349 = vadd.f32 %v1347, %v1348
        %vm1350 = vcmask 57344
        %1351 = vst.msk [vmem:[%s555] sm:$0x1] %vm1350, %v1349
        %v1352 = vmul.f32 %v1312, %v1312
        %v1353 = vmul.f32 %v1313, %v1313
        %v1354 = vmul.f32 %v1314, %v1314
        %v1355 = vmul.f32 %v1315, %v1315
        %v1356 = vmul.f32 %v1316, %v1316
        %v1357 = vmul.f32 %v1317, %v1317
        %v1358 = vmul.f32 %v1318, %v1318
        %v1359 = vmul.f32 %v1319, %v1319
        %v1360 = vsel %vm1320, %v1352, 0.0
        %v1361 = vsel %vm1320, %v1353, 0.0
        %v1362 = vadd.f32 %v1360, %v1361
        %v1363 = vsel %vm1320, %v1354, 0.0
        %v1364 = vadd.f32 %v1362, %v1363
        %v1365 = vsel %vm1320, %v1355, 0.0
        %v1366 = vadd.f32 %v1364, %v1365
        %v1367 = vsel %vm1320, %v1356, 0.0
        %v1368 = vadd.f32 %v1366, %v1367
        %v1369 = vsel %vm1320, %v1357, 0.0
        %v1370 = vadd.f32 %v1368, %v1369
        %v1371 = vsel %vm1320, %v1358, 0.0
        %v1372 = vadd.f32 %v1370, %v1371
        %v1373 = vsel %vm1320, %v1359, 0.0
        %v1374 = vadd.f32 %v1372, %v1373
        %v1375 = vrot.slane %v1374, 4
        %v1376 = vadd.f32 %v1374, %v1375
        %v1377 = vrot.slane %v1376, 2
        %v1378 = vadd.f32 %v1376, %v1377
        %v1379 = vrot.slane %v1378, 1
        %v1380 = vadd.f32 %v1378, %v1379
        %1381 = vst.msk [vmem:[%s555 + $0x1] sm:$0x1] %vm1350, %v1380
        %p1382 = scmp.lt.s32.totalorder %s17, 1
        %s1383 = scalar_select %p1382, %s17, 1
        %s1384 = smul.addr %s1383, 8
        %s1385 = smul.addr %s1384, 8
        %s1386 = scalar_lea.vmem %s4, %s1385
        %p1387 = scmp.lt.s32.totalorder %s17, 1
        %s1388 = scalar_select %p1387, %s17, 1
        %s1389 = smul.addr %s1388, 2
        %s1390 = scalar_lea.vmem %s5, %s1389
        // Predicated region
        $region75: #{basic_block_forward.3} parent=69 // pred_check
          %p1391 = pneg %p124
        $region76: #{basic_block_forward.3} parent=69 // pred_check_branch
          %1393 = sbr.rel (%p1391) target = $region78
        $region77: #{basic_block_forward.3} parent=69 // pred_region
          _
        $region78: #{basic_block_forward.3} parent=69 // pred_fallthru
          _
        // Predicated region
        $region79: #{basic_block_forward.3} parent=69 // pred_check
          %p1394 = pneg %p150
        $region80: #{basic_block_forward.3} parent=69 // pred_check_branch
          %1396 = sbr.rel (%p1394) target = $region82
        $region81: #{basic_block_forward.3} parent=69 // pred_region
          _
        $region82: #{basic_block_forward.3} parent=69 // pred_fallthru
          _
      $region70: #{basic_block_forward.3} parent=5 // pred_fallthru
        _
      %p1397 = scmp.le.s32.totalorder 2, %s12
      // Predicated region
      $region83: #{basic_block_forward.3} parent=5 // pred_check
        %p1398 = pneg %p1397
      $region84: #{basic_block_forward.3} parent=5 // pred_check_branch
        %1400 = sbr.rel (%p1398) target = $region86
      $region85: #{basic_block_forward.3} parent=5 // pred_region
        %s1401 = ssub.s32 %s12, 2
        // Predicated region
        $region87: #{basic_block_forward.3} parent=85 // pred_check
          %p1402 = pneg %p130
        $region88: #{basic_block_forward.3} parent=85 // pred_check_branch
          %1404 = sbr.rel (%p1402) target = $region90
        $region89: #{basic_block_forward.3} parent=85 // pred_region
          %p1405 = scmp.lt.s32.totalorder %s18, 1
          %s1406 = scalar_select %p1405, %s18, 1
          %s1407 = smul.addr %s1406, 8
          %s1408 = smul.addr %s1407, 8
          %s1409 = scalar_lea.vmem %s4, %s1408
        $region90: #{basic_block_forward.3} parent=85 // pred_fallthru
          _
        // Predicated region
        $region91: #{basic_block_forward.3} parent=85 // pred_check
          %p1410 = pneg %p156
        $region92: #{basic_block_forward.3} parent=85 // pred_check_branch
          %1412 = sbr.rel (%p1410) target = $region94
        $region93: #{basic_block_forward.3} parent=85 // pred_region
          %p1413 = scmp.lt.s32.totalorder %s18, 1
          %s1414 = scalar_select %p1413, %s18, 1
          %s1415 = smul.addr %s1414, 2
          %s1416 = scalar_lea.vmem %s5, %s1415
        $region94: #{basic_block_forward.3} parent=85 // pred_fallthru
          _
      $region86: #{basic_block_forward.3} parent=5 // pred_fallthru
        _
    $region6: #{basic_block_forward.3} parent=1 // loop_footer
      %s16 = sadd.s32 1, %s12
    $region7: #{basic_block_forward.3} parent=1 // loop_footer_branch
      %11 = sbr.rel target = $region3
    $region8: #{basic_block_forward.3} parent=1 // loop_exit
      _

// kernel: basic_block_forward.4
$region0: #{basic_block_forward.4}
  #allocation0 [shape = 'u32[]', space=smem, size = 0x4, offset = 0x4, fixed_abs, tag = 'smem constant byte address 0x4 - core index']
  #allocation1 [shape = 'u32[72,128]{1,0:T(1,128)}', space=vmem, size = 0x9000, scoped, tag = 'internal scratch']
  %s0 = inlined_call_operand.vmem [shape: f32[1,2,10,10,8], index: 0, kind: input, shape index: {}]
  %s1 = inlined_call_operand.vmem [shape: f32[9,8,8], index: 1, kind: input, shape index: {}]
  %s2 = inlined_call_operand.vmem [shape: f32[1,8], index: 2, kind: input, shape index: {}]
  %s3 = inlined_call_operand.vmem [shape: f32[1,8], index: 3, kind: input, shape index: {}]
  %s4 = inlined_call_operand.vmem [shape: f32[2,8,8,8], index: 4, kind: output, shape index: {0}]
  %s5 = inlined_call_operand.vmem [shape: f32[2,2,8], index: 5, kind: output, shape index: {1}]
  %6 = xla_tuple %s4, %s5
  %s7 = sld [smem:[#allocation0]]
  $region57: #{basic_block_forward.4} parent=0
    _
  %s9 = ssub.s32 1, %s7
  %s10 = scalar_select 0, %s9, %s7
  loop: start=0, step=1, limit=4
  $region2: #{basic_block_forward.4} parent=0 // loop_pre_header
    _
  $region3: #{basic_block_forward.4} parent=0 // loop_header
    %s12 = sphi 0, %s16
    %p13 = scmp.ge.s32.totalorder %s12, 4
    %s22 = sphi 0, %s24
    %s25 = sphi 0, %s22
    %s26 = sphi 0, %s25
    %s42 = sphi 0, %s26
    %s46 = sphi 0, %s46
    %s48 = sphi 0, %s46
    %s49 = sphi 0, %s48
    %s63 = sphi 0, %s49
    %s67 = sphi 0, %s67
    %s69 = sphi 0, %s67
    %s70 = sphi 0, %s69
    %s84 = sphi 0, %s70
    %s88 = sphi 0, %s88
    %s90 = sphi 0, %s88
    %s91 = sphi 0, %s90
    %s105 = sphi 0, %s91
    %s111 = sphi 0, %s113
    %s114 = sphi 0, %s111
    %s115 = sphi 0, %s114
    %s131 = sphi 0, %s115
    %s137 = sphi 0, %s139
    %s140 = sphi 0, %s137
    %s141 = sphi 0, %s140
    %s157 = sphi 0, %s141
  $region4: #{basic_block_forward.4} parent=0 // loop_header_branch
    %15 = sbr.rel (%p13) target = $region8
  $region5: #{basic_block_forward.4} parent=0 // loop_body
    %s17 = ssub.s32 %s12, 1
    %s18 = ssub.s32 %s12, 2
    %s19 = sadd.s32 %s12, 1
    %s20 = ssub.s32 %s12, %s19
    %p21 = scmp.eq.s32.totalorder %s20, 0
    %s23 = sadd.s32 %s22, 1
    %s24 = scalar_select %p21, %s22, %s23
    %p27 = pneg %p21
    %p28 = scmp.eq.s32.totalorder %s12, 1
    %p29 = por %p27, %p28
    %p30 = scmp.ne.s32.totalorder %s22, %s25
    %p31 = scmp.eq.s32.totalorder %s12, 0
    %p32 = por %p30, %p31
    %p33 = scmp.ne.s32.totalorder %s22, %s25
    %p34 = scmp.eq.s32.totalorder %s17, 1
    %p35 = por %p33, %p34
    %p36 = scmp.ne.s32.totalorder %s25, %s26
    %p37 = scmp.eq.s32.totalorder %s17, 0
    %p38 = por %p36, %p37
    %p39 = scmp.ne.s32.totalorder %s25, %s26
    %p40 = scmp.eq.s32.totalorder %s18, 1
    %p41 = por %p39, %p40
    %p43 = scmp.ne.s32.totalorder %s26, %s42
    %p44 = scmp.eq.s32.totalorder %s18, 0
    %p45 = por %p43, %p44
    %s47 = sadd.s32 %s46, 1
    %p50 = scmp.eq.s32.totalorder %s12, 1
    %p51 = scmp.ne.s32.totalorder %s46, %s48
    %p52 = scmp.eq.s32.totalorder %s12, 0
    %p53 = por %p51, %p52
    %p54 = scmp.ne.s32.totalorder %s46, %s48
    %p55 = scmp.eq.s32.totalorder %s17, 1
    %p56 = por %p54, %p55
    %p57 = scmp.ne.s32.totalorder %s48, %s49
    %p58 = scmp.eq.s32.totalorder %s17, 0
    %p59 = por %p57, %p58
    %p60 = scmp.ne.s32.totalorder %s48, %s49
    %p61 = scmp.eq.s32.totalorder %s18, 1
    %p62 = por %p60, %p61
    %p64 = scmp.ne.s32.totalorder %s49, %s63
    %p65 = scmp.eq.s32.totalorder %s18, 0
    %p66 = por %p64, %p65
    %s68 = sadd.s32 %s67, 1
    %p71 = scmp.eq.s32.totalorder %s12, 1
    %p72 = scmp.ne.s32.totalorder %s67, %s69
    %p73 = scmp.eq.s32.totalorder %s12, 0
    %p74 = por %p72, %p73
    %p75 = scmp.ne.s32.totalorder %s67, %s69
    %p76 = scmp.eq.s32.totalorder %s17, 1
    %p77 = por %p75, %p76
    %p78 = scmp.ne.s32.totalorder %s69, %s70
    %p79 = scmp.eq.s32.totalorder %s17, 0
    %p80 = por %p78, %p79
    %p81 = scmp.ne.s32.totalorder %s69, %s70
    %p82 = scmp.eq.s32.totalorder %s18, 1
    %p83 = por %p81, %p82
    %p85 = scmp.ne.s32.totalorder %s70, %s84
    %p86 = scmp.eq.s32.totalorder %s18, 0
    %p87 = por %p85, %p86
    %s89 = sadd.s32 %s88, 1
    %p92 = scmp.eq.s32.totalorder %s12, 1
    %p93 = scmp.ne.s32.totalorder %s88, %s90
    %p94 = scmp.eq.s32.totalorder %s12, 0
    %p95 = por %p93, %p94
    %p96 = scmp.ne.s32.totalorder %s88, %s90
    %p97 = scmp.eq.s32.totalorder %s17, 1
    %p98 = por %p96, %p97
    %p99 = scmp.ne.s32.totalorder %s90, %s91
    %p100 = scmp.eq.s32.totalorder %s17, 0
    %p101 = por %p99, %p100
    %p102 = scmp.ne.s32.totalorder %s90, %s91
    %p103 = scmp.eq.s32.totalorder %s18, 1
    %p104 = por %p102, %p103
    %p106 = scmp.ne.s32.totalorder %s91, %s105
    %p107 = scmp.eq.s32.totalorder %s18, 0
    %p108 = por %p106, %p107
    %s109 = ssub.s32 %s12, %s19
    %p110 = scmp.eq.s32.totalorder %s109, 0
    %s112 = sadd.s32 %s111, 1
    %s113 = scalar_select %p110, %s111, %s112
    %p116 = pneg %p110
    %p117 = scmp.eq.s32.totalorder %s12, 1
    %p118 = por %p116, %p117
    %p119 = scmp.ne.s32.totalorder %s111, %s114
    %p120 = scmp.eq.s32.totalorder %s12, 0
    %p121 = por %p119, %p120
    %p122 = scmp.ne.s32.totalorder %s111, %s114
    %p123 = scmp.eq.s32.totalorder %s17, 1
    %p124 = por %p122, %p123
    %p125 = scmp.ne.s32.totalorder %s114, %s115
    %p126 = scmp.eq.s32.totalorder %s17, 0
    %p127 = por %p125, %p126
    %p128 = scmp.ne.s32.totalorder %s114, %s115
    %p129 = scmp.eq.s32.totalorder %s18, 1
    %p130 = por %p128, %p129
    %p132 = scmp.ne.s32.totalorder %s115, %s131
    %p133 = scmp.eq.s32.totalorder %s18, 0
    %p134 = por %p132, %p133
    %s135 = ssub.s32 %s12, %s19
    %p136 = scmp.eq.s32.totalorder %s135, 0
    %s138 = sadd.s32 %s137, 1
    %s139 = scalar_select %p136, %s137, %s138
    %p142 = pneg %p136
    %p143 = scmp.eq.s32.totalorder %s12, 1
    %p144 = por %p142, %p143
    %p145 = scmp.ne.s32.totalorder %s137, %s140
    %p146 = scmp.eq.s32.totalorder %s12, 0
    %p147 = por %p145, %p146
    %p148 = scmp.ne.s32.totalorder %s137, %s140
    %p149 = scmp.eq.s32.totalorder %s17, 1
    %p150 = por %p148, %p149
    %p151 = scmp.ne.s32.totalorder %s140, %s141
    %p152 = scmp.eq.s32.totalorder %s17, 0
    %p153 = por %p151, %p152
    %p154 = scmp.ne.s32.totalorder %s140, %s141
    %p155 = scmp.eq.s32.totalorder %s18, 1
    %p156 = por %p154, %p155
    %p158 = scmp.ne.s32.totalorder %s141, %s157
    %p159 = scmp.eq.s32.totalorder %s18, 0
    %p160 = por %p158, %p159
    %p161 = scmp.le.s32.totalorder 1, %s12
    %p162 = scmp.lt.s32.totalorder %s12, 3
    %p163 = pnand %p161, %p162
    %p164 = pneg %p163
    // Predicated region
    $region9: #{basic_block_forward.4} parent=5 // pred_check
      _
    $region10: #{basic_block_forward.4} parent=5 // pred_check_branch
      %166 = sbr.rel (%p163) target = $region12
    $region11: #{basic_block_forward.4} parent=5 // pred_region
      %s167 = ssub.s32 %s12, 1
      // Predicated region
      $region13: #{basic_block_forward.4} parent=11 // pred_check
        %p168 = pneg %p59
      $region14: #{basic_block_forward.4} parent=11 // pred_check_branch
        %170 = sbr.rel (%p168) target = $region16
      $region15: #{basic_block_forward.4} parent=11 // pred_region
        _
      $region16: #{basic_block_forward.4} parent=11 // pred_fallthru
        _
      // Predicated region
      $region17: #{basic_block_forward.4} parent=11 // pred_check
        %p171 = pneg %p80
      $region18: #{basic_block_forward.4} parent=11 // pred_check_branch
        %173 = sbr.rel (%p171) target = $region20
      $region19: #{basic_block_forward.4} parent=11 // pred_region
        _
      $region20: #{basic_block_forward.4} parent=11 // pred_fallthru
        _
      // Predicated region
      $region21: #{basic_block_forward.4} parent=11 // pred_check
        %p174 = pneg %p101
      $region22: #{basic_block_forward.4} parent=11 // pred_check_branch
        %176 = sbr.rel (%p174) target = $region24
      $region23: #{basic_block_forward.4} parent=11 // pred_region
        _
      $region24: #{basic_block_forward.4} parent=11 // pred_fallthru
        _
    $region12: #{basic_block_forward.4} parent=5 // pred_fallthru
      _
    %p177 = scmp.lt.s32.totalorder %s12, 2
    // Predicated region
    $region25: #{basic_block_forward.4} parent=5 // pred_check
      %p178 = pneg %p177
    $region26: #{basic_block_forward.4} parent=5 // pred_check_branch
      %180 = sbr.rel (%p178) target = $region28
    $region27: #{basic_block_forward.4} parent=5 // pred_region
      // Predicated region
      $region29: #{basic_block_forward.4} parent=27 // pred_check
        %p181 = pneg %p32
      $region30: #{basic_block_forward.4} parent=27 // pred_check_branch
        %183 = sbr.rel (%p181) target = $region32
      $region31: #{basic_block_forward.4} parent=27 // pred_region
        %p184 = scmp.lt.s32.totalorder %s12, 1
        %s185 = scalar_select %p184, %s12, 1
        %s186 = smul.addr %s185, 20
        %s187 = smul.addr %s186, 8
        %s188 = scalar_lea.vmem %s0, %s187
      $region32: #{basic_block_forward.4} parent=27 // pred_fallthru
        _
    $region28: #{basic_block_forward.4} parent=5 // pred_fallthru
      _
    %p189 = scmp.le.s32.totalorder 1, %s12
    %p190 = scmp.lt.s32.totalorder %s12, 3
    %p191 = pnand %p189, %p190
    %p192 = pneg %p191
    // Predicated region
    $region33: #{basic_block_forward.4} parent=5 // pred_check
      _
    $region34: #{basic_block_forward.4} parent=5 // pred_check_branch
      %194 = sbr.rel (%p191) target = $region36
    $region35: #{basic_block_forward.4} parent=5 // pred_region
      %s195 = ssub.s32 %s12, 1
      %p196 = scmp.lt.s32.totalorder %s17, 1
      %s197 = scalar_select %p196, %s17, 1
      %s198 = smul.addr %s197, 20
      %s199 = smul.addr %s198, 8
      %s200 = scalar_lea.vmem %s0, %s199
      %p201 = pneg %p38
      %p202 = pneg %p35
      %p203 = pneg %p59
      %p204 = pneg %p56
      %p205 = pneg %p80
      %p206 = pneg %p77
      %p207 = pneg %p101
      %p208 = pneg %p98
      %p209 = pneg %p127
      %p210 = pneg %p124
      %p211 = scmp.lt.s32.totalorder %s17, 1
      %s212 = scalar_select %p211, %s17, 1
      %s213 = smul.addr %s212, 8
      %s214 = smul.addr %s213, 8
      %s215 = scalar_lea.vmem %s4, %s214
      %p216 = pneg %p153
      %p217 = pneg %p150
      %p218 = scmp.lt.s32.totalorder %s17, 1
      %s219 = scalar_select %p218, %s17, 1
      %s220 = smul.addr %s219, 2
      %s221 = scalar_lea.vmem %s5, %s220
      %p222 = scmp.lt.s32.totalorder %s17, 1
      %s223 = scalar_select %p222, %s17, 1
      %s224 = smul.addr %s223, 20
      %s225 = smul.addr %s224, 8
      %s226 = scalar_lea.vmem %s0, %s225
      %p227 = scmp.lt.s32.totalorder %s17, 1
      %s228 = scalar_select %p227, %s17, 1
      %s229 = smul.addr %s228, 8
      %s230 = smul.addr %s229, 8
      %s231 = scalar_lea.vmem %s4, %s230
      %p232 = scmp.lt.s32.totalorder %s17, 1
      %s233 = scalar_select %p232, %s17, 1
      %s234 = smul.addr %s233, 2
      %s235 = scalar_lea.vmem %s5, %s234
      %v236 = vld [vmem:[%s226] sm:$0xff]
      %v237 = vld [vmem:[%s226 + $0x8] sm:$0x3]
      %v238 = vld [vmem:[%s226 + $0x10] sm:$0xff]
      %v239 = vld [vmem:[%s226 + $0x18] sm:$0x3]
      %v240 = vld [vmem:[%s226 + $0x20] sm:$0xff]
      %v241 = vld [vmem:[%s226 + $0x28] sm:$0x3]
      %v242 = vld [vmem:[%s226 + $0x30] sm:$0xff]
      %v243 = vld [vmem:[%s226 + $0x38] sm:$0x3]
      %v244 = vld [vmem:[%s226 + $0x40] sm:$0xff]
      %v245 = vld [vmem:[%s226 + $0x48] sm:$0x3]
      %v246 = vld [vmem:[%s226 + $0x50] sm:$0xff]
      %v247 = vld [vmem:[%s226 + $0x58] sm:$0x3]
      %v248 = vld [vmem:[%s226 + $0x60] sm:$0xff]
      %v249 = vld [vmem:[%s226 + $0x68] sm:$0x3]
      %v250 = vld [vmem:[%s226 + $0x70] sm:$0xff]
      %v251 = vld [vmem:[%s226 + $0x78] sm:$0x3]
      %v252 = vld [vmem:[%s226 + $0x80] sm:$0xff]
      %v253 = vld [vmem:[%s226 + $0x88] sm:$0x3]
      %v254 = vld [vmem:[%s226 + $0x90] sm:$0xff]
      %v255 = vld [vmem:[%s226 + $0x98] sm:$0x3]
      %v256 = vld [vmem:[%s2] sm:$0x1]
      %v258 = vperm.slane %v256, 0
      %v260 = vmul.f32 %v236, %v258
      %v261 = vmul.f32 %v237, %v258
      %v262 = vmul.f32 %v238, %v258
      %v263 = vmul.f32 %v239, %v258
      %v264 = vmul.f32 %v240, %v258
      %v265 = vmul.f32 %v241, %v258
      %v266 = vmul.f32 %v242, %v258
      %v267 = vmul.f32 %v243, %v258
      %v268 = vmul.f32 %v244, %v258
      %v269 = vmul.f32 %v245, %v258
      %v270 = vmul.f32 %v246, %v258
      %v271 = vmul.f32 %v247, %v258
      %v272 = vmul.f32 %v248, %v258
      %v273 = vmul.f32 %v249, %v258
      %v274 = vmul.f32 %v250, %v258
      %v275 = vmul.f32 %v251, %v258
      %v276 = vmul.f32 %v252, %v258
      %v277 = vmul.f32 %v253, %v258
      %v278 = vmul.f32 %v254, %v258
      %v279 = vmul.f32 %v255, %v258
      %v280 = vld [vmem:[%s3] sm:$0x1]
      %v282 = vperm.slane %v280, 0
      %v284 = vadd.f32 %v260, %v282
      %v285 = vadd.f32 %v261, %v282
      %v286 = vadd.f32 %v262, %v282
      %v287 = vadd.f32 %v263, %v282
      %v288 = vadd.f32 %v264, %v282
      %v289 = vadd.f32 %v265, %v282
      %v290 = vadd.f32 %v266, %v282
      %v291 = vadd.f32 %v267, %v282
      %v292 = vadd.f32 %v268, %v282
      %v293 = vadd.f32 %v269, %v282
      %v294 = vadd.f32 %v270, %v282
      %v295 = vadd.f32 %v271, %v282
      %v296 = vadd.f32 %v272, %v282
      %v297 = vadd.f32 %v273, %v282
      %v298 = vadd.f32 %v274, %v282
      %v299 = vadd.f32 %v275, %v282
      %v300 = vadd.f32 %v276, %v282
      %v301 = vadd.f32 %v277, %v282
      %v302 = vadd.f32 %v278, %v282
      %v303 = vadd.f32 %v279, %v282
      %v304 = vmax.f32 %v284, 0.0
      %v305 = vmax.f32 %v285, 0.0
      %v306 = vmax.f32 %v286, 0.0
      %v307 = vmax.f32 %v287, 0.0
      %v308 = vmax.f32 %v288, 0.0
      %v309 = vmax.f32 %v289, 0.0
      %v310 = vmax.f32 %v290, 0.0
      %v311 = vmax.f32 %v291, 0.0
      %v312 = vmax.f32 %v292, 0.0
      %v313 = vmax.f32 %v293, 0.0
      %v314 = vmax.f32 %v294, 0.0
      %v315 = vmax.f32 %v295, 0.0
      %v316 = vmax.f32 %v296, 0.0
      %v317 = vmax.f32 %v297, 0.0
      %v318 = vmax.f32 %v298, 0.0
      %v319 = vmax.f32 %v299, 0.0
      %v320 = vmax.f32 %v300, 0.0
      %v321 = vmax.f32 %v301, 0.0
      %v322 = vmax.f32 %v302, 0.0
      %v323 = vmax.f32 %v303, 0.0
      %v324 = vlaneseq
      %v325 = vshrl.u32 %v324, 7
      %v326 = vadd.s32 %v325, 8
      %v327 = vlaneseq
      %v328 = vand.u32 %v327, 127
      %vm329 = vcmp.ge.s32.totalorder %v325, 1
      %vm330 = vcmp.ge.s32.totalorder %v326, 1
      %vm331 = vcmp.lt.s32.totalorder %v325, 9
      %vm332 = vcmp.lt.s32.totalorder %v326, 9
      %vm333 = vmand %vm329, %vm331
      %vm334 = vmand %vm330, %vm332
      %vm335 = vcmp.ge.s32.totalorder %v328, 1
      %vm336 = vmand %vm333, %vm335
      %vm337 = vmand %vm334, %vm335
      %vm338 = vcmp.lt.s32.totalorder %v328, 9
      %vm339 = vmand %vm336, %vm338
      %vm340 = vmand %vm337, %vm338
      %v341 = vsel %vm339, 1, 0
      %v342 = vsel %vm340, 1, 0
      %v343 = vcvt.s32.f32 %v341
      %v344 = vcvt.s32.f32 %v342
      %v345 = vperm.slane %v343, 0
      %v346 = vlaneseq
      %v347 = vshrl.u32 %v346, 7
      %349 = vset.pattern.permute.xlu0 %v347
      %350 = vperm.xlu0 %349, %v345
      %v351 = vpop.permute.xlu0 %350
      %v352 = vlaneseq
      %v353 = vshrl.u32 %v352, 7
      %v354 = vadd.s32 %v353, 8
      %355 = vset.pattern.permute.xlu0 %v354
      %356 = vperm.xlu0 %355, %v345
      %v357 = vpop.permute.xlu0 %356
      %v358 = vperm.slane %v343, 1
      %v359 = vlaneseq
      %v360 = vshrl.u32 %v359, 7
      %362 = vset.pattern.permute.xlu0 %v360
      %363 = vperm.xlu0 %362, %v358
      %v364 = vpop.permute.xlu0 %363
      %v365 = vlaneseq
      %v366 = vshrl.u32 %v365, 7
      %v367 = vadd.s32 %v366, 8
      %368 = vset.pattern.permute.xlu0 %v367
      %369 = vperm.xlu0 %368, %v358
      %v370 = vpop.permute.xlu0 %369
      %v371 = vperm.slane %v343, 2
      %v372 = vlaneseq
      %v373 = vshrl.u32 %v372, 7
      %375 = vset.pattern.permute.xlu0 %v373
      %376 = vperm.xlu0 %375, %v371
      %v377 = vpop.permute.xlu0 %376
      %v378 = vlaneseq
      %v379 = vshrl.u32 %v378, 7
      %v380 = vadd.s32 %v379, 8
      %381 = vset.pattern.permute.xlu0 %v380
      %382 = vperm.xlu0 %381, %v371
      %v383 = vpop.permute.xlu0 %382
      %v384 = vperm.slane %v343, 3
      %v385 = vlaneseq
      %v386 = vshrl.u32 %v385, 7
      %388 = vset.pattern.permute.xlu0 %v386
      %389 = vperm.xlu0 %388, %v384
      %v390 = vpop.permute.xlu0 %389
      %v391 = vlaneseq
      %v392 = vshrl.u32 %v391, 7
      %v393 = vadd.s32 %v392, 8
      %394 = vset.pattern.permute.xlu0 %v393
      %395 = vperm.xlu0 %394, %v384
      %v396 = vpop.permute.xlu0 %395
      %v397 = vperm.slane %v343, 4
      %v398 = vlaneseq
      %v399 = vshrl.u32 %v398, 7
      %401 = vset.pattern.permute.xlu0 %v399
      %402 = vperm.xlu0 %401, %v397
      %v403 = vpop.permute.xlu0 %402
      %v404 = vlaneseq
      %v405 = vshrl.u32 %v404, 7
      %v406 = vadd.s32 %v405, 8
      %407 = vset.pattern.permute.xlu0 %v406
      %408 = vperm.xlu0 %407, %v397
      %v409 = vpop.permute.xlu0 %408
      %v410 = vperm.slane %v343, 5
      %v411 = vlaneseq
      %v412 = vshrl.u32 %v411, 7
      %414 = vset.pattern.permute.xlu0 %v412
      %415 = vperm.xlu0 %414, %v410
      %v416 = vpop.permute.xlu0 %415
      %v417 = vlaneseq
      %v418 = vshrl.u32 %v417, 7
      %v419 = vadd.s32 %v418, 8
      %420 = vset.pattern.permute.xlu0 %v419
      %421 = vperm.xlu0 %420, %v410
      %v422 = vpop.permute.xlu0 %421
      %v423 = vperm.slane %v343, 6
      %v424 = vlaneseq
      %v425 = vshrl.u32 %v424, 7
      %427 = vset.pattern.permute.xlu0 %v425
      %428 = vperm.xlu0 %427, %v423
      %v429 = vpop.permute.xlu0 %428
      %v430 = vlaneseq
      %v431 = vshrl.u32 %v430, 7
      %v432 = vadd.s32 %v431, 8
      %433 = vset.pattern.permute.xlu0 %v432
      %434 = vperm.xlu0 %433, %v423
      %v435 = vpop.permute.xlu0 %434
      %v436 = vperm.slane %v343, 7
      %v437 = vlaneseq
      %v438 = vshrl.u32 %v437, 7
      %440 = vset.pattern.permute.xlu0 %v438
      %441 = vperm.xlu0 %440, %v436
      %v442 = vpop.permute.xlu0 %441
      %v443 = vlaneseq
      %v444 = vshrl.u32 %v443, 7
      %v445 = vadd.s32 %v444, 8
      %446 = vset.pattern.permute.xlu0 %v445
      %447 = vperm.xlu0 %446, %v436
      %v448 = vpop.permute.xlu0 %447
      %v449 = vperm.slane %v344, 0
      %v450 = vlaneseq
      %v451 = vshrl.u32 %v450, 7
      %453 = vset.pattern.permute.xlu0 %v451
      %454 = vperm.xlu0 %453, %v449
      %v455 = vpop.permute.xlu0 %454
      %v456 = vlaneseq
      %v457 = vshrl.u32 %v456, 7
      %v458 = vadd.s32 %v457, 8
      %459 = vset.pattern.permute.xlu0 %v458
      %460 = vperm.xlu0 %459, %v449
      %v461 = vpop.permute.xlu0 %460
      %v462 = vperm.slane %v344, 1
      %v463 = vlaneseq
      %v464 = vshrl.u32 %v463, 7
      %466 = vset.pattern.permute.xlu0 %v464
      %467 = vperm.xlu0 %466, %v462
      %v468 = vpop.permute.xlu0 %467
      %v469 = vlaneseq
      %v470 = vshrl.u32 %v469, 7
      %v471 = vadd.s32 %v470, 8
      %472 = vset.pattern.permute.xlu0 %v471
      %473 = vperm.xlu0 %472, %v462
      %v474 = vpop.permute.xlu0 %473
      %v475 = vmul.f32 %v304, %v351
      %v476 = vmul.f32 %v305, %v357
      %v477 = vmul.f32 %v306, %v364
      %v478 = vmul.f32 %v307, %v370
      %v479 = vmul.f32 %v308, %v377
      %v480 = vmul.f32 %v309, %v383
      %v481 = vmul.f32 %v310, %v390
      %v482 = vmul.f32 %v311, %v396
      %v483 = vmul.f32 %v312, %v403
      %v484 = vmul.f32 %v313, %v409
      %v485 = vmul.f32 %v314, %v416
      %v486 = vmul.f32 %v315, %v422
      %v487 = vmul.f32 %v316, %v429
      %v488 = vmul.f32 %v317, %v435
      %v489 = vmul.f32 %v318, %v442
      %v490 = vmul.f32 %v319, %v448
      %v491 = vmul.f32 %v320, %v455
      %v492 = vmul.f32 %v321, %v461
      %v493 = vmul.f32 %v322, %v468
      %v494 = vmul.f32 %v323, %v474
      %v495 = vld [vmem:[%s1] sm:$0xff]
      %vm512 = vcmask 1046528
      %v513 = vrot.slane %v475, 1
      %v514 = vrot.slane %v476, 1
      %v515 = vsel %vm512, %v513, %v514
      %v516 = vrot.slane %v477, 1
      %v517 = vrot.slane %v478, 1
      %v518 = vsel %vm512, %v516, %v517
      %v519 = vrot.slane %v479, 1
      %v520 = vrot.slane %v480, 1
      %v521 = vsel %vm512, %v519, %v520
      %v522 = vrot.slane %v481, 1
      %v523 = vrot.slane %v482, 1
      %v524 = vsel %vm512, %v522, %v523
      %v525 = vrot.slane %v483, 1
      %v526 = vrot.slane %v484, 1
      %v527 = vsel %vm512, %v525, %v526
      %v528 = vrot.slane %v485, 1
      %v529 = vrot.slane %v486, 1
      %v530 = vsel %vm512, %v528, %v529
      %v531 = vrot.slane %v487, 1
      %v532 = vrot.slane %v488, 1
      %v533 = vsel %vm512, %v531, %v532
      %v534 = vrot.slane %v489, 1
      %v535 = vrot.slane %v490, 1
      %v536 = vsel %vm512, %v534, %v535
      %s537 = scalar_lea.vmem %s1, 8
      %v538 = vld [vmem:[%s537] sm:$0xff]
      %vm539 = vcmask 64512
      %v540 = vsel %vm539, %v515, 0
      %v542 = vsel %vm539, %v518, 0
      %v544 = vsel %vm539, %v521, 0
      %v546 = vsel %vm539, %v524, 0
      %v548 = vsel %vm539, %v527, 0
      %v550 = vsel %vm539, %v530, 0
      %v552 = vsel %vm539, %v533, 0
      %v554 = vsel %vm539, %v536, 0
      %556 = vmatpush.msra.mxu0 0.0
      %557 = vmatpush.msra.mxu0 0.0
      %558 = vmatpush.msra.mxu0 0.0
      %559 = vmatpush.msra.mxu0 0.0
      %560 = vmatpush.msra.mxu0 0.0
      %561 = vmatpush.msra.mxu0 0.0
      %562 = vmatpush.msra.mxu0 0.0
      %563 = vmatpush.msra.mxu0 0.0
      %564 = vmatpush.msra.mxu0 0.0
      %565 = vmatpush.msra.mxu0 0.0
      %566 = vmatpush.msra.mxu0 0.0
      %567 = vmatpush.msra.mxu0 0.0
      %568 = vmatpush.msra.mxu0 0.0
      %569 = vmatpush.msra.mxu0 0.0
      %570 = vmatpush.msra.mxu0 0.0
      %571 = vmatpush.msra.mxu0 %v538
      %572 = vmatmul.f32.gmra.mxu0 %v540
      %v573 = vpop.f32.mrf.mxu0
      %v574 = vadd.f32 0.0, %v573
      %575 = vmatmul.f32.gmra.mxu0 %v542
      %v576 = vpop.f32.mrf.mxu0
      %v577 = vadd.f32 0.0, %v576
      %578 = vmatmul.f32.gmra.mxu0 %v544
      %v579 = vpop.f32.mrf.mxu0
      %v580 = vadd.f32 0.0, %v579
      %581 = vmatmul.f32.gmra.mxu0 %v546
      %v582 = vpop.f32.mrf.mxu0
      %v583 = vadd.f32 0.0, %v582
      %584 = vmatmul.f32.gmra.mxu0 %v548
      %v585 = vpop.f32.mrf.mxu0
      %v586 = vadd.f32 0.0, %v585
      %587 = vmatmul.f32.gmra.mxu0 %v550
      %v588 = vpop.f32.mrf.mxu0
      %v589 = vadd.f32 0.0, %v588
      %590 = vmatmul.f32.gmra.mxu0 %v552
      %v591 = vpop.f32.mrf.mxu0
      %v592 = vadd.f32 0.0, %v591
      %593 = vmatmul.f32.gmra.mxu0 %v554
      %v594 = vpop.f32.mrf.mxu0
      %v595 = vadd.f32 0.0, %v594
      %596 = vdwg.mxu0
      %v597 = vsel %vm539, %v475, 0
      %v599 = vsel %vm539, %v477, 0
      %v601 = vsel %vm539, %v479, 0
      %v603 = vsel %vm539, %v481, 0
      %v605 = vsel %vm539, %v483, 0
      %v607 = vsel %vm539, %v485, 0
      %v609 = vsel %vm539, %v487, 0
      %v611 = vsel %vm539, %v489, 0
      %613 = vmatpush.msra.mxu0 0.0
      %614 = vmatpush.msra.mxu0 0.0
      %615 = vmatpush.msra.mxu0 0.0
      %616 = vmatpush.msra.mxu0 0.0
      %617 = vmatpush.msra.mxu0 0.0
      %618 = vmatpush.msra.mxu0 0.0
      %619 = vmatpush.msra.mxu0 0.0
      %620 = vmatpush.msra.mxu0 0.0
      %621 = vmatpush.msra.mxu0 0.0
      %622 = vmatpush.msra.mxu0 0.0
      %623 = vmatpush.msra.mxu0 0.0
      %624 = vmatpush.msra.mxu0 0.0
      %625 = vmatpush.msra.mxu0 0.0
      %626 = vmatpush.msra.mxu0 0.0
      %627 = vmatpush.msra.mxu0 0.0
      %628 = vmatpush.msra.mxu0 %v495
      %629 = vmatmul.f32.gmra.mxu0 %v597
      %v630 = vpop.f32.mrf.mxu0
      %v631 = vadd.f32 %v574, %v630
      %632 = vmatmul.f32.gmra.mxu0 %v599
      %v633 = vpop.f32.mrf.mxu0
      %v634 = vadd.f32 %v577, %v633
      %635 = vmatmul.f32.gmra.mxu0 %v601
      %v636 = vpop.f32.mrf.mxu0
      %v637 = vadd.f32 %v580, %v636
      %638 = vmatmul.f32.gmra.mxu0 %v603
      %v639 = vpop.f32.mrf.mxu0
      %v640 = vadd.f32 %v583, %v639
      %641 = vmatmul.f32.gmra.mxu0 %v605
      %v642 = vpop.f32.mrf.mxu0
      %v643 = vadd.f32 %v586, %v642
      %644 = vmatmul.f32.gmra.mxu0 %v607
      %v645 = vpop.f32.mrf.mxu0
      %v646 = vadd.f32 %v589, %v645
      %647 = vmatmul.f32.gmra.mxu0 %v609
      %v648 = vpop.f32.mrf.mxu0
      %v649 = vadd.f32 %v592, %v648
      %650 = vmatmul.f32.gmra.mxu0 %v611
      %v651 = vpop.f32.mrf.mxu0
      %v652 = vadd.f32 %v595, %v651
      %653 = vdwg.mxu0
      %vm654 = vcmask 1045504
      %v655 = vrot.slane %v475, 2
      %v656 = vrot.slane %v476, 2
      %v657 = vsel %vm654, %v655, %v656
      %v658 = vrot.slane %v477, 2
      %v659 = vrot.slane %v478, 2
      %v660 = vsel %vm654, %v658, %v659
      %v661 = vrot.slane %v479, 2
      %v662 = vrot.slane %v480, 2
      %v663 = vsel %vm654, %v661, %v662
      %v664 = vrot.slane %v481, 2
      %v665 = vrot.slane %v482, 2
      %v666 = vsel %vm654, %v664, %v665
      %v667 = vrot.slane %v483, 2
      %v668 = vrot.slane %v484, 2
      %v669 = vsel %vm654, %v667, %v668
      %v670 = vrot.slane %v485, 2
      %v671 = vrot.slane %v486, 2
      %v672 = vsel %vm654, %v670, %v671
      %v673 = vrot.slane %v487, 2
      %v674 = vrot.slane %v488, 2
      %v675 = vsel %vm654, %v673, %v674
      %v676 = vrot.slane %v489, 2
      %v677 = vrot.slane %v490, 2
      %v678 = vsel %vm654, %v676, %v677
      %s679 = scalar_lea.vmem %s1, 16
      %v680 = vld [vmem:[%s679] sm:$0xff]
      %v681 = vsel %vm539, %v657, 0
      %v683 = vsel %vm539, %v660, 0
      %v685 = vsel %vm539, %v663, 0
      %v687 = vsel %vm539, %v666, 0
      %v689 = vsel %vm539, %v669, 0
      %v691 = vsel %vm539, %v672, 0
      %v693 = vsel %vm539, %v675, 0
      %v695 = vsel %vm539, %v678, 0
      %697 = vmatpush.msra.mxu0 0.0
      %698 = vmatpush.msra.mxu0 0.0
      %699 = vmatpush.msra.mxu0 0.0
      %700 = vmatpush.msra.mxu0 0.0
      %701 = vmatpush.msra.mxu0 0.0
      %702 = vmatpush.msra.mxu0 0.0
      %703 = vmatpush.msra.mxu0 0.0
      %704 = vmatpush.msra.mxu0 0.0
      %705 = vmatpush.msra.mxu0 0.0
      %706 = vmatpush.msra.mxu0 0.0
      %707 = vmatpush.msra.mxu0 0.0
      %708 = vmatpush.msra.mxu0 0.0
      %709 = vmatpush.msra.mxu0 0.0
      %710 = vmatpush.msra.mxu0 0.0
      %711 = vmatpush.msra.mxu0 0.0
      %712 = vmatpush.msra.mxu0 %v680
      %713 = vmatmul.f32.gmra.mxu0 %v681
      %v714 = vpop.f32.mrf.mxu0
      %v715 = vadd.f32 0.0, %v714
      %716 = vmatmul.f32.gmra.mxu0 %v683
      %v717 = vpop.f32.mrf.mxu0
      %v718 = vadd.f32 0.0, %v717
      %719 = vmatmul.f32.gmra.mxu0 %v685
      %v720 = vpop.f32.mrf.mxu0
      %v721 = vadd.f32 0.0, %v720
      %722 = vmatmul.f32.gmra.mxu0 %v687
      %v723 = vpop.f32.mrf.mxu0
      %v724 = vadd.f32 0.0, %v723
      %725 = vmatmul.f32.gmra.mxu0 %v689
      %v726 = vpop.f32.mrf.mxu0
      %v727 = vadd.f32 0.0, %v726
      %728 = vmatmul.f32.gmra.mxu0 %v691
      %v729 = vpop.f32.mrf.mxu0
      %v730 = vadd.f32 0.0, %v729
      %731 = vmatmul.f32.gmra.mxu0 %v693
      %v732 = vpop.f32.mrf.mxu0
      %v733 = vadd.f32 0.0, %v732
      %734 = vmatmul.f32.gmra.mxu0 %v695
      %v735 = vpop.f32.mrf.mxu0
      %v736 = vadd.f32 0.0, %v735
      %737 = vdwg.mxu0
      %v738 = vadd.f32 %v631, %v715
      %v739 = vadd.f32 %v634, %v718
      %v740 = vadd.f32 %v637, %v721
      %v741 = vadd.f32 %v640, %v724
      %v742 = vadd.f32 %v643, %v727
      %v743 = vadd.f32 %v646, %v730
      %v744 = vadd.f32 %v649, %v733
      %v745 = vadd.f32 %v652, %v736
      %s746 = scalar_lea.vmem %s1, 24
      %v747 = vld [vmem:[%s746] sm:$0xff]
      %v749 = vsel %vm539, %v491, 0
      %751 = vmatpush.msra.mxu0 0.0
      %752 = vmatpush.msra.mxu0 0.0
      %753 = vmatpush.msra.mxu0 0.0
      %754 = vmatpush.msra.mxu0 0.0
      %755 = vmatpush.msra.mxu0 0.0
      %756 = vmatpush.msra.mxu0 0.0
      %757 = vmatpush.msra.mxu0 0.0
      %758 = vmatpush.msra.mxu0 0.0
      %759 = vmatpush.msra.mxu0 0.0
      %760 = vmatpush.msra.mxu0 0.0
      %761 = vmatpush.msra.mxu0 0.0
      %762 = vmatpush.msra.mxu0 0.0
      %763 = vmatpush.msra.mxu0 0.0
      %764 = vmatpush.msra.mxu0 0.0
      %765 = vmatpush.msra.mxu0 0.0
      %766 = vmatpush.msra.mxu0 %v747
      %767 = vmatmul.f32.gmra.mxu0 %v599
      %v768 = vpop.f32.mrf.mxu0
      %v769 = vadd.f32 0.0, %v768
      %770 = vmatmul.f32.gmra.mxu0 %v601
      %v771 = vpop.f32.mrf.mxu0
      %v772 = vadd.f32 0.0, %v771
      %773 = vmatmul.f32.gmra.mxu0 %v603
      %v774 = vpop.f32.mrf.mxu0
      %v775 = vadd.f32 0.0, %v774
      %776 = vmatmul.f32.gmra.mxu0 %v605
      %v777 = vpop.f32.mrf.mxu0
      %v778 = vadd.f32 0.0, %v777
      %779 = vmatmul.f32.gmra.mxu0 %v607
      %v780 = vpop.f32.mrf.mxu0
      %v781 = vadd.f32 0.0, %v780
      %782 = vmatmul.f32.gmra.mxu0 %v609
      %v783 = vpop.f32.mrf.mxu0
      %v784 = vadd.f32 0.0, %v783
      %785 = vmatmul.f32.gmra.mxu0 %v611
      %v786 = vpop.f32.mrf.mxu0
      %v787 = vadd.f32 0.0, %v786
      %788 = vmatmul.f32.gmra.mxu0 %v749
      %v789 = vpop.f32.mrf.mxu0
      %v790 = vadd.f32 0.0, %v789
      %791 = vdwg.mxu0
      %v792 = vadd.f32 %v738, %v769
      %v793 = vadd.f32 %v739, %v772
      %v794 = vadd.f32 %v740, %v775
      %v795 = vadd.f32 %v741, %v778
      %v796 = vadd.f32 %v742, %v781
      %v797 = vadd.f32 %v743, %v784
      %v798 = vadd.f32 %v744, %v787
      %v799 = vadd.f32 %v745, %v790
      %v801 = vrot.slane %v491, 1
      %v802 = vrot.slane %v492, 1
      %v803 = vsel %vm512, %v801, %v802
      %s804 = scalar_lea.vmem %s1, 32
      %v805 = vld [vmem:[%s804] sm:$0xff]
      %v806 = vsel %vm539, %v803, 0
      %808 = vmatpush.msra.mxu0 0.0
      %809 = vmatpush.msra.mxu0 0.0
      %810 = vmatpush.msra.mxu0 0.0
      %811 = vmatpush.msra.mxu0 0.0
      %812 = vmatpush.msra.mxu0 0.0
      %813 = vmatpush.msra.mxu0 0.0
      %814 = vmatpush.msra.mxu0 0.0
      %815 = vmatpush.msra.mxu0 0.0
      %816 = vmatpush.msra.mxu0 0.0
      %817 = vmatpush.msra.mxu0 0.0
      %818 = vmatpush.msra.mxu0 0.0
      %819 = vmatpush.msra.mxu0 0.0
      %820 = vmatpush.msra.mxu0 0.0
      %821 = vmatpush.msra.mxu0 0.0
      %822 = vmatpush.msra.mxu0 0.0
      %823 = vmatpush.msra.mxu0 %v805
      %824 = vmatmul.f32.gmra.mxu0 %v542
      %v825 = vpop.f32.mrf.mxu0
      %v826 = vadd.f32 0.0, %v825
      %827 = vmatmul.f32.gmra.mxu0 %v544
      %v828 = vpop.f32.mrf.mxu0
      %v829 = vadd.f32 0.0, %v828
      %830 = vmatmul.f32.gmra.mxu0 %v546
      %v831 = vpop.f32.mrf.mxu0
      %v832 = vadd.f32 0.0, %v831
      %833 = vmatmul.f32.gmra.mxu0 %v548
      %v834 = vpop.f32.mrf.mxu0
      %v835 = vadd.f32 0.0, %v834
      %836 = vmatmul.f32.gmra.mxu0 %v550
      %v837 = vpop.f32.mrf.mxu0
      %v838 = vadd.f32 0.0, %v837
      %839 = vmatmul.f32.gmra.mxu0 %v552
      %v840 = vpop.f32.mrf.mxu0
      %v841 = vadd.f32 0.0, %v840
      %842 = vmatmul.f32.gmra.mxu0 %v554
      %v843 = vpop.f32.mrf.mxu0
      %v844 = vadd.f32 0.0, %v843
      %845 = vmatmul.f32.gmra.mxu0 %v806
      %v846 = vpop.f32.mrf.mxu0
      %v847 = vadd.f32 0.0, %v846
      %848 = vdwg.mxu0
      %v849 = vadd.f32 %v792, %v826
      %v850 = vadd.f32 %v793, %v829
      %v851 = vadd.f32 %v794, %v832
      %v852 = vadd.f32 %v795, %v835
      %v853 = vadd.f32 %v796, %v838
      %v854 = vadd.f32 %v797, %v841
      %v855 = vadd.f32 %v798, %v844
      %v856 = vadd.f32 %v799, %v847
      %v857 = vrot.slane %v491, 2
      %v858 = vrot.slane %v492, 2
      %v859 = vsel %vm654, %v857, %v858
      %s860 = scalar_lea.vmem %s1, 40
      %v861 = vld [vmem:[%s860] sm:$0xff]
      %v862 = vsel %vm539, %v859, 0
      %864 = vmatpush.msra.mxu0 0.0
      %865 = vmatpush.msra.mxu0 0.0
      %866 = vmatpush.msra.mxu0 0.0
      %867 = vmatpush.msra.mxu0 0.0
      %868 = vmatpush.msra.mxu0 0.0
      %869 = vmatpush.msra.mxu0 0.0
      %870 = vmatpush.msra.mxu0 0.0
      %871 = vmatpush.msra.mxu0 0.0
      %872 = vmatpush.msra.mxu0 0.0
      %873 = vmatpush.msra.mxu0 0.0
      %874 = vmatpush.msra.mxu0 0.0
      %875 = vmatpush.msra.mxu0 0.0
      %876 = vmatpush.msra.mxu0 0.0
      %877 = vmatpush.msra.mxu0 0.0
      %878 = vmatpush.msra.mxu0 0.0
      %879 = vmatpush.msra.mxu0 %v861
      %880 = vmatmul.f32.gmra.mxu0 %v683
      %v881 = vpop.f32.mrf.mxu0
      %v882 = vadd.f32 0.0, %v881
      %883 = vmatmul.f32.gmra.mxu0 %v685
      %v884 = vpop.f32.mrf.mxu0
      %v885 = vadd.f32 0.0, %v884
      %886 = vmatmul.f32.gmra.mxu0 %v687
      %v887 = vpop.f32.mrf.mxu0
      %v888 = vadd.f32 0.0, %v887
      %889 = vmatmul.f32.gmra.mxu0 %v689
      %v890 = vpop.f32.mrf.mxu0
      %v891 = vadd.f32 0.0, %v890
      %892 = vmatmul.f32.gmra.mxu0 %v691
      %v893 = vpop.f32.mrf.mxu0
      %v894 = vadd.f32 0.0, %v893
      %895 = vmatmul.f32.gmra.mxu0 %v693
      %v896 = vpop.f32.mrf.mxu0
      %v897 = vadd.f32 0.0, %v896
      %898 = vmatmul.f32.gmra.mxu0 %v695
      %v899 = vpop.f32.mrf.mxu0
      %v900 = vadd.f32 0.0, %v899
      %901 = vmatmul.f32.gmra.mxu0 %v862
      %v902 = vpop.f32.mrf.mxu0
      %v903 = vadd.f32 0.0, %v902
      %904 = vdwg.mxu0
      %v905 = vadd.f32 %v849, %v882
      %v906 = vadd.f32 %v850, %v885
      %v907 = vadd.f32 %v851, %v888
      %v908 = vadd.f32 %v852, %v891
      %v909 = vadd.f32 %v853, %v894
      %v910 = vadd.f32 %v854, %v897
      %v911 = vadd.f32 %v855, %v900
      %v912 = vadd.f32 %v856, %v903
      %s913 = scalar_lea.vmem %s1, 48
      %v914 = vld [vmem:[%s913] sm:$0xff]
      %v916 = vsel %vm539, %v493, 0
      %918 = vmatpush.msra.mxu0 0.0
      %919 = vmatpush.msra.mxu0 0.0
      %920 = vmatpush.msra.mxu0 0.0
      %921 = vmatpush.msra.mxu0 0.0
      %922 = vmatpush.msra.mxu0 0.0
      %923 = vmatpush.msra.mxu0 0.0
      %924 = vmatpush.msra.mxu0 0.0
      %925 = vmatpush.msra.mxu0 0.0
      %926 = vmatpush.msra.mxu0 0.0
      %927 = vmatpush.msra.mxu0 0.0
      %928 = vmatpush.msra.mxu0 0.0
      %929 = vmatpush.msra.mxu0 0.0
      %930 = vmatpush.msra.mxu0 0.0
      %931 = vmatpush.msra.mxu0 0.0
      %932 = vmatpush.msra.mxu0 0.0
      %933 = vmatpush.msra.mxu0 %v914
      %934 = vmatmul.f32.gmra.mxu0 %v601
      %v935 = vpop.f32.mrf.mxu0
      %v936 = vadd.f32 0.0, %v935
      %937 = vmatmul.f32.gmra.mxu0 %v603
      %v938 = vpop.f32.mrf.mxu0
      %v939 = vadd.f32 0.0, %v938
      %940 = vmatmul.f32.gmra.mxu0 %v605
      %v941 = vpop.f32.mrf.mxu0
      %v942 = vadd.f32 0.0, %v941
      %943 = vmatmul.f32.gmra.mxu0 %v607
      %v944 = vpop.f32.mrf.mxu0
      %v945 = vadd.f32 0.0, %v944
      %946 = vmatmul.f32.gmra.mxu0 %v609
      %v947 = vpop.f32.mrf.mxu0
      %v948 = vadd.f32 0.0, %v947
      %949 = vmatmul.f32.gmra.mxu0 %v611
      %v950 = vpop.f32.mrf.mxu0
      %v951 = vadd.f32 0.0, %v950
      %952 = vmatmul.f32.gmra.mxu0 %v749
      %v953 = vpop.f32.mrf.mxu0
      %v954 = vadd.f32 0.0, %v953
      %955 = vmatmul.f32.gmra.mxu0 %v916
      %v956 = vpop.f32.mrf.mxu0
      %v957 = vadd.f32 0.0, %v956
      %958 = vdwg.mxu0
      %v959 = vadd.f32 %v905, %v936
      %v960 = vadd.f32 %v906, %v939
      %v961 = vadd.f32 %v907, %v942
      %v962 = vadd.f32 %v908, %v945
      %v963 = vadd.f32 %v909, %v948
      %v964 = vadd.f32 %v910, %v951
      %v965 = vadd.f32 %v911, %v954
      %v966 = vadd.f32 %v912, %v957
      %v968 = vrot.slane %v493, 1
      %v969 = vrot.slane %v494, 1
      %v970 = vsel %vm512, %v968, %v969
      %s971 = scalar_lea.vmem %s1, 56
      %v972 = vld [vmem:[%s971] sm:$0xff]
      %v973 = vsel %vm539, %v970, 0
      %975 = vmatpush.msra.mxu0 0.0
      %976 = vmatpush.msra.mxu0 0.0
      %977 = vmatpush.msra.mxu0 0.0
      %978 = vmatpush.msra.mxu0 0.0
      %979 = vmatpush.msra.mxu0 0.0
      %980 = vmatpush.msra.mxu0 0.0
      %981 = vmatpush.msra.mxu0 0.0
      %982 = vmatpush.msra.mxu0 0.0
      %983 = vmatpush.msra.mxu0 0.0
      %984 = vmatpush.msra.mxu0 0.0
      %985 = vmatpush.msra.mxu0 0.0
      %986 = vmatpush.msra.mxu0 0.0
      %987 = vmatpush.msra.mxu0 0.0
      %988 = vmatpush.msra.mxu0 0.0
      %989 = vmatpush.msra.mxu0 0.0
      %990 = vmatpush.msra.mxu0 %v972
      %991 = vmatmul.f32.gmra.mxu0 %v544
      %v992 = vpop.f32.mrf.mxu0
      %v993 = vadd.f32 0.0, %v992
      %994 = vmatmul.f32.gmra.mxu0 %v546
      %v995 = vpop.f32.mrf.mxu0
      %v996 = vadd.f32 0.0, %v995
      %997 = vmatmul.f32.gmra.mxu0 %v548
      %v998 = vpop.f32.mrf.mxu0
      %v999 = vadd.f32 0.0, %v998
      %1000 = vmatmul.f32.gmra.mxu0 %v550
      %v1001 = vpop.f32.mrf.mxu0
      %v1002 = vadd.f32 0.0, %v1001
      %1003 = vmatmul.f32.gmra.mxu0 %v552
      %v1004 = vpop.f32.mrf.mxu0
      %v1005 = vadd.f32 0.0, %v1004
      %1006 = vmatmul.f32.gmra.mxu0 %v554
      %v1007 = vpop.f32.mrf.mxu0
      %v1008 = vadd.f32 0.0, %v1007
      %1009 = vmatmul.f32.gmra.mxu0 %v806
      %v1010 = vpop.f32.mrf.mxu0
      %v1011 = vadd.f32 0.0, %v1010
      %1012 = vmatmul.f32.gmra.mxu0 %v973
      %v1013 = vpop.f32.mrf.mxu0
      %v1014 = vadd.f32 0.0, %v1013
      %1015 = vdwg.mxu0
      %v1016 = vadd.f32 %v959, %v993
      %v1017 = vadd.f32 %v960, %v996
      %v1018 = vadd.f32 %v961, %v999
      %v1019 = vadd.f32 %v962, %v1002
      %v1020 = vadd.f32 %v963, %v1005
      %v1021 = vadd.f32 %v964, %v1008
      %v1022 = vadd.f32 %v965, %v1011
      %v1023 = vadd.f32 %v966, %v1014
      %v1024 = vrot.slane %v493, 2
      %v1025 = vrot.slane %v494, 2
      %v1026 = vsel %vm654, %v1024, %v1025
      %s1027 = scalar_lea.vmem %s1, 64
      %v1028 = vld [vmem:[%s1027] sm:$0xff]
      %v1029 = vsel %vm539, %v1026, 0
      %1031 = vmatpush.msra.mxu0 0.0
      %1032 = vmatpush.msra.mxu0 0.0
      %1033 = vmatpush.msra.mxu0 0.0
      %1034 = vmatpush.msra.mxu0 0.0
      %1035 = vmatpush.msra.mxu0 0.0
      %1036 = vmatpush.msra.mxu0 0.0
      %1037 = vmatpush.msra.mxu0 0.0
      %1038 = vmatpush.msra.mxu0 0.0
      %1039 = vmatpush.msra.mxu0 0.0
      %1040 = vmatpush.msra.mxu0 0.0
      %1041 = vmatpush.msra.mxu0 0.0
      %1042 = vmatpush.msra.mxu0 0.0
      %1043 = vmatpush.msra.mxu0 0.0
      %1044 = vmatpush.msra.mxu0 0.0
      %1045 = vmatpush.msra.mxu0 0.0
      %1046 = vmatpush.msra.mxu0 %v1028
      %1047 = vmatmul.f32.gmra.mxu0 %v685
      %v1048 = vpop.f32.mrf.mxu0
      %v1049 = vadd.f32 0.0, %v1048
      %1050 = vmatmul.f32.gmra.mxu0 %v687
      %v1051 = vpop.f32.mrf.mxu0
      %v1052 = vadd.f32 0.0, %v1051
      %1053 = vmatmul.f32.gmra.mxu0 %v689
      %v1054 = vpop.f32.mrf.mxu0
      %v1055 = vadd.f32 0.0, %v1054
      %1056 = vmatmul.f32.gmra.mxu0 %v691
      %v1057 = vpop.f32.mrf.mxu0
      %v1058 = vadd.f32 0.0, %v1057
      %1059 = vmatmul.f32.gmra.mxu0 %v693
      %v1060 = vpop.f32.mrf.mxu0
      %v1061 = vadd.f32 0.0, %v1060
      %1062 = vmatmul.f32.gmra.mxu0 %v695
      %v1063 = vpop.f32.mrf.mxu0
      %v1064 = vadd.f32 0.0, %v1063
      %1065 = vmatmul.f32.gmra.mxu0 %v862
      %v1066 = vpop.f32.mrf.mxu0
      %v1067 = vadd.f32 0.0, %v1066
      %1068 = vmatmul.f32.gmra.mxu0 %v1029
      %v1069 = vpop.f32.mrf.mxu0
      %v1070 = vadd.f32 0.0, %v1069
      %1071 = vdwg.mxu0
      %v1072 = vadd.f32 %v1016, %v1049
      %v1073 = vadd.f32 %v1017, %v1052
      %v1074 = vadd.f32 %v1018, %v1055
      %v1075 = vadd.f32 %v1019, %v1058
      %v1076 = vadd.f32 %v1020, %v1061
      %v1077 = vadd.f32 %v1021, %v1064
      %v1078 = vadd.f32 %v1022, %v1067
      %v1079 = vadd.f32 %v1023, %v1070
      %1080 = vst.msk [vmem:[%s231] sm:$0xff] %vm539, %v1072
      %1081 = vst.msk [vmem:[%s231 + $0x8] sm:$0xff] %vm539, %v1073
      %1082 = vst.msk [vmem:[%s231 + $0x10] sm:$0xff] %vm539, %v1074
      %1083 = vst.msk [vmem:[%s231 + $0x18] sm:$0xff] %vm539, %v1075
      %1084 = vst.msk [vmem:[%s231 + $0x20] sm:$0xff] %vm539, %v1076
      %1085 = vst.msk [vmem:[%s231 + $0x28] sm:$0xff] %vm539, %v1077
      %1086 = vst.msk [vmem:[%s231 + $0x30] sm:$0xff] %vm539, %v1078
      %1087 = vst.msk [vmem:[%s231 + $0x38] sm:$0xff] %vm539, %v1079
      %v1088 = vsel %vm539, %v1072, 0.0
      %v1089 = vsel %vm539, %v1073, 0.0
      %v1090 = vadd.f32 %v1088, %v1089
      %v1091 = vsel %vm539, %v1074, 0.0
      %v1092 = vadd.f32 %v1090, %v1091
      %v1093 = vsel %vm539, %v1075, 0.0
      %v1094 = vadd.f32 %v1092, %v1093
      %v1095 = vsel %vm539, %v1076, 0.0
      %v1096 = vadd.f32 %v1094, %v1095
      %v1097 = vsel %vm539, %v1077, 0.0
      %v1098 = vadd.f32 %v1096, %v1097
      %v1099 = vsel %vm539, %v1078, 0.0
      %v1100 = vadd.f32 %v1098, %v1099
      %v1101 = vsel %vm539, %v1079, 0.0
      %v1102 = vadd.f32 %v1100, %v1101
      %v1103 = vrot.slane %v1102, 4
      %v1104 = vadd.f32 %v1102, %v1103
      %v1105 = vrot.slane %v1104, 2
      %v1106 = vadd.f32 %v1104, %v1105
      %v1107 = vrot.slane %v1106, 1
      %v1108 = vadd.f32 %v1106, %v1107
      %vm1109 = vcmask 57344
      %1110 = vst.msk [vmem:[%s235] sm:$0x1] %vm1109, %v1108
      %v1111 = vmul.f32 %v1072, %v1072
      %v1112 = vmul.f32 %v1073, %v1073
      %v1113 = vmul.f32 %v1074, %v1074
      %v1114 = vmul.f32 %v1075, %v1075
      %v1115 = vmul.f32 %v1076, %v1076
      %v1116 = vmul.f32 %v1077, %v1077
      %v1117 = vmul.f32 %v1078, %v1078
      %v1118 = vmul.f32 %v1079, %v1079
      %v1119 = vsel %vm539, %v1111, 0.0
      %v1120 = vsel %vm539, %v1112, 0.0
      %v1121 = vadd.f32 %v1119, %v1120
      %v1122 = vsel %vm539, %v1113, 0.0
      %v1123 = vadd.f32 %v1121, %v1122
      %v1124 = vsel %vm539, %v1114, 0.0
      %v1125 = vadd.f32 %v1123, %v1124
      %v1126 = vsel %vm539, %v1115, 0.0
      %v1127 = vadd.f32 %v1125, %v1126
      %v1128 = vsel %vm539, %v1116, 0.0
      %v1129 = vadd.f32 %v1127, %v1128
      %v1130 = vsel %vm539, %v1117, 0.0
      %v1131 = vadd.f32 %v1129, %v1130
      %v1132 = vsel %vm539, %v1118, 0.0
      %v1133 = vadd.f32 %v1131, %v1132
      %v1134 = vrot.slane %v1133, 4
      %v1135 = vadd.f32 %v1133, %v1134
      %v1136 = vrot.slane %v1135, 2
      %v1137 = vadd.f32 %v1135, %v1136
      %v1138 = vrot.slane %v1137, 1
      %v1139 = vadd.f32 %v1137, %v1138
      %1140 = vst.msk [vmem:[%s235 + $0x1] sm:$0x1] %vm1109, %v1139
      %p1141 = scmp.lt.s32.totalorder %s17, 1
      %s1142 = scalar_select %p1141, %s17, 1
      %s1143 = smul.addr %s1142, 8
      %s1144 = smul.addr %s1143, 8
      %s1145 = scalar_lea.vmem %s4, %s1144
      %p1146 = scmp.lt.s32.totalorder %s17, 1
      %s1147 = scalar_select %p1146, %s17, 1
      %s1148 = smul.addr %s1147, 2
      %s1149 = scalar_lea.vmem %s5, %s1148
      // Predicated region
      $region37: #{basic_block_forward.4} parent=35 // pred_check
        %p1150 = pneg %p124
      $region38: #{basic_block_forward.4} parent=35 // pred_check_branch
        %1152 = sbr.rel (%p1150) target = $region40
      $region39: #{basic_block_forward.4} parent=35 // pred_region
        _
      $region40: #{basic_block_forward.4} parent=35 // pred_fallthru
        _
      // Predicated region
      $region41: #{basic_block_forward.4} parent=35 // pred_check
        %p1153 = pneg %p150
      $region42: #{basic_block_forward.4} parent=35 // pred_check_branch
        %1155 = sbr.rel (%p1153) target = $region44
      $region43: #{basic_block_forward.4} parent=35 // pred_region
        _
      $region44: #{basic_block_forward.4} parent=35 // pred_fallthru
        _
    $region36: #{basic_block_forward.4} parent=5 // pred_fallthru
      _
    %p1156 = scmp.le.s32.totalorder 2, %s12
    // Predicated region
    $region45: #{basic_block_forward.4} parent=5 // pred_check
      %p1157 = pneg %p1156
    $region46: #{basic_block_forward.4} parent=5 // pred_check_branch
      %1159 = sbr.rel (%p1157) target = $region48
    $region47: #{basic_block_forward.4} parent=5 // pred_region
      %s1160 = ssub.s32 %s12, 2
      // Predicated region
      $region49: #{basic_block_forward.4} parent=47 // pred_check
        %p1161 = pneg %p130
      $region50: #{basic_block_forward.4} parent=47 // pred_check_branch
        %1163 = sbr.rel (%p1161) target = $region52
      $region51: #{basic_block_forward.4} parent=47 // pred_region
        %p1164 = scmp.lt.s32.totalorder %s18, 1
        %s1165 = scalar_select %p1164, %s18, 1
        %s1166 = smul.addr %s1165, 8
        %s1167 = smul.addr %s1166, 8
        %s1168 = scalar_lea.vmem %s4, %s1167
      $region52: #{basic_block_forward.4} parent=47 // pred_fallthru
        _
      // Predicated region
      $region53: #{basic_block_forward.4} parent=47 // pred_check
        %p1169 = pneg %p156
      $region54: #{basic_block_forward.4} parent=47 // pred_check_branch
        %1171 = sbr.rel (%p1169) target = $region56
      $region55: #{basic_block_forward.4} parent=47 // pred_region
        %p1172 = scmp.lt.s32.totalorder %s18, 1
        %s1173 = scalar_select %p1172, %s18, 1
        %s1174 = smul.addr %s1173, 2
        %s1175 = scalar_lea.vmem %s5, %s1174
      $region56: #{basic_block_forward.4} parent=47 // pred_fallthru
        _
    $region48: #{basic_block_forward.4} parent=5 // pred_fallthru
      _
  $region6: #{basic_block_forward.4} parent=0 // loop_footer
    %s16 = sadd.s32 1, %s12
  $region7: #{basic_block_forward.4} parent=0 // loop_footer_branch
    %11 = sbr.rel target = $region3
  $region8: #{basic_block_forward.4} parent=0 // loop_exit
    _

</llo_original>
